<compile_context>
chip_gen: v6e
topology: v6e:2x2x1
jax: 0.10.0
libtpu: 0.0.40
codegen_flags: <defaults>
</compile_context>

<pallas_src>
import jax
import jax.numpy as jnp
import numpy as np
from jax.experimental import pallas as pl
from jax.experimental.pallas import tpu as pltpu


# ----------------------------------------------------------------- kernel

def _cifar_fused_kernel(x_ref, w1_ref, b1_ref, p1_ref, w2_ref, b2_ref, p2_ref,
                        wf1_ref, bf1_ref, wf2_ref, bf2_ref, wf3_ref, bf3_ref,
                        o_ref):
    f32 = jnp.float32

    # ---- conv1 (3->6, 5x5) + ReLU + 2x2 max-pool ---------------------------
    # x_ref: [1, 32, 96]  (one image, rows = H, lanes = W*C)
    # w1_ref: [5, 96, 256] Toeplitz; lanes [0,128)=pool-col parity 0,
    #                                lanes [128,256)=parity 1 (84 used each).
    s1 = jnp.zeros((28, 256), f32)
    for i in range(5):                                   # static, unrolled
        s1 = s1 + jnp.dot(x_ref[0, i:i + 28, :], w1_ref[i],
                          preferred_element_type=f32)
    b1 = b1_ref[...]                                     # [1, 128]
    colp1 = jnp.maximum(jnp.maximum(s1[:, :128] + b1, 0.0),
                        jnp.maximum(s1[:, 128:] + b1, 0.0))      # [28, 128]
    # row pooling via 0/1 selection matmuls (even rows, odd rows)
    pooled1 = jnp.maximum(
        jnp.dot(p1_ref[0], colp1, preferred_element_type=f32),
        jnp.dot(p1_ref[1], colp1, preferred_element_type=f32))   # [14, 128]

    # ---- conv2 (6->16, 5x5) + ReLU + 2x2 max-pool --------------------------
    s2 = jnp.zeros((10, 256), f32)
    for i in range(5):
        s2 = s2 + jnp.dot(pooled1[i:i + 10, :], w2_ref[i],
                          preferred_element_type=f32)
    b2 = b2_ref[...]                                     # [1, 128]
    colp2 = jnp.maximum(jnp.maximum(s2[:, :128] + b2, 0.0),
                        jnp.maximum(s2[:, 128:] + b2, 0.0))      # [10, 128]
    pooled2 = jnp.maximum(
        jnp.dot(p2_ref[0], colp2, preferred_element_type=f32),
        jnp.dot(p2_ref[1], colp2, preferred_element_type=f32))   # [5, 128]

    # ---- fc1 -> relu -> fc2 -> relu -> fc3 -> log_softmax ------------------
    # fc widths padded to 128 lanes; fc1's weight rows are pre-permuted so the
    # in-kernel (h, w, c) layout matches torch.flatten of the NCHW tensor.
    h1 = bf1_ref[...]                                    # [1, 128]
    for h in range(5):
        h1 = h1 + jnp.dot(pooled2[h:h + 1, :], wf1_ref[h],
                          preferred_element_type=f32)
    h1 = jnp.maximum(h1, 0.0)                            # [1, 128]
    h2 = jnp.maximum(jnp.dot(h1, wf2_ref[...], preferred_element_type=f32)
                     + bf2_ref[...], 0.0)                # [1, 128]
    logits = (jnp.dot(h2, wf3_ref[...], preferred_element_type=f32)
              + bf3_ref[...])                            # [1, 128]

    # masked log_softmax over the 10 real classes (padded lanes excluded)
    col = jax.lax.broadcasted_iota(jnp.int32, (1, 128), 1)
    valid = col < 10
    logits = jnp.where(valid, logits, jnp.float32(-1e30))
    m = jnp.max(logits, axis=-1, keepdims=True)
    z = logits - m
    e = jnp.where(valid, jnp.exp(z), 0.0)
    lse = jnp.log(jnp.sum(e, axis=-1, keepdims=True))
    o_ref[0] = z - lse


# ----------------------------------------------------------------- weight prep
# Done ONCE on the host; the forward path has no per-call weight transforms.

def _conv_toeplitz_padded(w, out_pw, k_pad, n_pad):
    """w: [OC, IC, KH, KW] -> [KH, k_pad, 2*n_pad].

    T[i, w_in*IC + c, s*n_pad + pw*OC + oc] = w[oc, c, i, j] with
    w_in = 2*pw + s + j, so that (x2d[oh:oh+OH, :] @ T[i]) summed over i gives
    the conv output at row `oh`, pool column `pw`, with pool column-parity s
    living in lane half s (lane-128 aligned split, zero-padded)."""
    oc, ic, kh, kw = w.shape
    t = np.zeros((kh, k_pad, 2 * n_pad), np.float32)
    for s in range(2):
        for i in range(kh):
            for pw in range(out_pw):
                for j in range(kw):
                    w_in = 2 * pw + s + j
                    t[i, w_in * ic:(w_in + 1) * ic,
                      s * n_pad + pw * oc: s * n_pad + (pw + 1) * oc] = \
                        w[:, :, i, j].T
    return t


def _row_pool_selectors(n_out):
    """0/1 matrices [2, n_out, 2*n_out] selecting even / odd rows."""
    p = np.zeros((2, n_out, 2 * n_out), np.float32)
    for r in range(2):
        for t in range(n_out):
            p[r, t, 2 * t + r] = 1.0
    return p


def prepare_kernel_params(params):
    c1w = np.asarray(params["conv1_w"], np.float32)
    c2w = np.asarray(params["conv2_w"], np.float32)
    f1w = np.asarray(params["fc1_w"], np.float32)
    f2w = np.asarray(params["fc2_w"], np.float32)
    f3w = np.asarray(params["fc3_w"], np.float32)

    # conv biases, tiled over pool-output width, zero-padded to 128 lanes.
    b1 = np.zeros((1, 128), np.float32)
    b1[0, :84] = np.tile(np.asarray(params["conv1_b"], np.float32), 14)
    b2 = np.zeros((1, 128), np.float32)
    b2[0, :80] = np.tile(np.asarray(params["conv2_b"], np.float32), 5)

    # fc1: permute input rows so index (w*16 + c) at row h matches
    # torch.flatten of the NCHW [16,5,5] tensor (index c*25 + h*5 + w);
    # pad both dims to 128.
    wf1 = np.zeros((5, 128, 128), np.float32)
    for h in range(5):
        for w_ in range(5):
            for c in range(16):
                wf1[h, w_ * 16 + c, :120] = f1w[:, c * 25 + h * 5 + w_]

    wf2 = np.zeros((128, 128), np.float32)
    wf2[:120, :84] = f2w.T
    wf3 = np.zeros((128, 128), np.float32)
    wf3[:84, :10] = f3w.T

    bf1 = np.zeros((1, 128), np.float32)
    bf1[0, :120] = np.asarray(params["fc1_b"], np.float32)
    bf2 = np.zeros((1, 128), np.float32)
    bf2[0, :84] = np.asarray(params["fc2_b"], np.float32)
    bf3 = np.zeros((1, 128), np.float32)
    bf3[0, :10] = np.asarray(params["fc3_b"], np.float32)

    kp = {
        "w1": _conv_toeplitz_padded(c1w, 14, 96, 128),    # [5, 96, 256]
        "b1": b1,
        "p1": _row_pool_selectors(14),                    # [2, 14, 28]
        "w2": _conv_toeplitz_padded(c2w, 5, 128, 128),    # [5, 128, 256]
        "b2": b2,
        "p2": _row_pool_selectors(5),                     # [2, 5, 10]
        "wf1": wf1, "bf1": bf1, "wf2": wf2, "bf2": bf2, "wf3": wf3, "bf3": bf3,
    }
    return {k: jnp.asarray(v) for k, v in kp.items()}


# ----------------------------------------------------------------- params

def init_params(key):
    """PyTorch-default-style uniform init (bound = 1/sqrt(fan_in)), PyTorch
    native weight layouts: conv [OC,IC,KH,KW], linear [OUT,IN]."""
    def uni(k, shape, fan_in):
        bound = 1.0 / jnp.sqrt(float(fan_in))
        return jax.random.uniform(k, shape, jnp.float32, -bound, bound)

    ks = jax.random.split(key, 10)
    return {
        "conv1_w": uni(ks[0], (6, 3, 5, 5), 3 * 5 * 5),
        "conv1_b": uni(ks[1], (6,), 3 * 5 * 5),
        "conv2_w": uni(ks[2], (16, 6, 5, 5), 6 * 5 * 5),
        "conv2_b": uni(ks[3], (16,), 6 * 5 * 5),
        "fc1_w": uni(ks[4], (120, 400), 400),
        "fc1_b": uni(ks[5], (120,), 400),
        "fc2_w": uni(ks[6], (84, 120), 120),
        "fc2_b": uni(ks[7], (84,), 120),
        "fc3_w": uni(ks[8], (10, 84), 84),
        "fc3_b": uni(ks[9], (10,), 84),
    }


# ----------------------------------------------------------------- forward

def cifar_cnn_forward(x_nchw, kp):
    B = x_nchw.shape[0]
    # NCHW -> [B, H, W*C] 2D-per-image layout for the Toeplitz convs.
    x2d = jnp.transpose(x_nchw.astype(jnp.float32),
                        (0, 2, 3, 1)).reshape(B, 32, 96)

    weight_names = ["w1", "b1", "p1", "w2", "b2", "p2",
                    "wf1", "bf1", "wf2", "bf2", "wf3", "bf3"]
    weights = [kp[n] for n in weight_names]

    def full_spec(arr):
        zeros = (0,) * arr.ndim
        return pl.BlockSpec(arr.shape, lambda b, _z=zeros: _z)

    out = pl.pallas_call(
        _cifar_fused_kernel,
        out_shape=jax.ShapeDtypeStruct((B, 1, 128), jnp.float32),
        grid=(B,),
        in_specs=[pl.BlockSpec((1, 32, 96), lambda b: (b, 0, 0))]
                 + [full_spec(w) for w in weights],
        out_specs=pl.BlockSpec((1, 1, 128), lambda b: (b, 0, 0)),
        compiler_params=pltpu.CompilerParams(
            dimension_semantics=("parallel",)),
    )(x2d, *weights)

    return out.reshape(B, 128)[:, :10]


# ----------------------------------------------------------------- reference

def reference_forward(x, params):
    """Pure-JAX (XLA) reference of the PyTorch module, high precision."""
    hp = jax.lax.Precision.HIGHEST
    dn = ("NCHW", "OIHW", "NCHW")

    def conv(x, w, b):
        y = jax.lax.conv_general_dilated(x, w, (1, 1), "VALID",
                                         dimension_numbers=dn, precision=hp)
        return y + b[None, :, None, None]

    def pool(x):
        return jax.lax.reduce_window(x, -jnp.inf, jax.lax.max,
                                     (1, 1, 2, 2), (1, 1, 2, 2), "VALID")

    y = pool(jax.nn.relu(conv(x, params["conv1_w"], params["conv1_b"])))
    y = pool(jax.nn.relu(conv(y, params["conv2_w"], params["conv2_b"])))
    y = y.reshape(y.shape[0], -1)                       # torch.flatten order
    y = jax.nn.relu(jnp.dot(y, params["fc1_w"].T, precision=hp)
                    + params["fc1_b"])
    y = jax.nn.relu(jnp.dot(y, params["fc2_w"].T, precision=hp)
                    + params["fc2_b"])
    y = jnp.dot(y, params["fc3_w"].T, precision=hp) + params["fc3_b"]
    return jax.nn.log_softmax(y, axis=-1)


if __name__ == "__main__":
    key = jax.random.PRNGKey(0)
    k_x, k_p = jax.random.split(key)
    # CIFAR geometry required by fc1's 16*5*5 input: 32 -> 28 -> 14 -> 10 -> 5.
    x = jax.random.normal(k_x, (2, 3, 32, 32), jnp.float32)
    params = init_params(k_p)
    kparams = prepare_kernel_params(params)   # one-time host-side weight prep

    fwd = jax.jit(cifar_cnn_forward)
    out = jax.block_until_ready(fwd(x, kparams))
    assert out.shape == (2, 10)

    ref = jax.block_until_ready(reference_forward(x, params))
    np.testing.assert_allclose(np.asarray(out), np.asarray(ref),
                               atol=5e-2, rtol=0)
    print("KERNEL_OK")
</pallas_src>

<mosaic_0001>
module attributes {stable_mosaic.version = 11 : i64} {
  func.func @_cifar_fused_kernel(%arg0: i32, %arg1: memref<1x32x96xf32, #tpu.memory_space<vmem>>, %arg2: memref<5x96x256xf32, #tpu.memory_space<vmem>>, %arg3: memref<1x128xf32, #tpu.memory_space<vmem>>, %arg4: memref<2x14x28xf32, #tpu.memory_space<vmem>>, %arg5: memref<5x128x256xf32, #tpu.memory_space<vmem>>, %arg6: memref<1x128xf32, #tpu.memory_space<vmem>>, %arg7: memref<2x5x10xf32, #tpu.memory_space<vmem>>, %arg8: memref<5x128x128xf32, #tpu.memory_space<vmem>>, %arg9: memref<1x128xf32, #tpu.memory_space<vmem>>, %arg10: memref<128x128xf32, #tpu.memory_space<vmem>>, %arg11: memref<1x128xf32, #tpu.memory_space<vmem>>, %arg12: memref<128x128xf32, #tpu.memory_space<vmem>>, %arg13: memref<1x128xf32, #tpu.memory_space<vmem>>, %arg14: memref<1x1x128xf32, #tpu.memory_space<vmem>>) attributes {dimension_semantics = [#tpu.dimension_semantics<parallel>], iteration_bounds = array<i64: 2>, scalar_prefetch = 0 : i64, scratch_operands = 0 : i64, tpu.core_type = #tpu.core_type<tc>, window_params = [{transform_indices = @transform_0, window_bounds = array<i64: 1, 32, 96>}, {pipeline_mode = #tpu.pipeline_mode<synchronous>, transform_indices = @transform_1, window_bounds = array<i64: 5, 96, 256>}, {pipeline_mode = #tpu.pipeline_mode<synchronous>, transform_indices = @transform_2, window_bounds = array<i64: 1, 128>}, {pipeline_mode = #tpu.pipeline_mode<synchronous>, transform_indices = @transform_3, window_bounds = array<i64: 2, 14, 28>}, {pipeline_mode = #tpu.pipeline_mode<synchronous>, transform_indices = @transform_4, window_bounds = array<i64: 5, 128, 256>}, {pipeline_mode = #tpu.pipeline_mode<synchronous>, transform_indices = @transform_5, window_bounds = array<i64: 1, 128>}, {pipeline_mode = #tpu.pipeline_mode<synchronous>, transform_indices = @transform_6, window_bounds = array<i64: 2, 5, 10>}, {pipeline_mode = #tpu.pipeline_mode<synchronous>, transform_indices = @transform_7, window_bounds = array<i64: 5, 128, 128>}, {pipeline_mode = #tpu.pipeline_mode<synchronous>, transform_indices = @transform_8, window_bounds = array<i64: 1, 128>}, {pipeline_mode = #tpu.pipeline_mode<synchronous>, transform_indices = @transform_9, window_bounds = array<i64: 128, 128>}, {pipeline_mode = #tpu.pipeline_mode<synchronous>, transform_indices = @transform_10, window_bounds = array<i64: 1, 128>}, {pipeline_mode = #tpu.pipeline_mode<synchronous>, transform_indices = @transform_11, window_bounds = array<i64: 128, 128>}, {pipeline_mode = #tpu.pipeline_mode<synchronous>, transform_indices = @transform_12, window_bounds = array<i64: 1, 128>}, {transform_indices = @transform_13, window_bounds = array<i64: 1, 1, 128>}]} {
    %cst = arith.constant 0.000000e+00 : f32
    %0 = vector.broadcast %cst : f32 to vector<28x256xf32>
    %c0 = arith.constant 0 : index
    %c0_0 = arith.constant 0 : index
    %c0_1 = arith.constant 0 : index
    %1 = vector.load %arg1[%c0, %c0_0, %c0_1] : memref<1x32x96xf32, #tpu.memory_space<vmem>>, vector<1x28x96xf32>
    %2 = vector.shape_cast %1 : vector<1x28x96xf32> to vector<28x96xf32>
    %c0_2 = arith.constant 0 : index
    %c0_3 = arith.constant 0 : index
    %c0_4 = arith.constant 0 : index
    %3 = vector.load %arg2[%c0_2, %c0_3, %c0_4] : memref<5x96x256xf32, #tpu.memory_space<vmem>>, vector<1x96x256xf32>
    %4 = vector.shape_cast %3 : vector<1x96x256xf32> to vector<96x256xf32>
    %cst_5 = arith.constant dense<0.000000e+00> : vector<28x256xf32>
    %5 = tpu.matmul %2, %4, %cst_5 {dimension_numbers = #tpu.dot_dimension_numbers<[1], [0], [0], [1], [0, 0, 1, 1], [], []>} : vector<28x96xf32>, vector<96x256xf32>, vector<28x256xf32> -> vector<28x256xf32>
    %6 = arith.addf %0, %5 : vector<28x256xf32>
    %c0_6 = arith.constant 0 : index
    %c1 = arith.constant 1 : index
    %c0_7 = arith.constant 0 : index
    %7 = vector.load %arg1[%c0_6, %c1, %c0_7] : memref<1x32x96xf32, #tpu.memory_space<vmem>>, vector<1x28x96xf32>
    %8 = vector.shape_cast %7 : vector<1x28x96xf32> to vector<28x96xf32>
    %c1_8 = arith.constant 1 : index
    %c0_9 = arith.constant 0 : index
    %c0_10 = arith.constant 0 : index
    %9 = vector.load %arg2[%c1_8, %c0_9, %c0_10] : memref<5x96x256xf32, #tpu.memory_space<vmem>>, vector<1x96x256xf32>
    %10 = vector.shape_cast %9 : vector<1x96x256xf32> to vector<96x256xf32>
    %cst_11 = arith.constant dense<0.000000e+00> : vector<28x256xf32>
    %11 = tpu.matmul %8, %10, %cst_11 {dimension_numbers = #tpu.dot_dimension_numbers<[1], [0], [0], [1], [0, 0, 1, 1], [], []>} : vector<28x96xf32>, vector<96x256xf32>, vector<28x256xf32> -> vector<28x256xf32>
    %12 = arith.addf %6, %11 : vector<28x256xf32>
    %c0_12 = arith.constant 0 : index
    %c2 = arith.constant 2 : index
    %c0_13 = arith.constant 0 : index
    %13 = vector.load %arg1[%c0_12, %c2, %c0_13] : memref<1x32x96xf32, #tpu.memory_space<vmem>>, vector<1x28x96xf32>
    %14 = vector.shape_cast %13 : vector<1x28x96xf32> to vector<28x96xf32>
    %c2_14 = arith.constant 2 : index
    %c0_15 = arith.constant 0 : index
    %c0_16 = arith.constant 0 : index
    %15 = vector.load %arg2[%c2_14, %c0_15, %c0_16] : memref<5x96x256xf32, #tpu.memory_space<vmem>>, vector<1x96x256xf32>
    %16 = vector.shape_cast %15 : vector<1x96x256xf32> to vector<96x256xf32>
    %cst_17 = arith.constant dense<0.000000e+00> : vector<28x256xf32>
    %17 = tpu.matmul %14, %16, %cst_17 {dimension_numbers = #tpu.dot_dimension_numbers<[1], [0], [0], [1], [0, 0, 1, 1], [], []>} : vector<28x96xf32>, vector<96x256xf32>, vector<28x256xf32> -> vector<28x256xf32>
    %18 = arith.addf %12, %17 : vector<28x256xf32>
    %c0_18 = arith.constant 0 : index
    %c3 = arith.constant 3 : index
    %c0_19 = arith.constant 0 : index
    %19 = vector.load %arg1[%c0_18, %c3, %c0_19] : memref<1x32x96xf32, #tpu.memory_space<vmem>>, vector<1x28x96xf32>
    %20 = vector.shape_cast %19 : vector<1x28x96xf32> to vector<28x96xf32>
    %c3_20 = arith.constant 3 : index
    %c0_21 = arith.constant 0 : index
    %c0_22 = arith.constant 0 : index
    %21 = vector.load %arg2[%c3_20, %c0_21, %c0_22] : memref<5x96x256xf32, #tpu.memory_space<vmem>>, vector<1x96x256xf32>
    %22 = vector.shape_cast %21 : vector<1x96x256xf32> to vector<96x256xf32>
    %cst_23 = arith.constant dense<0.000000e+00> : vector<28x256xf32>
    %23 = tpu.matmul %20, %22, %cst_23 {dimension_numbers = #tpu.dot_dimension_numbers<[1], [0], [0], [1], [0, 0, 1, 1], [], []>} : vector<28x96xf32>, vector<96x256xf32>, vector<28x256xf32> -> vector<28x256xf32>
    %24 = arith.addf %18, %23 : vector<28x256xf32>
    %c0_24 = arith.constant 0 : index
    %c4 = arith.constant 4 : index
    %c0_25 = arith.constant 0 : index
    %25 = vector.load %arg1[%c0_24, %c4, %c0_25] : memref<1x32x96xf32, #tpu.memory_space<vmem>>, vector<1x28x96xf32>
    %26 = vector.shape_cast %25 : vector<1x28x96xf32> to vector<28x96xf32>
    %c4_26 = arith.constant 4 : index
    %c0_27 = arith.constant 0 : index
    %c0_28 = arith.constant 0 : index
    %27 = vector.load %arg2[%c4_26, %c0_27, %c0_28] : memref<5x96x256xf32, #tpu.memory_space<vmem>>, vector<1x96x256xf32>
    %28 = vector.shape_cast %27 : vector<1x96x256xf32> to vector<96x256xf32>
    %cst_29 = arith.constant dense<0.000000e+00> : vector<28x256xf32>
    %29 = tpu.matmul %26, %28, %cst_29 {dimension_numbers = #tpu.dot_dimension_numbers<[1], [0], [0], [1], [0, 0, 1, 1], [], []>} : vector<28x96xf32>, vector<96x256xf32>, vector<28x256xf32> -> vector<28x256xf32>
    %30 = arith.addf %24, %29 : vector<28x256xf32>
    %c0_30 = arith.constant 0 : index
    %c0_31 = arith.constant 0 : index
    %31 = vector.load %arg3[%c0_30, %c0_31] : memref<1x128xf32, #tpu.memory_space<vmem>>, vector<1x128xf32>
    %32 = vector.extract_strided_slice %30 {offsets = [0, 0], sizes = [28, 128], strides = [1, 1]} : vector<28x256xf32> to vector<28x128xf32>
    %33 = vector.broadcast %31 : vector<1x128xf32> to vector<28x128xf32>
    %34 = arith.addf %32, %33 : vector<28x128xf32>
    %cst_32 = arith.constant 0.000000e+00 : f32
    %35 = vector.broadcast %cst_32 : f32 to vector<28x128xf32>
    %36 = arith.maximumf %34, %35 : vector<28x128xf32>
    %37 = vector.extract_strided_slice %30 {offsets = [0, 128], sizes = [28, 128], strides = [1, 1]} : vector<28x256xf32> to vector<28x128xf32>
    %38 = vector.broadcast %31 : vector<1x128xf32> to vector<28x128xf32>
    %39 = arith.addf %37, %38 : vector<28x128xf32>
    %cst_33 = arith.constant 0.000000e+00 : f32
    %40 = vector.broadcast %cst_33 : f32 to vector<28x128xf32>
    %41 = arith.maximumf %39, %40 : vector<28x128xf32>
    %42 = arith.maximumf %36, %41 : vector<28x128xf32>
    %c0_34 = arith.constant 0 : index
    %c0_35 = arith.constant 0 : index
    %c0_36 = arith.constant 0 : index
    %43 = vector.load %arg4[%c0_34, %c0_35, %c0_36] : memref<2x14x28xf32, #tpu.memory_space<vmem>>, vector<1x14x28xf32>
    %44 = vector.shape_cast %43 : vector<1x14x28xf32> to vector<14x28xf32>
    %cst_37 = arith.constant dense<0.000000e+00> : vector<14x128xf32>
    %45 = tpu.matmul %44, %42, %cst_37 {dimension_numbers = #tpu.dot_dimension_numbers<[1], [0], [0], [1], [0, 0, 1, 1], [], []>} : vector<14x28xf32>, vector<28x128xf32>, vector<14x128xf32> -> vector<14x128xf32>
    %c1_38 = arith.constant 1 : index
    %c0_39 = arith.constant 0 : index
    %c0_40 = arith.constant 0 : index
    %46 = vector.load %arg4[%c1_38, %c0_39, %c0_40] : memref<2x14x28xf32, #tpu.memory_space<vmem>>, vector<1x14x28xf32>
    %47 = vector.shape_cast %46 : vector<1x14x28xf32> to vector<14x28xf32>
    %cst_41 = arith.constant dense<0.000000e+00> : vector<14x128xf32>
    %48 = tpu.matmul %47, %42, %cst_41 {dimension_numbers = #tpu.dot_dimension_numbers<[1], [0], [0], [1], [0, 0, 1, 1], [], []>} : vector<14x28xf32>, vector<28x128xf32>, vector<14x128xf32> -> vector<14x128xf32>
    %49 = arith.maximumf %45, %48 : vector<14x128xf32>
    %cst_42 = arith.constant 0.000000e+00 : f32
    %50 = vector.broadcast %cst_42 : f32 to vector<10x256xf32>
    %51 = vector.extract_strided_slice %49 {offsets = [0, 0], sizes = [10, 128], strides = [1, 1]} : vector<14x128xf32> to vector<10x128xf32>
    %c0_43 = arith.constant 0 : index
    %c0_44 = arith.constant 0 : index
    %c0_45 = arith.constant 0 : index
    %52 = vector.load %arg5[%c0_43, %c0_44, %c0_45] : memref<5x128x256xf32, #tpu.memory_space<vmem>>, vector<1x128x256xf32>
    %53 = vector.shape_cast %52 : vector<1x128x256xf32> to vector<128x256xf32>
    %cst_46 = arith.constant dense<0.000000e+00> : vector<10x256xf32>
    %54 = tpu.matmul %51, %53, %cst_46 {dimension_numbers = #tpu.dot_dimension_numbers<[1], [0], [0], [1], [0, 0, 1, 1], [], []>} : vector<10x128xf32>, vector<128x256xf32>, vector<10x256xf32> -> vector<10x256xf32>
    %55 = arith.addf %50, %54 : vector<10x256xf32>
    %56 = vector.extract_strided_slice %49 {offsets = [1, 0], sizes = [10, 128], strides = [1, 1]} : vector<14x128xf32> to vector<10x128xf32>
    %c1_47 = arith.constant 1 : index
    %c0_48 = arith.constant 0 : index
    %c0_49 = arith.constant 0 : index
    %57 = vector.load %arg5[%c1_47, %c0_48, %c0_49] : memref<5x128x256xf32, #tpu.memory_space<vmem>>, vector<1x128x256xf32>
    %58 = vector.shape_cast %57 : vector<1x128x256xf32> to vector<128x256xf32>
    %cst_50 = arith.constant dense<0.000000e+00> : vector<10x256xf32>
    %59 = tpu.matmul %56, %58, %cst_50 {dimension_numbers = #tpu.dot_dimension_numbers<[1], [0], [0], [1], [0, 0, 1, 1], [], []>} : vector<10x128xf32>, vector<128x256xf32>, vector<10x256xf32> -> vector<10x256xf32>
    %60 = arith.addf %55, %59 : vector<10x256xf32>
    %61 = vector.extract_strided_slice %49 {offsets = [2, 0], sizes = [10, 128], strides = [1, 1]} : vector<14x128xf32> to vector<10x128xf32>
    %c2_51 = arith.constant 2 : index
    %c0_52 = arith.constant 0 : index
    %c0_53 = arith.constant 0 : index
    %62 = vector.load %arg5[%c2_51, %c0_52, %c0_53] : memref<5x128x256xf32, #tpu.memory_space<vmem>>, vector<1x128x256xf32>
    %63 = vector.shape_cast %62 : vector<1x128x256xf32> to vector<128x256xf32>
    %cst_54 = arith.constant dense<0.000000e+00> : vector<10x256xf32>
    %64 = tpu.matmul %61, %63, %cst_54 {dimension_numbers = #tpu.dot_dimension_numbers<[1], [0], [0], [1], [0, 0, 1, 1], [], []>} : vector<10x128xf32>, vector<128x256xf32>, vector<10x256xf32> -> vector<10x256xf32>
    %65 = arith.addf %60, %64 : vector<10x256xf32>
    %66 = vector.extract_strided_slice %49 {offsets = [3, 0], sizes = [10, 128], strides = [1, 1]} : vector<14x128xf32> to vector<10x128xf32>
    %c3_55 = arith.constant 3 : index
    %c0_56 = arith.constant 0 : index
    %c0_57 = arith.constant 0 : index
    %67 = vector.load %arg5[%c3_55, %c0_56, %c0_57] : memref<5x128x256xf32, #tpu.memory_space<vmem>>, vector<1x128x256xf32>
    %68 = vector.shape_cast %67 : vector<1x128x256xf32> to vector<128x256xf32>
    %cst_58 = arith.constant dense<0.000000e+00> : vector<10x256xf32>
    %69 = tpu.matmul %66, %68, %cst_58 {dimension_numbers = #tpu.dot_dimension_numbers<[1], [0], [0], [1], [0, 0, 1, 1], [], []>} : vector<10x128xf32>, vector<128x256xf32>, vector<10x256xf32> -> vector<10x256xf32>
    %70 = arith.addf %65, %69 : vector<10x256xf32>
    %71 = vector.extract_strided_slice %49 {offsets = [4, 0], sizes = [10, 128], strides = [1, 1]} : vector<14x128xf32> to vector<10x128xf32>
    %c4_59 = arith.constant 4 : index
    %c0_60 = arith.constant 0 : index
    %c0_61 = arith.constant 0 : index
    %72 = vector.load %arg5[%c4_59, %c0_60, %c0_61] : memref<5x128x256xf32, #tpu.memory_space<vmem>>, vector<1x128x256xf32>
    %73 = vector.shape_cast %72 : vector<1x128x256xf32> to vector<128x256xf32>
    %cst_62 = arith.constant dense<0.000000e+00> : vector<10x256xf32>
    %74 = tpu.matmul %71, %73, %cst_62 {dimension_numbers = #tpu.dot_dimension_numbers<[1], [0], [0], [1], [0, 0, 1, 1], [], []>} : vector<10x128xf32>, vector<128x256xf32>, vector<10x256xf32> -> vector<10x256xf32>
    %75 = arith.addf %70, %74 : vector<10x256xf32>
    %c0_63 = arith.constant 0 : index
    %c0_64 = arith.constant 0 : index
    %76 = vector.load %arg6[%c0_63, %c0_64] : memref<1x128xf32, #tpu.memory_space<vmem>>, vector<1x128xf32>
    %77 = vector.extract_strided_slice %75 {offsets = [0, 0], sizes = [10, 128], strides = [1, 1]} : vector<10x256xf32> to vector<10x128xf32>
    %78 = vector.broadcast %76 : vector<1x128xf32> to vector<10x128xf32>
    %79 = arith.addf %77, %78 : vector<10x128xf32>
    %cst_65 = arith.constant 0.000000e+00 : f32
    %80 = vector.broadcast %cst_65 : f32 to vector<10x128xf32>
    %81 = arith.maximumf %79, %80 : vector<10x128xf32>
    %82 = vector.extract_strided_slice %75 {offsets = [0, 128], sizes = [10, 128], strides = [1, 1]} : vector<10x256xf32> to vector<10x128xf32>
    %83 = vector.broadcast %76 : vector<1x128xf32> to vector<10x128xf32>
    %84 = arith.addf %82, %83 : vector<10x128xf32>
    %cst_66 = arith.constant 0.000000e+00 : f32
    %85 = vector.broadcast %cst_66 : f32 to vector<10x128xf32>
    %86 = arith.maximumf %84, %85 : vector<10x128xf32>
    %87 = arith.maximumf %81, %86 : vector<10x128xf32>
    %c0_67 = arith.constant 0 : index
    %c0_68 = arith.constant 0 : index
    %c0_69 = arith.constant 0 : index
    %88 = vector.load %arg7[%c0_67, %c0_68, %c0_69] : memref<2x5x10xf32, #tpu.memory_space<vmem>>, vector<1x5x10xf32>
    %89 = vector.shape_cast %88 : vector<1x5x10xf32> to vector<5x10xf32>
    %cst_70 = arith.constant dense<0.000000e+00> : vector<5x128xf32>
    %90 = tpu.matmul %89, %87, %cst_70 {dimension_numbers = #tpu.dot_dimension_numbers<[1], [0], [0], [1], [0, 0, 1, 1], [], []>} : vector<5x10xf32>, vector<10x128xf32>, vector<5x128xf32> -> vector<5x128xf32>
    %c1_71 = arith.constant 1 : index
    %c0_72 = arith.constant 0 : index
    %c0_73 = arith.constant 0 : index
    %91 = vector.load %arg7[%c1_71, %c0_72, %c0_73] : memref<2x5x10xf32, #tpu.memory_space<vmem>>, vector<1x5x10xf32>
    %92 = vector.shape_cast %91 : vector<1x5x10xf32> to vector<5x10xf32>
    %cst_74 = arith.constant dense<0.000000e+00> : vector<5x128xf32>
    %93 = tpu.matmul %92, %87, %cst_74 {dimension_numbers = #tpu.dot_dimension_numbers<[1], [0], [0], [1], [0, 0, 1, 1], [], []>} : vector<5x10xf32>, vector<10x128xf32>, vector<5x128xf32> -> vector<5x128xf32>
    %94 = arith.maximumf %90, %93 : vector<5x128xf32>
    %c0_75 = arith.constant 0 : index
    %c0_76 = arith.constant 0 : index
    %95 = vector.load %arg9[%c0_75, %c0_76] : memref<1x128xf32, #tpu.memory_space<vmem>>, vector<1x128xf32>
    %96 = vector.extract_strided_slice %94 {offsets = [0, 0], sizes = [1, 128], strides = [1, 1]} : vector<5x128xf32> to vector<1x128xf32>
    %c0_77 = arith.constant 0 : index
    %c0_78 = arith.constant 0 : index
    %c0_79 = arith.constant 0 : index
    %97 = vector.load %arg8[%c0_77, %c0_78, %c0_79] : memref<5x128x128xf32, #tpu.memory_space<vmem>>, vector<1x128x128xf32>
    %98 = vector.shape_cast %97 : vector<1x128x128xf32> to vector<128x128xf32>
    %cst_80 = arith.constant dense<0.000000e+00> : vector<1x128xf32>
    %99 = tpu.matmul %96, %98, %cst_80 {dimension_numbers = #tpu.dot_dimension_numbers<[1], [0], [0], [1], [0, 0, 1, 1], [], []>} : vector<1x128xf32>, vector<128x128xf32>, vector<1x128xf32> -> vector<1x128xf32>
    %100 = arith.addf %95, %99 : vector<1x128xf32>
    %101 = vector.extract_strided_slice %94 {offsets = [1, 0], sizes = [1, 128], strides = [1, 1]} : vector<5x128xf32> to vector<1x128xf32>
    %c1_81 = arith.constant 1 : index
    %c0_82 = arith.constant 0 : index
    %c0_83 = arith.constant 0 : index
    %102 = vector.load %arg8[%c1_81, %c0_82, %c0_83] : memref<5x128x128xf32, #tpu.memory_space<vmem>>, vector<1x128x128xf32>
    %103 = vector.shape_cast %102 : vector<1x128x128xf32> to vector<128x128xf32>
    %cst_84 = arith.constant dense<0.000000e+00> : vector<1x128xf32>
    %104 = tpu.matmul %101, %103, %cst_84 {dimension_numbers = #tpu.dot_dimension_numbers<[1], [0], [0], [1], [0, 0, 1, 1], [], []>} : vector<1x128xf32>, vector<128x128xf32>, vector<1x128xf32> -> vector<1x128xf32>
    %105 = arith.addf %100, %104 : vector<1x128xf32>
    %106 = vector.extract_strided_slice %94 {offsets = [2, 0], sizes = [1, 128], strides = [1, 1]} : vector<5x128xf32> to vector<1x128xf32>
    %c2_85 = arith.constant 2 : index
    %c0_86 = arith.constant 0 : index
    %c0_87 = arith.constant 0 : index
    %107 = vector.load %arg8[%c2_85, %c0_86, %c0_87] : memref<5x128x128xf32, #tpu.memory_space<vmem>>, vector<1x128x128xf32>
    %108 = vector.shape_cast %107 : vector<1x128x128xf32> to vector<128x128xf32>
    %cst_88 = arith.constant dense<0.000000e+00> : vector<1x128xf32>
    %109 = tpu.matmul %106, %108, %cst_88 {dimension_numbers = #tpu.dot_dimension_numbers<[1], [0], [0], [1], [0, 0, 1, 1], [], []>} : vector<1x128xf32>, vector<128x128xf32>, vector<1x128xf32> -> vector<1x128xf32>
    %110 = arith.addf %105, %109 : vector<1x128xf32>
    %111 = vector.extract_strided_slice %94 {offsets = [3, 0], sizes = [1, 128], strides = [1, 1]} : vector<5x128xf32> to vector<1x128xf32>
    %c3_89 = arith.constant 3 : index
    %c0_90 = arith.constant 0 : index
    %c0_91 = arith.constant 0 : index
    %112 = vector.load %arg8[%c3_89, %c0_90, %c0_91] : memref<5x128x128xf32, #tpu.memory_space<vmem>>, vector<1x128x128xf32>
    %113 = vector.shape_cast %112 : vector<1x128x128xf32> to vector<128x128xf32>
    %cst_92 = arith.constant dense<0.000000e+00> : vector<1x128xf32>
    %114 = tpu.matmul %111, %113, %cst_92 {dimension_numbers = #tpu.dot_dimension_numbers<[1], [0], [0], [1], [0, 0, 1, 1], [], []>} : vector<1x128xf32>, vector<128x128xf32>, vector<1x128xf32> -> vector<1x128xf32>
    %115 = arith.addf %110, %114 : vector<1x128xf32>
    %116 = vector.extract_strided_slice %94 {offsets = [4, 0], sizes = [1, 128], strides = [1, 1]} : vector<5x128xf32> to vector<1x128xf32>
    %c4_93 = arith.constant 4 : index
    %c0_94 = arith.constant 0 : index
    %c0_95 = arith.constant 0 : index
    %117 = vector.load %arg8[%c4_93, %c0_94, %c0_95] : memref<5x128x128xf32, #tpu.memory_space<vmem>>, vector<1x128x128xf32>
    %118 = vector.shape_cast %117 : vector<1x128x128xf32> to vector<128x128xf32>
    %cst_96 = arith.constant dense<0.000000e+00> : vector<1x128xf32>
    %119 = tpu.matmul %116, %118, %cst_96 {dimension_numbers = #tpu.dot_dimension_numbers<[1], [0], [0], [1], [0, 0, 1, 1], [], []>} : vector<1x128xf32>, vector<128x128xf32>, vector<1x128xf32> -> vector<1x128xf32>
    %120 = arith.addf %115, %119 : vector<1x128xf32>
    %cst_97 = arith.constant 0.000000e+00 : f32
    %121 = vector.broadcast %cst_97 : f32 to vector<1x128xf32>
    %122 = arith.maximumf %120, %121 : vector<1x128xf32>
    %c0_98 = arith.constant 0 : index
    %c0_99 = arith.constant 0 : index
    %123 = vector.load %arg10[%c0_98, %c0_99] : memref<128x128xf32, #tpu.memory_space<vmem>>, vector<128x128xf32>
    %cst_100 = arith.constant dense<0.000000e+00> : vector<1x128xf32>
    %124 = tpu.matmul %122, %123, %cst_100 {dimension_numbers = #tpu.dot_dimension_numbers<[1], [0], [0], [1], [0, 0, 1, 1], [], []>} : vector<1x128xf32>, vector<128x128xf32>, vector<1x128xf32> -> vector<1x128xf32>
    %c0_101 = arith.constant 0 : index
    %c0_102 = arith.constant 0 : index
    %125 = vector.load %arg11[%c0_101, %c0_102] : memref<1x128xf32, #tpu.memory_space<vmem>>, vector<1x128xf32>
    %126 = arith.addf %124, %125 : vector<1x128xf32>
    %cst_103 = arith.constant 0.000000e+00 : f32
    %127 = vector.broadcast %cst_103 : f32 to vector<1x128xf32>
    %128 = arith.maximumf %126, %127 : vector<1x128xf32>
    %c0_104 = arith.constant 0 : index
    %c0_105 = arith.constant 0 : index
    %129 = vector.load %arg12[%c0_104, %c0_105] : memref<128x128xf32, #tpu.memory_space<vmem>>, vector<128x128xf32>
    %cst_106 = arith.constant dense<0.000000e+00> : vector<1x128xf32>
    %130 = tpu.matmul %128, %129, %cst_106 {dimension_numbers = #tpu.dot_dimension_numbers<[1], [0], [0], [1], [0, 0, 1, 1], [], []>} : vector<1x128xf32>, vector<128x128xf32>, vector<1x128xf32> -> vector<1x128xf32>
    %c0_107 = arith.constant 0 : index
    %c0_108 = arith.constant 0 : index
    %131 = vector.load %arg13[%c0_107, %c0_108] : memref<1x128xf32, #tpu.memory_space<vmem>>, vector<1x128xf32>
    %132 = arith.addf %130, %131 : vector<1x128xf32>
    %133 = tpu.iota {dimensions = array<i32: 1>} : vector<1x128xi32>
    %c10_i32 = arith.constant 10 : i32
    %134 = vector.broadcast %c10_i32 : i32 to vector<1x128xi32>
    %135 = arith.cmpi slt, %133, %134 : vector<1x128xi32>
    %cst_109 = arith.constant -1.000000e+30 : f32
    %136 = vector.broadcast %cst_109 : f32 to vector<1x128xf32>
    %137 = arith.select %135, %132, %136 : vector<1x128xi1>, vector<1x128xf32>
    %cst_110 = arith.constant dense<0xFF800000> : vector<1xf32>
    %138 = vector.multi_reduction <maximumf>, %137, %cst_110 [1] : vector<1x128xf32> to vector<1xf32>
    %139 = vector.shape_cast %138 : vector<1xf32> to vector<1x1xf32>
    %140 = vector.broadcast %139 : vector<1x1xf32> to vector<1x128xf32>
    %141 = arith.subf %137, %140 : vector<1x128xf32>
    %142 = math.exp %141 : vector<1x128xf32>
    %cst_111 = arith.constant 0.000000e+00 : f32
    %143 = vector.broadcast %cst_111 : f32 to vector<1x128xf32>
    %144 = arith.select %135, %142, %143 : vector<1x128xi1>, vector<1x128xf32>
    %cst_112 = arith.constant dense<0.000000e+00> : vector<1xf32>
    %145 = vector.multi_reduction <add>, %144, %cst_112 [1] : vector<1x128xf32> to vector<1xf32>
    %146 = vector.shape_cast %145 : vector<1xf32> to vector<1x1xf32>
    %147 = math.log %146 : vector<1x1xf32>
    %148 = vector.broadcast %147 : vector<1x1xf32> to vector<1x128xf32>
    %149 = arith.subf %141, %148 : vector<1x128xf32>
    %c0_113 = arith.constant 0 : index
    %c0_114 = arith.constant 0 : index
    %c0_115 = arith.constant 0 : index
    %150 = vector.load %arg14[%c0_113, %c0_114, %c0_115] : memref<1x1x128xf32, #tpu.memory_space<vmem>>, vector<1x1x128xf32>
    %151 = vector.shape_cast %150 : vector<1x1x128xf32> to vector<1x128xf32>
    %152 = vector.shape_cast %149 : vector<1x128xf32> to vector<1x1x128xf32>
    tpu.vector_store %arg14[%c0_113, %c0_114, %c0_115], %152 {strides = array<i32>} : memref<1x1x128xf32, #tpu.memory_space<vmem>>, vector<1x1x128xf32>,
    return
  }
  func.func @transform_0(%arg0: i32) -> (i32, i32, i32) {
    %c0_i32 = arith.constant 0 : i32
    %c0_i32_0 = arith.constant 0 : i32
    %c0_i32_1 = arith.constant 0 : i32
    return %arg0, %c0_i32, %c0_i32_0 : i32, i32, i32
  }
  func.func @transform_1(%arg0: i32) -> (i32, i32, i32) {
    %c0_i32 = arith.constant 0 : i32
    %c0_i32_0 = arith.constant 0 : i32
    %c0_i32_1 = arith.constant 0 : i32
    %c0_i32_2 = arith.constant 0 : i32
    return %c0_i32, %c0_i32_0, %c0_i32_1 : i32, i32, i32
  }
  func.func @transform_2(%arg0: i32) -> (i32, i32) {
    %c0_i32 = arith.constant 0 : i32
    %c0_i32_0 = arith.constant 0 : i32
    %c0_i32_1 = arith.constant 0 : i32
    return %c0_i32, %c0_i32_0 : i32, i32
  }
  func.func @transform_3(%arg0: i32) -> (i32, i32, i32) {
    %c0_i32 = arith.constant 0 : i32
    %c0_i32_0 = arith.constant 0 : i32
    %c0_i32_1 = arith.constant 0 : i32
    %c0_i32_2 = arith.constant 0 : i32
    return %c0_i32, %c0_i32_0, %c0_i32_1 : i32, i32, i32
  }
  func.func @transform_4(%arg0: i32) -> (i32, i32, i32) {
    %c0_i32 = arith.constant 0 : i32
    %c0_i32_0 = arith.constant 0 : i32
    %c0_i32_1 = arith.constant 0 : i32
    %c0_i32_2 = arith.constant 0 : i32
    return %c0_i32, %c0_i32_0, %c0_i32_1 : i32, i32, i32
  }
  func.func @transform_5(%arg0: i32) -> (i32, i32) {
    %c0_i32 = arith.constant 0 : i32
    %c0_i32_0 = arith.constant 0 : i32
    %c0_i32_1 = arith.constant 0 : i32
    return %c0_i32, %c0_i32_0 : i32, i32
  }
  func.func @transform_6(%arg0: i32) -> (i32, i32, i32) {
    %c0_i32 = arith.constant 0 : i32
    %c0_i32_0 = arith.constant 0 : i32
    %c0_i32_1 = arith.constant 0 : i32
    %c0_i32_2 = arith.constant 0 : i32
    return %c0_i32, %c0_i32_0, %c0_i32_1 : i32, i32, i32
  }
  func.func @transform_7(%arg0: i32) -> (i32, i32, i32) {
    %c0_i32 = arith.constant 0 : i32
    %c0_i32_0 = arith.constant 0 : i32
    %c0_i32_1 = arith.constant 0 : i32
    %c0_i32_2 = arith.constant 0 : i32
    return %c0_i32, %c0_i32_0, %c0_i32_1 : i32, i32, i32
  }
  func.func @transform_8(%arg0: i32) -> (i32, i32) {
    %c0_i32 = arith.constant 0 : i32
    %c0_i32_0 = arith.constant 0 : i32
    %c0_i32_1 = arith.constant 0 : i32
    return %c0_i32, %c0_i32_0 : i32, i32
  }
  func.func @transform_9(%arg0: i32) -> (i32, i32) {
    %c0_i32 = arith.constant 0 : i32
    %c0_i32_0 = arith.constant 0 : i32
    %c0_i32_1 = arith.constant 0 : i32
    return %c0_i32, %c0_i32_0 : i32, i32
  }
  func.func @transform_10(%arg0: i32) -> (i32, i32) {
    %c0_i32 = arith.constant 0 : i32
    %c0_i32_0 = arith.constant 0 : i32
    %c0_i32_1 = arith.constant 0 : i32
    return %c0_i32, %c0_i32_0 : i32, i32
  }
  func.func @transform_11(%arg0: i32) -> (i32, i32) {
    %c0_i32 = arith.constant 0 : i32
    %c0_i32_0 = arith.constant 0 : i32
    %c0_i32_1 = arith.constant 0 : i32
    return %c0_i32, %c0_i32_0 : i32, i32
  }
  func.func @transform_12(%arg0: i32) -> (i32, i32) {
    %c0_i32 = arith.constant 0 : i32
    %c0_i32_0 = arith.constant 0 : i32
    %c0_i32_1 = arith.constant 0 : i32
    return %c0_i32, %c0_i32_0 : i32, i32
  }
  func.func @transform_13(%arg0: i32) -> (i32, i32, i32) {
    %c0_i32 = arith.constant 0 : i32
    %c0_i32_0 = arith.constant 0 : i32
    %c0_i32_1 = arith.constant 0 : i32
    return %arg0, %c0_i32, %c0_i32_0 : i32, i32, i32
  }
}

</mosaic_0001>

<llo_original>
// kernel: cifar_cnn_forward.1
$region0: #{cifar_cnn_forward.1}
  #allocation0 [shape = 'u32[]', space=smem, size = 0x4, offset = 0x4, fixed_abs, tag = 'smem constant byte address 0x4 - core index']
  #allocation1 [shape = 'u32[144,128]{1,0:T(1,128)}', space=vmem, size = 0x12000, scoped, tag = 'internal scratch']
  %s0 = inlined_call_operand.vmem [shape: f32[2,32,96], index: 0, kind: input, shape index: {}]
  %s1 = inlined_call_operand.hbm [shape: f32[5,96,256], index: 1, kind: input, shape index: {}]
  %s2 = inlined_call_operand.vmem [shape: f32[1,128], index: 2, kind: input, shape index: {}]
  %s3 = inlined_call_operand.vmem [shape: f32[2,14,28], index: 3, kind: input, shape index: {}]
  %s4 = inlined_call_operand.hbm [shape: f32[5,128,256], index: 4, kind: input, shape index: {}]
  %s5 = inlined_call_operand.vmem [shape: f32[1,128], index: 5, kind: input, shape index: {}]
  %s6 = inlined_call_operand.vmem [shape: f32[2,5,10], index: 6, kind: input, shape index: {}]
  %s7 = inlined_call_operand.vmem [shape: f32[5,128,128], index: 7, kind: input, shape index: {}]
  %s8 = inlined_call_operand.vmem [shape: f32[1,128], index: 8, kind: input, shape index: {}]
  %s9 = inlined_call_operand.hbm [shape: f32[128,128], index: 9, kind: input, shape index: {}]
  %s10 = inlined_call_operand.vmem [shape: f32[1,128], index: 10, kind: input, shape index: {}]
  %s11 = inlined_call_operand.hbm [shape: f32[128,128], index: 11, kind: input, shape index: {}]
  %s12 = inlined_call_operand.vmem [shape: f32[1,128], index: 12, kind: input, shape index: {}]
  %s13 = inlined_call_operand.hbm [shape: f32[2,1,128], index: 13, kind: output, shape index: {}]
  %s14 = sld [smem:[#allocation0]]
  $region101: #{cifar_cnn_forward.1} parent=0
    _
  %s16 = ssub.s32 1, %s14
  %s17 = scalar_select 0, %s16, %s14
  $region1: #{cifar_cnn_forward.1} parent=0
    #allocation2 [shape = 'u8[491520]{0}', space=vmem, size = 0x78000, scoped, tag = 'input window, operand 1, single buffered']
    #allocation3 [shape = 's32[2]{0}', space=sflag, size = 0x8, scoped, tag = 'scoped memory for cifar_cnn_forward.1']
    #allocation4 [shape = 's32[2]{0}', space=sflag, size = 0x8, scoped, tag = 'scoped memory for cifar_cnn_forward.1']
    #allocation5 [shape = 'u8[655360]{0}', space=vmem, size = 0xa0000, scoped, tag = 'input window, operand 4, single buffered']
    #allocation6 [shape = 's32[1]{0}', space=sflag, size = 0x4, scoped, tag = 'scoped memory for cifar_cnn_forward.1']
    #allocation7 [shape = 'u8[65536]{0}', space=vmem, size = 0x10000, scoped, tag = 'input window, operand 9, single buffered']
    #allocation8 [shape = 'u8[65536]{0}', space=vmem, size = 0x10000, scoped, tag = 'input window, operand 11, single buffered']
    #allocation9 [shape = 's32[1]{0}', space=sflag, size = 0x4, scoped, tag = 'scoped memory for cifar_cnn_forward.1']
    #allocation10 [shape = 'u8[1024]{0}', space=vmem, size = 0x400, scoped, tag = 'output window, operand 0']
    %18 = vsyncpa [#allocation3], 0
    %19 = vsyncpa [#allocation6], 0
    %20 = vsyncpa [#allocation9], 0
    %21 = vsyncpa [#allocation4], 0
    %s22 = scalar_lea.sflag [#allocation4], 1
    %23 = vsyncpa %s22, 0
    loop: start=0, step=1, limit=4
    $region2: #{cifar_cnn_forward.1} parent=1 // loop_pre_header
      _
    $region3: #{cifar_cnn_forward.1} parent=1 // loop_header
      %s25 = sphi 0, %s29
      %p26 = scmp.ge.s32.totalorder %s25, 4
      %s35 = sphi 0, %s37
      %s38 = sphi 0, %s35
      %s39 = sphi 0, %s38
      %s55 = sphi 0, %s39
      %s59 = sphi 0, %s59
      %s61 = sphi 0, %s59
      %s62 = sphi 0, %s61
      %s76 = sphi 0, %s62
      %s80 = sphi 0, %s80
      %s82 = sphi 0, %s80
      %s83 = sphi 0, %s82
      %s97 = sphi 0, %s83
      %s101 = sphi 0, %s101
      %s103 = sphi 0, %s101
      %s104 = sphi 0, %s103
      %s118 = sphi 0, %s104
      %s122 = sphi 0, %s122
      %s124 = sphi 0, %s122
      %s125 = sphi 0, %s124
      %s139 = sphi 0, %s125
      %s143 = sphi 0, %s143
      %s145 = sphi 0, %s143
      %s146 = sphi 0, %s145
      %s160 = sphi 0, %s146
      %s164 = sphi 0, %s164
      %s166 = sphi 0, %s164
      %s167 = sphi 0, %s166
      %s181 = sphi 0, %s167
      %s185 = sphi 0, %s185
      %s187 = sphi 0, %s185
      %s188 = sphi 0, %s187
      %s202 = sphi 0, %s188
      %s206 = sphi 0, %s206
      %s208 = sphi 0, %s206
      %s209 = sphi 0, %s208
      %s223 = sphi 0, %s209
      %s227 = sphi 0, %s227
      %s229 = sphi 0, %s227
      %s230 = sphi 0, %s229
      %s244 = sphi 0, %s230
      %s248 = sphi 0, %s248
      %s250 = sphi 0, %s248
      %s251 = sphi 0, %s250
      %s265 = sphi 0, %s251
      %s269 = sphi 0, %s269
      %s271 = sphi 0, %s269
      %s272 = sphi 0, %s271
      %s286 = sphi 0, %s272
      %s290 = sphi 0, %s290
      %s292 = sphi 0, %s290
      %s293 = sphi 0, %s292
      %s307 = sphi 0, %s293
      %s313 = sphi 0, %s315
      %s316 = sphi 0, %s313
      %s317 = sphi 0, %s316
      %s333 = sphi 0, %s317
    $region4: #{cifar_cnn_forward.1} parent=1 // loop_header_branch
      %28 = sbr.rel (%p26) target = $region8
    $region5: #{cifar_cnn_forward.1} parent=1 // loop_body
      %s30 = ssub.s32 %s25, 1
      %s31 = ssub.s32 %s25, 2
      %s32 = sadd.s32 %s25, 1
      %s33 = ssub.s32 %s25, %s32
      %p34 = scmp.eq.s32.totalorder %s33, 0
      %s36 = sadd.s32 %s35, 1
      %s37 = scalar_select %p34, %s35, %s36
      %p40 = pneg %p34
      %p41 = scmp.eq.s32.totalorder %s25, 1
      %p42 = por %p40, %p41
      %p43 = scmp.ne.s32.totalorder %s35, %s38
      %p44 = scmp.eq.s32.totalorder %s25, 0
      %p45 = por %p43, %p44
      %p46 = scmp.ne.s32.totalorder %s35, %s38
      %p47 = scmp.eq.s32.totalorder %s30, 1
      %p48 = por %p46, %p47
      %p49 = scmp.ne.s32.totalorder %s38, %s39
      %p50 = scmp.eq.s32.totalorder %s30, 0
      %p51 = por %p49, %p50
      %p52 = scmp.ne.s32.totalorder %s38, %s39
      %p53 = scmp.eq.s32.totalorder %s31, 1
      %p54 = por %p52, %p53
      %p56 = scmp.ne.s32.totalorder %s39, %s55
      %p57 = scmp.eq.s32.totalorder %s31, 0
      %p58 = por %p56, %p57
      %s60 = sadd.s32 %s59, 1
      %p63 = scmp.eq.s32.totalorder %s25, 1
      %p64 = scmp.ne.s32.totalorder %s59, %s61
      %p65 = scmp.eq.s32.totalorder %s25, 0
      %p66 = por %p64, %p65
      %p67 = scmp.ne.s32.totalorder %s59, %s61
      %p68 = scmp.eq.s32.totalorder %s30, 1
      %p69 = por %p67, %p68
      %p70 = scmp.ne.s32.totalorder %s61, %s62
      %p71 = scmp.eq.s32.totalorder %s30, 0
      %p72 = por %p70, %p71
      %p73 = scmp.ne.s32.totalorder %s61, %s62
      %p74 = scmp.eq.s32.totalorder %s31, 1
      %p75 = por %p73, %p74
      %p77 = scmp.ne.s32.totalorder %s62, %s76
      %p78 = scmp.eq.s32.totalorder %s31, 0
      %p79 = por %p77, %p78
      %s81 = sadd.s32 %s80, 1
      %p84 = scmp.eq.s32.totalorder %s25, 1
      %p85 = scmp.ne.s32.totalorder %s80, %s82
      %p86 = scmp.eq.s32.totalorder %s25, 0
      %p87 = por %p85, %p86
      %p88 = scmp.ne.s32.totalorder %s80, %s82
      %p89 = scmp.eq.s32.totalorder %s30, 1
      %p90 = por %p88, %p89
      %p91 = scmp.ne.s32.totalorder %s82, %s83
      %p92 = scmp.eq.s32.totalorder %s30, 0
      %p93 = por %p91, %p92
      %p94 = scmp.ne.s32.totalorder %s82, %s83
      %p95 = scmp.eq.s32.totalorder %s31, 1
      %p96 = por %p94, %p95
      %p98 = scmp.ne.s32.totalorder %s83, %s97
      %p99 = scmp.eq.s32.totalorder %s31, 0
      %p100 = por %p98, %p99
      %s102 = sadd.s32 %s101, 1
      %p105 = scmp.eq.s32.totalorder %s25, 1
      %p106 = scmp.ne.s32.totalorder %s101, %s103
      %p107 = scmp.eq.s32.totalorder %s25, 0
      %p108 = por %p106, %p107
      %p109 = scmp.ne.s32.totalorder %s101, %s103
      %p110 = scmp.eq.s32.totalorder %s30, 1
      %p111 = por %p109, %p110
      %p112 = scmp.ne.s32.totalorder %s103, %s104
      %p113 = scmp.eq.s32.totalorder %s30, 0
      %p114 = por %p112, %p113
      %p115 = scmp.ne.s32.totalorder %s103, %s104
      %p116 = scmp.eq.s32.totalorder %s31, 1
      %p117 = por %p115, %p116
      %p119 = scmp.ne.s32.totalorder %s104, %s118
      %p120 = scmp.eq.s32.totalorder %s31, 0
      %p121 = por %p119, %p120
      %s123 = sadd.s32 %s122, 1
      %p126 = scmp.eq.s32.totalorder %s25, 1
      %p127 = scmp.ne.s32.totalorder %s122, %s124
      %p128 = scmp.eq.s32.totalorder %s25, 0
      %p129 = por %p127, %p128
      %p130 = scmp.ne.s32.totalorder %s122, %s124
      %p131 = scmp.eq.s32.totalorder %s30, 1
      %p132 = por %p130, %p131
      %p133 = scmp.ne.s32.totalorder %s124, %s125
      %p134 = scmp.eq.s32.totalorder %s30, 0
      %p135 = por %p133, %p134
      %p136 = scmp.ne.s32.totalorder %s124, %s125
      %p137 = scmp.eq.s32.totalorder %s31, 1
      %p138 = por %p136, %p137
      %p140 = scmp.ne.s32.totalorder %s125, %s139
      %p141 = scmp.eq.s32.totalorder %s31, 0
      %p142 = por %p140, %p141
      %s144 = sadd.s32 %s143, 1
      %p147 = scmp.eq.s32.totalorder %s25, 1
      %p148 = scmp.ne.s32.totalorder %s143, %s145
      %p149 = scmp.eq.s32.totalorder %s25, 0
      %p150 = por %p148, %p149
      %p151 = scmp.ne.s32.totalorder %s143, %s145
      %p152 = scmp.eq.s32.totalorder %s30, 1
      %p153 = por %p151, %p152
      %p154 = scmp.ne.s32.totalorder %s145, %s146
      %p155 = scmp.eq.s32.totalorder %s30, 0
      %p156 = por %p154, %p155
      %p157 = scmp.ne.s32.totalorder %s145, %s146
      %p158 = scmp.eq.s32.totalorder %s31, 1
      %p159 = por %p157, %p158
      %p161 = scmp.ne.s32.totalorder %s146, %s160
      %p162 = scmp.eq.s32.totalorder %s31, 0
      %p163 = por %p161, %p162
      %s165 = sadd.s32 %s164, 1
      %p168 = scmp.eq.s32.totalorder %s25, 1
      %p169 = scmp.ne.s32.totalorder %s164, %s166
      %p170 = scmp.eq.s32.totalorder %s25, 0
      %p171 = por %p169, %p170
      %p172 = scmp.ne.s32.totalorder %s164, %s166
      %p173 = scmp.eq.s32.totalorder %s30, 1
      %p174 = por %p172, %p173
      %p175 = scmp.ne.s32.totalorder %s166, %s167
      %p176 = scmp.eq.s32.totalorder %s30, 0
      %p177 = por %p175, %p176
      %p178 = scmp.ne.s32.totalorder %s166, %s167
      %p179 = scmp.eq.s32.totalorder %s31, 1
      %p180 = por %p178, %p179
      %p182 = scmp.ne.s32.totalorder %s167, %s181
      %p183 = scmp.eq.s32.totalorder %s31, 0
      %p184 = por %p182, %p183
      %s186 = sadd.s32 %s185, 1
      %p189 = scmp.eq.s32.totalorder %s25, 1
      %p190 = scmp.ne.s32.totalorder %s185, %s187
      %p191 = scmp.eq.s32.totalorder %s25, 0
      %p192 = por %p190, %p191
      %p193 = scmp.ne.s32.totalorder %s185, %s187
      %p194 = scmp.eq.s32.totalorder %s30, 1
      %p195 = por %p193, %p194
      %p196 = scmp.ne.s32.totalorder %s187, %s188
      %p197 = scmp.eq.s32.totalorder %s30, 0
      %p198 = por %p196, %p197
      %p199 = scmp.ne.s32.totalorder %s187, %s188
      %p200 = scmp.eq.s32.totalorder %s31, 1
      %p201 = por %p199, %p200
      %p203 = scmp.ne.s32.totalorder %s188, %s202
      %p204 = scmp.eq.s32.totalorder %s31, 0
      %p205 = por %p203, %p204
      %s207 = sadd.s32 %s206, 1
      %p210 = scmp.eq.s32.totalorder %s25, 1
      %p211 = scmp.ne.s32.totalorder %s206, %s208
      %p212 = scmp.eq.s32.totalorder %s25, 0
      %p213 = por %p211, %p212
      %p214 = scmp.ne.s32.totalorder %s206, %s208
      %p215 = scmp.eq.s32.totalorder %s30, 1
      %p216 = por %p214, %p215
      %p217 = scmp.ne.s32.totalorder %s208, %s209
      %p218 = scmp.eq.s32.totalorder %s30, 0
      %p219 = por %p217, %p218
      %p220 = scmp.ne.s32.totalorder %s208, %s209
      %p221 = scmp.eq.s32.totalorder %s31, 1
      %p222 = por %p220, %p221
      %p224 = scmp.ne.s32.totalorder %s209, %s223
      %p225 = scmp.eq.s32.totalorder %s31, 0
      %p226 = por %p224, %p225
      %s228 = sadd.s32 %s227, 1
      %p231 = scmp.eq.s32.totalorder %s25, 1
      %p232 = scmp.ne.s32.totalorder %s227, %s229
      %p233 = scmp.eq.s32.totalorder %s25, 0
      %p234 = por %p232, %p233
      %p235 = scmp.ne.s32.totalorder %s227, %s229
      %p236 = scmp.eq.s32.totalorder %s30, 1
      %p237 = por %p235, %p236
      %p238 = scmp.ne.s32.totalorder %s229, %s230
      %p239 = scmp.eq.s32.totalorder %s30, 0
      %p240 = por %p238, %p239
      %p241 = scmp.ne.s32.totalorder %s229, %s230
      %p242 = scmp.eq.s32.totalorder %s31, 1
      %p243 = por %p241, %p242
      %p245 = scmp.ne.s32.totalorder %s230, %s244
      %p246 = scmp.eq.s32.totalorder %s31, 0
      %p247 = por %p245, %p246
      %s249 = sadd.s32 %s248, 1
      %p252 = scmp.eq.s32.totalorder %s25, 1
      %p253 = scmp.ne.s32.totalorder %s248, %s250
      %p254 = scmp.eq.s32.totalorder %s25, 0
      %p255 = por %p253, %p254
      %p256 = scmp.ne.s32.totalorder %s248, %s250
      %p257 = scmp.eq.s32.totalorder %s30, 1
      %p258 = por %p256, %p257
      %p259 = scmp.ne.s32.totalorder %s250, %s251
      %p260 = scmp.eq.s32.totalorder %s30, 0
      %p261 = por %p259, %p260
      %p262 = scmp.ne.s32.totalorder %s250, %s251
      %p263 = scmp.eq.s32.totalorder %s31, 1
      %p264 = por %p262, %p263
      %p266 = scmp.ne.s32.totalorder %s251, %s265
      %p267 = scmp.eq.s32.totalorder %s31, 0
      %p268 = por %p266, %p267
      %s270 = sadd.s32 %s269, 1
      %p273 = scmp.eq.s32.totalorder %s25, 1
      %p274 = scmp.ne.s32.totalorder %s269, %s271
      %p275 = scmp.eq.s32.totalorder %s25, 0
      %p276 = por %p274, %p275
      %p277 = scmp.ne.s32.totalorder %s269, %s271
      %p278 = scmp.eq.s32.totalorder %s30, 1
      %p279 = por %p277, %p278
      %p280 = scmp.ne.s32.totalorder %s271, %s272
      %p281 = scmp.eq.s32.totalorder %s30, 0
      %p282 = por %p280, %p281
      %p283 = scmp.ne.s32.totalorder %s271, %s272
      %p284 = scmp.eq.s32.totalorder %s31, 1
      %p285 = por %p283, %p284
      %p287 = scmp.ne.s32.totalorder %s272, %s286
      %p288 = scmp.eq.s32.totalorder %s31, 0
      %p289 = por %p287, %p288
      %s291 = sadd.s32 %s290, 1
      %p294 = scmp.eq.s32.totalorder %s25, 1
      %p295 = scmp.ne.s32.totalorder %s290, %s292
      %p296 = scmp.eq.s32.totalorder %s25, 0
      %p297 = por %p295, %p296
      %p298 = scmp.ne.s32.totalorder %s290, %s292
      %p299 = scmp.eq.s32.totalorder %s30, 1
      %p300 = por %p298, %p299
      %p301 = scmp.ne.s32.totalorder %s292, %s293
      %p302 = scmp.eq.s32.totalorder %s30, 0
      %p303 = por %p301, %p302
      %p304 = scmp.ne.s32.totalorder %s292, %s293
      %p305 = scmp.eq.s32.totalorder %s31, 1
      %p306 = por %p304, %p305
      %p308 = scmp.ne.s32.totalorder %s293, %s307
      %p309 = scmp.eq.s32.totalorder %s31, 0
      %p310 = por %p308, %p309
      %s311 = ssub.s32 %s25, %s32
      %p312 = scmp.eq.s32.totalorder %s311, 0
      %s314 = sadd.s32 %s313, 1
      %s315 = scalar_select %p312, %s313, %s314
      %p318 = pneg %p312
      %p319 = scmp.eq.s32.totalorder %s25, 1
      %p320 = por %p318, %p319
      %p321 = scmp.ne.s32.totalorder %s313, %s316
      %p322 = scmp.eq.s32.totalorder %s25, 0
      %p323 = por %p321, %p322
      %p324 = scmp.ne.s32.totalorder %s313, %s316
      %p325 = scmp.eq.s32.totalorder %s30, 1
      %p326 = por %p324, %p325
      %p327 = scmp.ne.s32.totalorder %s316, %s317
      %p328 = scmp.eq.s32.totalorder %s30, 0
      %p329 = por %p327, %p328
      %p330 = scmp.ne.s32.totalorder %s316, %s317
      %p331 = scmp.eq.s32.totalorder %s31, 1
      %p332 = por %p330, %p331
      %p334 = scmp.ne.s32.totalorder %s317, %s333
      %p335 = scmp.eq.s32.totalorder %s31, 0
      %p336 = por %p334, %p335
      %p337 = scmp.le.s32.totalorder 1, %s25
      %p338 = scmp.lt.s32.totalorder %s25, 3
      %p339 = pnand %p337, %p338
      %p340 = pneg %p339
      // Predicated region
      $region9: #{cifar_cnn_forward.1} parent=5 // pred_check
        _
      $region10: #{cifar_cnn_forward.1} parent=5 // pred_check_branch
        %342 = sbr.rel (%p339) target = $region12
      $region11: #{cifar_cnn_forward.1} parent=5 // pred_region
        %s343 = ssub.s32 %s25, 1
        // Predicated region
        $region13: #{cifar_cnn_forward.1} parent=11 // pred_check
          %p344 = pneg %p72
        $region14: #{cifar_cnn_forward.1} parent=11 // pred_check_branch
          %346 = sbr.rel (%p344) target = $region16
        $region15: #{cifar_cnn_forward.1} parent=11 // pred_region
          %s348 = ssub.s32 15360, 15360
          %349 = vsyncadd [#allocation3], %s348
          %s350 = sshll.u32 [#allocation2], 4
          %s351 = int_to_ptr.vmem [resolvable:$true] %s350
          %356 = dma.hbm_to_vmem [thread:$0]  %s1, 15360, %s351, [#allocation3], 256, 256, 16
        $region16: #{cifar_cnn_forward.1} parent=11 // pred_fallthru
          _
        // Predicated region
        $region17: #{cifar_cnn_forward.1} parent=11 // pred_check
          %p357 = pneg %p93
        $region18: #{cifar_cnn_forward.1} parent=11 // pred_check_branch
          %359 = sbr.rel (%p357) target = $region20
        $region19: #{cifar_cnn_forward.1} parent=11 // pred_region
          _
        $region20: #{cifar_cnn_forward.1} parent=11 // pred_fallthru
          _
        // Predicated region
        $region21: #{cifar_cnn_forward.1} parent=11 // pred_check
          %p360 = pneg %p114
        $region22: #{cifar_cnn_forward.1} parent=11 // pred_check_branch
          %362 = sbr.rel (%p360) target = $region24
        $region23: #{cifar_cnn_forward.1} parent=11 // pred_region
          _
        $region24: #{cifar_cnn_forward.1} parent=11 // pred_fallthru
          _
        // Predicated region
        $region25: #{cifar_cnn_forward.1} parent=11 // pred_check
          %p363 = pneg %p135
        $region26: #{cifar_cnn_forward.1} parent=11 // pred_check_branch
          %365 = sbr.rel (%p363) target = $region28
        $region27: #{cifar_cnn_forward.1} parent=11 // pred_region
          %s367 = ssub.s32 20480, 20480
          %368 = vsyncadd [#allocation6], %s367
          %s369 = sshll.u32 [#allocation5], 4
          %s370 = int_to_ptr.vmem [resolvable:$true] %s369
          %375 = dma.hbm_to_vmem [thread:$0]  %s4, 20480, %s370, [#allocation6], 256, 256, 16
        $region28: #{cifar_cnn_forward.1} parent=11 // pred_fallthru
          _
        // Predicated region
        $region29: #{cifar_cnn_forward.1} parent=11 // pred_check
          %p376 = pneg %p156
        $region30: #{cifar_cnn_forward.1} parent=11 // pred_check_branch
          %378 = sbr.rel (%p376) target = $region32
        $region31: #{cifar_cnn_forward.1} parent=11 // pred_region
          _
        $region32: #{cifar_cnn_forward.1} parent=11 // pred_fallthru
          _
        // Predicated region
        $region33: #{cifar_cnn_forward.1} parent=11 // pred_check
          %p379 = pneg %p177
        $region34: #{cifar_cnn_forward.1} parent=11 // pred_check_branch
          %381 = sbr.rel (%p379) target = $region36
        $region35: #{cifar_cnn_forward.1} parent=11 // pred_region
          _
        $region36: #{cifar_cnn_forward.1} parent=11 // pred_fallthru
          _
        // Predicated region
        $region37: #{cifar_cnn_forward.1} parent=11 // pred_check
          %p382 = pneg %p198
        $region38: #{cifar_cnn_forward.1} parent=11 // pred_check_branch
          %384 = sbr.rel (%p382) target = $region40
        $region39: #{cifar_cnn_forward.1} parent=11 // pred_region
          _
        $region40: #{cifar_cnn_forward.1} parent=11 // pred_fallthru
          _
        // Predicated region
        $region41: #{cifar_cnn_forward.1} parent=11 // pred_check
          %p385 = pneg %p219
        $region42: #{cifar_cnn_forward.1} parent=11 // pred_check_branch
          %387 = sbr.rel (%p385) target = $region44
        $region43: #{cifar_cnn_forward.1} parent=11 // pred_region
          _
        $region44: #{cifar_cnn_forward.1} parent=11 // pred_fallthru
          _
        // Predicated region
        $region45: #{cifar_cnn_forward.1} parent=11 // pred_check
          %p388 = pneg %p240
        $region46: #{cifar_cnn_forward.1} parent=11 // pred_check_branch
          %390 = sbr.rel (%p388) target = $region48
        $region47: #{cifar_cnn_forward.1} parent=11 // pred_region
          %s392 = ssub.s32 2048, 2048
          %393 = vsyncadd [#allocation6], %s392
          %s394 = sshll.u32 [#allocation7], 4
          %s395 = int_to_ptr.vmem [resolvable:$true] %s394
          %400 = dma.hbm_to_vmem [thread:$0]  %s9, 2048, %s395, [#allocation6], 128, 128, 8
        $region48: #{cifar_cnn_forward.1} parent=11 // pred_fallthru
          _
        // Predicated region
        $region49: #{cifar_cnn_forward.1} parent=11 // pred_check
          %p401 = pneg %p261
        $region50: #{cifar_cnn_forward.1} parent=11 // pred_check_branch
          %403 = sbr.rel (%p401) target = $region52
        $region51: #{cifar_cnn_forward.1} parent=11 // pred_region
          _
        $region52: #{cifar_cnn_forward.1} parent=11 // pred_fallthru
          _
        // Predicated region
        $region53: #{cifar_cnn_forward.1} parent=11 // pred_check
          %p404 = pneg %p282
        $region54: #{cifar_cnn_forward.1} parent=11 // pred_check_branch
          %406 = sbr.rel (%p404) target = $region56
        $region55: #{cifar_cnn_forward.1} parent=11 // pred_region
          %s408 = ssub.s32 2048, 2048
          %409 = vsyncadd [#allocation9], %s408
          %s410 = sshll.u32 [#allocation8], 4
          %s411 = int_to_ptr.vmem [resolvable:$true] %s410
          %416 = dma.hbm_to_vmem [thread:$0]  %s11, 2048, %s411, [#allocation9], 128, 128, 8
        $region56: #{cifar_cnn_forward.1} parent=11 // pred_fallthru
          _
        // Predicated region
        $region57: #{cifar_cnn_forward.1} parent=11 // pred_check
          %p417 = pneg %p303
        $region58: #{cifar_cnn_forward.1} parent=11 // pred_check_branch
          %419 = sbr.rel (%p417) target = $region60
        $region59: #{cifar_cnn_forward.1} parent=11 // pred_region
          _
        $region60: #{cifar_cnn_forward.1} parent=11 // pred_fallthru
          _
      $region12: #{cifar_cnn_forward.1} parent=5 // pred_fallthru
        _
      %p420 = scmp.lt.s32.totalorder %s25, 2
      // Predicated region
      $region61: #{cifar_cnn_forward.1} parent=5 // pred_check
        %p421 = pneg %p420
      $region62: #{cifar_cnn_forward.1} parent=5 // pred_check_branch
        %423 = sbr.rel (%p421) target = $region64
      $region63: #{cifar_cnn_forward.1} parent=5 // pred_region
        // Predicated region
        $region65: #{cifar_cnn_forward.1} parent=63 // pred_check
          %p424 = pneg %p45
        $region66: #{cifar_cnn_forward.1} parent=63 // pred_check_branch
          %426 = sbr.rel (%p424) target = $region68
        $region67: #{cifar_cnn_forward.1} parent=63 // pred_region
          %p427 = scmp.lt.s32.totalorder %s25, 1
          %s428 = scalar_select %p427, %s25, 1
          %s429 = smul.addr %s428, 4
          %s430 = smul.addr %s429, 8
          %s431 = scalar_lea.vmem %s0, %s430
        $region68: #{cifar_cnn_forward.1} parent=63 // pred_fallthru
          _
      $region64: #{cifar_cnn_forward.1} parent=5 // pred_fallthru
        _
      %p432 = scmp.le.s32.totalorder 1, %s25
      %p433 = scmp.lt.s32.totalorder %s25, 3
      %p434 = pnand %p432, %p433
      %p435 = pneg %p434
      // Predicated region
      $region69: #{cifar_cnn_forward.1} parent=5 // pred_check
        _
      $region70: #{cifar_cnn_forward.1} parent=5 // pred_check_branch
        %437 = sbr.rel (%p434) target = $region72
      $region71: #{cifar_cnn_forward.1} parent=5 // pred_region
        %s438 = ssub.s32 %s25, 1
        // Predicated region
        $region73: #{cifar_cnn_forward.1} parent=71 // pred_check
          %p439 = pneg %p72
        $region74: #{cifar_cnn_forward.1} parent=71 // pred_check_branch
          %441 = sbr.rel (%p439) target = $region76
        $region75: #{cifar_cnn_forward.1} parent=71 // pred_region
          %442 = dma.done [#allocation3], 15360
        $region76: #{cifar_cnn_forward.1} parent=71 // pred_fallthru
          _
        // Predicated region
        $region77: #{cifar_cnn_forward.1} parent=71 // pred_check
          %p443 = pneg %p135
        $region78: #{cifar_cnn_forward.1} parent=71 // pred_check_branch
          %445 = sbr.rel (%p443) target = $region80
        $region79: #{cifar_cnn_forward.1} parent=71 // pred_region
          %446 = dma.done [#allocation6], 20480
        $region80: #{cifar_cnn_forward.1} parent=71 // pred_fallthru
          _
        // Predicated region
        $region81: #{cifar_cnn_forward.1} parent=71 // pred_check
          %p447 = pneg %p240
        $region82: #{cifar_cnn_forward.1} parent=71 // pred_check_branch
          %449 = sbr.rel (%p447) target = $region84
        $region83: #{cifar_cnn_forward.1} parent=71 // pred_region
          %450 = dma.done [#allocation6], 2048
        $region84: #{cifar_cnn_forward.1} parent=71 // pred_fallthru
          _
        // Predicated region
        $region85: #{cifar_cnn_forward.1} parent=71 // pred_check
          %p451 = pneg %p282
        $region86: #{cifar_cnn_forward.1} parent=71 // pred_check_branch
          %453 = sbr.rel (%p451) target = $region88
        $region87: #{cifar_cnn_forward.1} parent=71 // pred_region
          %454 = dma.done [#allocation9], 2048
        $region88: #{cifar_cnn_forward.1} parent=71 // pred_fallthru
          _
        %p455 = scmp.lt.s32.totalorder %s30, 1
        %s456 = scalar_select %p455, %s30, 1
        %s457 = smul.addr %s456, 4
        %s458 = smul.addr %s457, 8
        %s459 = scalar_lea.vmem %s0, %s458
        %p460 = pneg %p51
        %p461 = pneg %p48
        %p462 = pneg %p72
        %p463 = pneg %p69
        %p464 = pneg %p93
        %p465 = pneg %p90
        %p466 = pneg %p114
        %p467 = pneg %p111
        %p468 = pneg %p135
        %p469 = pneg %p132
        %p470 = pneg %p156
        %p471 = pneg %p153
        %p472 = pneg %p177
        %p473 = pneg %p174
        %p474 = pneg %p198
        %p475 = pneg %p195
        %p476 = pneg %p219
        %p477 = pneg %p216
        %p478 = pneg %p240
        %p479 = pneg %p237
        %p480 = pneg %p261
        %p481 = pneg %p258
        %p482 = pneg %p282
        %p483 = pneg %p279
        %p484 = pneg %p303
        %p485 = pneg %p300
        %p486 = pneg %p329
        %p487 = pneg %p326
        %s488 = sand.u32 %s316, 1
        %s489 = scalar_lea.sflag [#allocation4], %s488
        %s490 = sand.u32 %s316, 1
        %s491 = scalar_lea.vmem [#allocation10], %s490
        %p492 = scmp.lt.s32.totalorder %s30, 1
        %s493 = scalar_select %p492, %s30, 1
        %s494 = smul.addr %s493, 4
        %s495 = smul.addr %s494, 8
        %s496 = scalar_lea.vmem %s0, %s495
        %v497 = vld [vmem:[%s496] sm:$0xff]
        %v498 = vld [vmem:[%s496 + $0x8] sm:$0xff]
        %v499 = vld [vmem:[%s496 + $0x10] sm:$0xff]
        %v500 = vld [vmem:[%s496 + $0x18] sm:$0xf]
        %v501 = vld [vmem:[#allocation2] sm:$0xff]
        %v502 = vld [vmem:[#allocation2 + $0x8] sm:$0xff]
        %v503 = vld [vmem:[#allocation2 + $0x10] sm:$0xff]
        %v504 = vld [vmem:[#allocation2 + $0x18] sm:$0xff]
        %v505 = vld [vmem:[#allocation2 + $0x20] sm:$0xff]
        %v506 = vld [vmem:[#allocation2 + $0x28] sm:$0xff]
        %v507 = vld [vmem:[#allocation2 + $0x30] sm:$0xff]
        %v508 = vld [vmem:[#allocation2 + $0x38] sm:$0xff]
        %v509 = vld [vmem:[#allocation2 + $0x40] sm:$0xff]
        %v510 = vld [vmem:[#allocation2 + $0x48] sm:$0xff]
        %v511 = vld [vmem:[#allocation2 + $0x50] sm:$0xff]
        %v512 = vld [vmem:[#allocation2 + $0x58] sm:$0xff]
        %v513 = vld [vmem:[#allocation2 + $0x60] sm:$0xff]
        %v514 = vld [vmem:[#allocation2 + $0x68] sm:$0xff]
        %v515 = vld [vmem:[#allocation2 + $0x70] sm:$0xff]
        %v516 = vld [vmem:[#allocation2 + $0x78] sm:$0xff]
        %v517 = vld [vmem:[#allocation2 + $0x80] sm:$0xff]
        %v518 = vld [vmem:[#allocation2 + $0x88] sm:$0xff]
        %v519 = vld [vmem:[#allocation2 + $0x90] sm:$0xff]
        %v520 = vld [vmem:[#allocation2 + $0x98] sm:$0xff]
        %v521 = vld [vmem:[#allocation2 + $0xa0] sm:$0xff]
        %v522 = vld [vmem:[#allocation2 + $0xa8] sm:$0xff]
        %v523 = vld [vmem:[#allocation2 + $0xb0] sm:$0xff]
        %v524 = vld [vmem:[#allocation2 + $0xb8] sm:$0xff]
        %v525 = vld [vmem:[%s496 + $0x1] sm:$0xff]
        %v526 = vld [vmem:[%s496 + $0x9] sm:$0xff]
        %v527 = vld [vmem:[%s496 + $0x11] sm:$0xff]
        %v528 = vld [vmem:[%s496 + $0x19] sm:$0xf]
        %s529 = scalar_lea.vmem [#allocation2], 192
        %v530 = vld [vmem:[%s529] sm:$0xff]
        %v531 = vld [vmem:[%s529 + $0x8] sm:$0xff]
        %v532 = vld [vmem:[%s529 + $0x10] sm:$0xff]
        %v533 = vld [vmem:[%s529 + $0x18] sm:$0xff]
        %v534 = vld [vmem:[%s529 + $0x20] sm:$0xff]
        %v535 = vld [vmem:[%s529 + $0x28] sm:$0xff]
        %v536 = vld [vmem:[%s529 + $0x30] sm:$0xff]
        %v537 = vld [vmem:[%s529 + $0x38] sm:$0xff]
        %v538 = vld [vmem:[%s529 + $0x40] sm:$0xff]
        %v539 = vld [vmem:[%s529 + $0x48] sm:$0xff]
        %v540 = vld [vmem:[%s529 + $0x50] sm:$0xff]
        %v541 = vld [vmem:[%s529 + $0x58] sm:$0xff]
        %v542 = vld [vmem:[%s529 + $0x60] sm:$0xff]
        %v543 = vld [vmem:[%s529 + $0x68] sm:$0xff]
        %v544 = vld [vmem:[%s529 + $0x70] sm:$0xff]
        %v545 = vld [vmem:[%s529 + $0x78] sm:$0xff]
        %v546 = vld [vmem:[%s529 + $0x80] sm:$0xff]
        %v547 = vld [vmem:[%s529 + $0x88] sm:$0xff]
        %v548 = vld [vmem:[%s529 + $0x90] sm:$0xff]
        %v549 = vld [vmem:[%s529 + $0x98] sm:$0xff]
        %v550 = vld [vmem:[%s529 + $0xa0] sm:$0xff]
        %v551 = vld [vmem:[%s529 + $0xa8] sm:$0xff]
        %v552 = vld [vmem:[%s529 + $0xb0] sm:$0xff]
        %v553 = vld [vmem:[%s529 + $0xb8] sm:$0xff]
        %vm554 = vcmask 785408
        %v556 = vsel %vm554, %v525, 0
        %v559 = vsel %vm554, %v526, 0
        %v562 = vsel %vm554, %v527, 0
        %v565 = vsel %vm554, %v528, 0
        %567 = vmatprep.subr.mxu0 0.0
        %568 = vmatpush1.msra.mxu0 0.0
        %569 = vmatprep.subr.mxu0 0.0
        %570 = vmatpush1.msra.mxu0 0.0
        %571 = vmatprep.subr.mxu0 0.0
        %572 = vmatpush1.msra.mxu0 0.0
        %573 = vmatprep.subr.mxu0 0.0
        %574 = vmatpush1.msra.mxu0 0.0
        %575 = vmatprep.subr.mxu0 %v553
        %576 = vmatpush1.msra.mxu0 %v552
        %577 = vmatprep.subr.mxu0 %v551
        %578 = vmatpush1.msra.mxu0 %v550
        %579 = vmatprep.subr.mxu0 %v549
        %580 = vmatpush1.msra.mxu0 %v548
        %581 = vmatprep.subr.mxu0 %v547
        %582 = vmatpush1.msra.mxu0 %v546
        %583 = vmatprep.subr.mxu0 %v545
        %584 = vmatpush1.msra.mxu0 %v544
        %585 = vmatprep.subr.mxu0 %v543
        %586 = vmatpush1.msra.mxu0 %v542
        %587 = vmatprep.subr.mxu0 %v541
        %588 = vmatpush1.msra.mxu0 %v540
        %589 = vmatprep.subr.mxu0 %v539
        %590 = vmatpush1.msra.mxu0 %v538
        %591 = vmatprep.subr.mxu0 %v537
        %592 = vmatpush1.msra.mxu0 %v536
        %593 = vmatprep.subr.mxu0 %v535
        %594 = vmatpush1.msra.mxu0 %v534
        %595 = vmatprep.subr.mxu0 %v533
        %596 = vmatpush1.msra.mxu0 %v532
        %597 = vmatprep.subr.mxu0 %v531
        %598 = vmatpush1.msra.mxu0 %v530
        %599 = vmatprep.subr.mxu0 0.0
        %600 = vmatpush2.msra.mxu0 0.0
        %601 = vmatprep.subr.mxu0 0.0
        %602 = vmatpush2.msra.mxu0 0.0
        %603 = vmatprep.subr.mxu0 0.0
        %604 = vmatpush2.msra.mxu0 0.0
        %605 = vmatprep.subr.mxu0 0.0
        %606 = vmatpush2.msra.mxu0 0.0
        %607 = vmatprep.subr.mxu0 0.0
        %608 = vmatpush2.msra.mxu0 0.0
        %609 = vmatprep.subr.mxu0 0.0
        %610 = vmatpush2.msra.mxu0 0.0
        %611 = vmatprep.subr.mxu0 0.0
        %612 = vmatpush2.msra.mxu0 0.0
        %613 = vmatprep.subr.mxu0 0.0
        %614 = vmatpush2.msra.mxu0 0.0
        %615 = vmatprep.subr.mxu0 0.0
        %616 = vmatpush2.msra.mxu0 0.0
        %617 = vmatprep.subr.mxu0 0.0
        %618 = vmatpush2.msra.mxu0 0.0
        %619 = vmatprep.subr.mxu0 0.0
        %620 = vmatpush2.msra.mxu0 0.0
        %621 = vmatprep.subr.mxu0 0.0
        %622 = vmatpush2.msra.mxu0 0.0
        %623 = vmatprep.subr.mxu0 0.0
        %624 = vmatpush2.msra.mxu0 0.0
        %625 = vmatprep.subr.mxu0 0.0
        %626 = vmatpush2.msra.mxu0 0.0
        %627 = vmatprep.subr.mxu0 0.0
        %628 = vmatpush2.msra.mxu0 0.0
        %629 = vmatprep.subr.mxu0 0.0
        %630 = vmatpush2.msra.mxu0 0.0
        %631 = vmatprep.mubr.f32.mxu0 0.0
        %632 = vmatmul.mubr.f32.gmra.mxu0 %v556
        %v633 = vpop.f32.mrf.mxu0
        %v634 = vadd.f32 0.0, %v633
        %v635 = vpop.f32.mrf.mxu0
        %v636 = vadd.f32 0.0, %v635
        %637 = vmatprep.mubr.f32.mxu0 0.0
        %638 = vmatmul.mubr.f32.gmra.mxu0 %v559
        %v639 = vpop.f32.mrf.mxu0
        %v640 = vadd.f32 0.0, %v639
        %v641 = vpop.f32.mrf.mxu0
        %v642 = vadd.f32 0.0, %v641
        %643 = vmatprep.mubr.f32.mxu0 0.0
        %644 = vmatmul.mubr.f32.gmra.mxu0 %v562
        %v645 = vpop.f32.mrf.mxu0
        %v646 = vadd.f32 0.0, %v645
        %v647 = vpop.f32.mrf.mxu0
        %v648 = vadd.f32 0.0, %v647
        %649 = vmatprep.mubr.f32.mxu0 0.0
        %650 = vmatmul.mubr.f32.gmra.mxu0 %v565
        %v651 = vpop.f32.mrf.mxu0
        %v652 = vadd.f32 0.0, %v651
        %v653 = vpop.f32.mrf.mxu0
        %v654 = vadd.f32 0.0, %v653
        %655 = vdwg.mxu0
        %v657 = vsel %vm554, %v497, 0
        %v660 = vsel %vm554, %v498, 0
        %v663 = vsel %vm554, %v499, 0
        %v666 = vsel %vm554, %v500, 0
        %668 = vmatprep.subr.mxu0 0.0
        %669 = vmatpush1.msra.mxu0 0.0
        %670 = vmatprep.subr.mxu0 0.0
        %671 = vmatpush1.msra.mxu0 0.0
        %672 = vmatprep.subr.mxu0 0.0
        %673 = vmatpush1.msra.mxu0 0.0
        %674 = vmatprep.subr.mxu0 0.0
        %675 = vmatpush1.msra.mxu0 0.0
        %676 = vmatprep.subr.mxu0 %v524
        %677 = vmatpush1.msra.mxu0 %v523
        %678 = vmatprep.subr.mxu0 %v522
        %679 = vmatpush1.msra.mxu0 %v521
        %680 = vmatprep.subr.mxu0 %v520
        %681 = vmatpush1.msra.mxu0 %v519
        %682 = vmatprep.subr.mxu0 %v518
        %683 = vmatpush1.msra.mxu0 %v517
        %684 = vmatprep.subr.mxu0 %v516
        %685 = vmatpush1.msra.mxu0 %v515
        %686 = vmatprep.subr.mxu0 %v514
        %687 = vmatpush1.msra.mxu0 %v513
        %688 = vmatprep.subr.mxu0 %v512
        %689 = vmatpush1.msra.mxu0 %v511
        %690 = vmatprep.subr.mxu0 %v510
        %691 = vmatpush1.msra.mxu0 %v509
        %692 = vmatprep.subr.mxu0 %v508
        %693 = vmatpush1.msra.mxu0 %v507
        %694 = vmatprep.subr.mxu0 %v506
        %695 = vmatpush1.msra.mxu0 %v505
        %696 = vmatprep.subr.mxu0 %v504
        %697 = vmatpush1.msra.mxu0 %v503
        %698 = vmatprep.subr.mxu0 %v502
        %699 = vmatpush1.msra.mxu0 %v501
        %700 = vmatprep.subr.mxu0 0.0
        %701 = vmatpush2.msra.mxu0 0.0
        %702 = vmatprep.subr.mxu0 0.0
        %703 = vmatpush2.msra.mxu0 0.0
        %704 = vmatprep.subr.mxu0 0.0
        %705 = vmatpush2.msra.mxu0 0.0
        %706 = vmatprep.subr.mxu0 0.0
        %707 = vmatpush2.msra.mxu0 0.0
        %708 = vmatprep.subr.mxu0 0.0
        %709 = vmatpush2.msra.mxu0 0.0
        %710 = vmatprep.subr.mxu0 0.0
        %711 = vmatpush2.msra.mxu0 0.0
        %712 = vmatprep.subr.mxu0 0.0
        %713 = vmatpush2.msra.mxu0 0.0
        %714 = vmatprep.subr.mxu0 0.0
        %715 = vmatpush2.msra.mxu0 0.0
        %716 = vmatprep.subr.mxu0 0.0
        %717 = vmatpush2.msra.mxu0 0.0
        %718 = vmatprep.subr.mxu0 0.0
        %719 = vmatpush2.msra.mxu0 0.0
        %720 = vmatprep.subr.mxu0 0.0
        %721 = vmatpush2.msra.mxu0 0.0
        %722 = vmatprep.subr.mxu0 0.0
        %723 = vmatpush2.msra.mxu0 0.0
        %724 = vmatprep.subr.mxu0 0.0
        %725 = vmatpush2.msra.mxu0 0.0
        %726 = vmatprep.subr.mxu0 0.0
        %727 = vmatpush2.msra.mxu0 0.0
        %728 = vmatprep.subr.mxu0 0.0
        %729 = vmatpush2.msra.mxu0 0.0
        %730 = vmatprep.subr.mxu0 0.0
        %731 = vmatpush2.msra.mxu0 0.0
        %732 = vmatprep.mubr.f32.mxu0 0.0
        %733 = vmatmul.mubr.f32.gmra.mxu0 %v657
        %v734 = vpop.f32.mrf.mxu0
        %v735 = vadd.f32 %v634, %v734
        %v736 = vpop.f32.mrf.mxu0
        %v737 = vadd.f32 %v636, %v736
        %738 = vmatprep.mubr.f32.mxu0 0.0
        %739 = vmatmul.mubr.f32.gmra.mxu0 %v660
        %v740 = vpop.f32.mrf.mxu0
        %v741 = vadd.f32 %v640, %v740
        %v742 = vpop.f32.mrf.mxu0
        %v743 = vadd.f32 %v642, %v742
        %744 = vmatprep.mubr.f32.mxu0 0.0
        %745 = vmatmul.mubr.f32.gmra.mxu0 %v663
        %v746 = vpop.f32.mrf.mxu0
        %v747 = vadd.f32 %v646, %v746
        %v748 = vpop.f32.mrf.mxu0
        %v749 = vadd.f32 %v648, %v748
        %750 = vmatprep.mubr.f32.mxu0 0.0
        %751 = vmatmul.mubr.f32.gmra.mxu0 %v666
        %v752 = vpop.f32.mrf.mxu0
        %v753 = vadd.f32 %v652, %v752
        %v754 = vpop.f32.mrf.mxu0
        %v755 = vadd.f32 %v654, %v754
        %756 = vdwg.mxu0
        %v757 = vld [vmem:[%s496 + $0x2] sm:$0xff]
        %v758 = vld [vmem:[%s496 + $0xa] sm:$0xff]
        %v759 = vld [vmem:[%s496 + $0x12] sm:$0xff]
        %v760 = vld [vmem:[%s496 + $0x1a] sm:$0xf]
        %s761 = scalar_lea.vmem [#allocation2], 384
        %v762 = vld [vmem:[%s761] sm:$0xff]
        %v763 = vld [vmem:[%s761 + $0x8] sm:$0xff]
        %v764 = vld [vmem:[%s761 + $0x10] sm:$0xff]
        %v765 = vld [vmem:[%s761 + $0x18] sm:$0xff]
        %v766 = vld [vmem:[%s761 + $0x20] sm:$0xff]
        %v767 = vld [vmem:[%s761 + $0x28] sm:$0xff]
        %v768 = vld [vmem:[%s761 + $0x30] sm:$0xff]
        %v769 = vld [vmem:[%s761 + $0x38] sm:$0xff]
        %v770 = vld [vmem:[%s761 + $0x40] sm:$0xff]
        %v771 = vld [vmem:[%s761 + $0x48] sm:$0xff]
        %v772 = vld [vmem:[%s761 + $0x50] sm:$0xff]
        %v773 = vld [vmem:[%s761 + $0x58] sm:$0xff]
        %v774 = vld [vmem:[%s761 + $0x60] sm:$0xff]
        %v775 = vld [vmem:[%s761 + $0x68] sm:$0xff]
        %v776 = vld [vmem:[%s761 + $0x70] sm:$0xff]
        %v777 = vld [vmem:[%s761 + $0x78] sm:$0xff]
        %v778 = vld [vmem:[%s761 + $0x80] sm:$0xff]
        %v779 = vld [vmem:[%s761 + $0x88] sm:$0xff]
        %v780 = vld [vmem:[%s761 + $0x90] sm:$0xff]
        %v781 = vld [vmem:[%s761 + $0x98] sm:$0xff]
        %v782 = vld [vmem:[%s761 + $0xa0] sm:$0xff]
        %v783 = vld [vmem:[%s761 + $0xa8] sm:$0xff]
        %v784 = vld [vmem:[%s761 + $0xb0] sm:$0xff]
        %v785 = vld [vmem:[%s761 + $0xb8] sm:$0xff]
        %v787 = vsel %vm554, %v757, 0
        %v790 = vsel %vm554, %v758, 0
        %v793 = vsel %vm554, %v759, 0
        %v796 = vsel %vm554, %v760, 0
        %798 = vmatprep.subr.mxu0 0.0
        %799 = vmatpush1.msra.mxu0 0.0
        %800 = vmatprep.subr.mxu0 0.0
        %801 = vmatpush1.msra.mxu0 0.0
        %802 = vmatprep.subr.mxu0 0.0
        %803 = vmatpush1.msra.mxu0 0.0
        %804 = vmatprep.subr.mxu0 0.0
        %805 = vmatpush1.msra.mxu0 0.0
        %806 = vmatprep.subr.mxu0 %v785
        %807 = vmatpush1.msra.mxu0 %v784
        %808 = vmatprep.subr.mxu0 %v783
        %809 = vmatpush1.msra.mxu0 %v782
        %810 = vmatprep.subr.mxu0 %v781
        %811 = vmatpush1.msra.mxu0 %v780
        %812 = vmatprep.subr.mxu0 %v779
        %813 = vmatpush1.msra.mxu0 %v778
        %814 = vmatprep.subr.mxu0 %v777
        %815 = vmatpush1.msra.mxu0 %v776
        %816 = vmatprep.subr.mxu0 %v775
        %817 = vmatpush1.msra.mxu0 %v774
        %818 = vmatprep.subr.mxu0 %v773
        %819 = vmatpush1.msra.mxu0 %v772
        %820 = vmatprep.subr.mxu0 %v771
        %821 = vmatpush1.msra.mxu0 %v770
        %822 = vmatprep.subr.mxu0 %v769
        %823 = vmatpush1.msra.mxu0 %v768
        %824 = vmatprep.subr.mxu0 %v767
        %825 = vmatpush1.msra.mxu0 %v766
        %826 = vmatprep.subr.mxu0 %v765
        %827 = vmatpush1.msra.mxu0 %v764
        %828 = vmatprep.subr.mxu0 %v763
        %829 = vmatpush1.msra.mxu0 %v762
        %830 = vmatprep.subr.mxu0 0.0
        %831 = vmatpush2.msra.mxu0 0.0
        %832 = vmatprep.subr.mxu0 0.0
        %833 = vmatpush2.msra.mxu0 0.0
        %834 = vmatprep.subr.mxu0 0.0
        %835 = vmatpush2.msra.mxu0 0.0
        %836 = vmatprep.subr.mxu0 0.0
        %837 = vmatpush2.msra.mxu0 0.0
        %838 = vmatprep.subr.mxu0 0.0
        %839 = vmatpush2.msra.mxu0 0.0
        %840 = vmatprep.subr.mxu0 0.0
        %841 = vmatpush2.msra.mxu0 0.0
        %842 = vmatprep.subr.mxu0 0.0
        %843 = vmatpush2.msra.mxu0 0.0
        %844 = vmatprep.subr.mxu0 0.0
        %845 = vmatpush2.msra.mxu0 0.0
        %846 = vmatprep.subr.mxu0 0.0
        %847 = vmatpush2.msra.mxu0 0.0
        %848 = vmatprep.subr.mxu0 0.0
        %849 = vmatpush2.msra.mxu0 0.0
        %850 = vmatprep.subr.mxu0 0.0
        %851 = vmatpush2.msra.mxu0 0.0
        %852 = vmatprep.subr.mxu0 0.0
        %853 = vmatpush2.msra.mxu0 0.0
        %854 = vmatprep.subr.mxu0 0.0
        %855 = vmatpush2.msra.mxu0 0.0
        %856 = vmatprep.subr.mxu0 0.0
        %857 = vmatpush2.msra.mxu0 0.0
        %858 = vmatprep.subr.mxu0 0.0
        %859 = vmatpush2.msra.mxu0 0.0
        %860 = vmatprep.subr.mxu0 0.0
        %861 = vmatpush2.msra.mxu0 0.0
        %862 = vmatprep.mubr.f32.mxu0 0.0
        %863 = vmatmul.mubr.f32.gmra.mxu0 %v787
        %v864 = vpop.f32.mrf.mxu0
        %v865 = vadd.f32 0.0, %v864
        %v866 = vpop.f32.mrf.mxu0
        %v867 = vadd.f32 0.0, %v866
        %868 = vmatprep.mubr.f32.mxu0 0.0
        %869 = vmatmul.mubr.f32.gmra.mxu0 %v790
        %v870 = vpop.f32.mrf.mxu0
        %v871 = vadd.f32 0.0, %v870
        %v872 = vpop.f32.mrf.mxu0
        %v873 = vadd.f32 0.0, %v872
        %874 = vmatprep.mubr.f32.mxu0 0.0
        %875 = vmatmul.mubr.f32.gmra.mxu0 %v793
        %v876 = vpop.f32.mrf.mxu0
        %v877 = vadd.f32 0.0, %v876
        %v878 = vpop.f32.mrf.mxu0
        %v879 = vadd.f32 0.0, %v878
        %880 = vmatprep.mubr.f32.mxu0 0.0
        %881 = vmatmul.mubr.f32.gmra.mxu0 %v796
        %v882 = vpop.f32.mrf.mxu0
        %v883 = vadd.f32 0.0, %v882
        %v884 = vpop.f32.mrf.mxu0
        %v885 = vadd.f32 0.0, %v884
        %886 = vdwg.mxu0
        %v887 = vadd.f32 %v735, %v865
        %v888 = vadd.f32 %v737, %v867
        %v889 = vadd.f32 %v741, %v871
        %v890 = vadd.f32 %v743, %v873
        %v891 = vadd.f32 %v747, %v877
        %v892 = vadd.f32 %v749, %v879
        %v893 = vadd.f32 %v753, %v883
        %v894 = vadd.f32 %v755, %v885
        %v895 = vld [vmem:[%s496 + $0x3] sm:$0xff]
        %v896 = vld [vmem:[%s496 + $0xb] sm:$0xff]
        %v897 = vld [vmem:[%s496 + $0x13] sm:$0xff]
        %v898 = vld [vmem:[%s496 + $0x1b] sm:$0xf]
        %s899 = scalar_lea.vmem [#allocation2], 576
        %v900 = vld [vmem:[%s899] sm:$0xff]
        %v901 = vld [vmem:[%s899 + $0x8] sm:$0xff]
        %v902 = vld [vmem:[%s899 + $0x10] sm:$0xff]
        %v903 = vld [vmem:[%s899 + $0x18] sm:$0xff]
        %v904 = vld [vmem:[%s899 + $0x20] sm:$0xff]
        %v905 = vld [vmem:[%s899 + $0x28] sm:$0xff]
        %v906 = vld [vmem:[%s899 + $0x30] sm:$0xff]
        %v907 = vld [vmem:[%s899 + $0x38] sm:$0xff]
        %v908 = vld [vmem:[%s899 + $0x40] sm:$0xff]
        %v909 = vld [vmem:[%s899 + $0x48] sm:$0xff]
        %v910 = vld [vmem:[%s899 + $0x50] sm:$0xff]
        %v911 = vld [vmem:[%s899 + $0x58] sm:$0xff]
        %v912 = vld [vmem:[%s899 + $0x60] sm:$0xff]
        %v913 = vld [vmem:[%s899 + $0x68] sm:$0xff]
        %v914 = vld [vmem:[%s899 + $0x70] sm:$0xff]
        %v915 = vld [vmem:[%s899 + $0x78] sm:$0xff]
        %v916 = vld [vmem:[%s899 + $0x80] sm:$0xff]
        %v917 = vld [vmem:[%s899 + $0x88] sm:$0xff]
        %v918 = vld [vmem:[%s899 + $0x90] sm:$0xff]
        %v919 = vld [vmem:[%s899 + $0x98] sm:$0xff]
        %v920 = vld [vmem:[%s899 + $0xa0] sm:$0xff]
        %v921 = vld [vmem:[%s899 + $0xa8] sm:$0xff]
        %v922 = vld [vmem:[%s899 + $0xb0] sm:$0xff]
        %v923 = vld [vmem:[%s899 + $0xb8] sm:$0xff]
        %v925 = vsel %vm554, %v895, 0
        %v928 = vsel %vm554, %v896, 0
        %v931 = vsel %vm554, %v897, 0
        %v934 = vsel %vm554, %v898, 0
        %936 = vmatprep.subr.mxu0 0.0
        %937 = vmatpush1.msra.mxu0 0.0
        %938 = vmatprep.subr.mxu0 0.0
        %939 = vmatpush1.msra.mxu0 0.0
        %940 = vmatprep.subr.mxu0 0.0
        %941 = vmatpush1.msra.mxu0 0.0
        %942 = vmatprep.subr.mxu0 0.0
        %943 = vmatpush1.msra.mxu0 0.0
        %944 = vmatprep.subr.mxu0 %v923
        %945 = vmatpush1.msra.mxu0 %v922
        %946 = vmatprep.subr.mxu0 %v921
        %947 = vmatpush1.msra.mxu0 %v920
        %948 = vmatprep.subr.mxu0 %v919
        %949 = vmatpush1.msra.mxu0 %v918
        %950 = vmatprep.subr.mxu0 %v917
        %951 = vmatpush1.msra.mxu0 %v916
        %952 = vmatprep.subr.mxu0 %v915
        %953 = vmatpush1.msra.mxu0 %v914
        %954 = vmatprep.subr.mxu0 %v913
        %955 = vmatpush1.msra.mxu0 %v912
        %956 = vmatprep.subr.mxu0 %v911
        %957 = vmatpush1.msra.mxu0 %v910
        %958 = vmatprep.subr.mxu0 %v909
        %959 = vmatpush1.msra.mxu0 %v908
        %960 = vmatprep.subr.mxu0 %v907
        %961 = vmatpush1.msra.mxu0 %v906
        %962 = vmatprep.subr.mxu0 %v905
        %963 = vmatpush1.msra.mxu0 %v904
        %964 = vmatprep.subr.mxu0 %v903
        %965 = vmatpush1.msra.mxu0 %v902
        %966 = vmatprep.subr.mxu0 %v901
        %967 = vmatpush1.msra.mxu0 %v900
        %968 = vmatprep.subr.mxu0 0.0
        %969 = vmatpush2.msra.mxu0 0.0
        %970 = vmatprep.subr.mxu0 0.0
        %971 = vmatpush2.msra.mxu0 0.0
        %972 = vmatprep.subr.mxu0 0.0
        %973 = vmatpush2.msra.mxu0 0.0
        %974 = vmatprep.subr.mxu0 0.0
        %975 = vmatpush2.msra.mxu0 0.0
        %976 = vmatprep.subr.mxu0 0.0
        %977 = vmatpush2.msra.mxu0 0.0
        %978 = vmatprep.subr.mxu0 0.0
        %979 = vmatpush2.msra.mxu0 0.0
        %980 = vmatprep.subr.mxu0 0.0
        %981 = vmatpush2.msra.mxu0 0.0
        %982 = vmatprep.subr.mxu0 0.0
        %983 = vmatpush2.msra.mxu0 0.0
        %984 = vmatprep.subr.mxu0 0.0
        %985 = vmatpush2.msra.mxu0 0.0
        %986 = vmatprep.subr.mxu0 0.0
        %987 = vmatpush2.msra.mxu0 0.0
        %988 = vmatprep.subr.mxu0 0.0
        %989 = vmatpush2.msra.mxu0 0.0
        %990 = vmatprep.subr.mxu0 0.0
        %991 = vmatpush2.msra.mxu0 0.0
        %992 = vmatprep.subr.mxu0 0.0
        %993 = vmatpush2.msra.mxu0 0.0
        %994 = vmatprep.subr.mxu0 0.0
        %995 = vmatpush2.msra.mxu0 0.0
        %996 = vmatprep.subr.mxu0 0.0
        %997 = vmatpush2.msra.mxu0 0.0
        %998 = vmatprep.subr.mxu0 0.0
        %999 = vmatpush2.msra.mxu0 0.0
        %1000 = vmatprep.mubr.f32.mxu0 0.0
        %1001 = vmatmul.mubr.f32.gmra.mxu0 %v925
        %v1002 = vpop.f32.mrf.mxu0
        %v1003 = vadd.f32 0.0, %v1002
        %v1004 = vpop.f32.mrf.mxu0
        %v1005 = vadd.f32 0.0, %v1004
        %1006 = vmatprep.mubr.f32.mxu0 0.0
        %1007 = vmatmul.mubr.f32.gmra.mxu0 %v928
        %v1008 = vpop.f32.mrf.mxu0
        %v1009 = vadd.f32 0.0, %v1008
        %v1010 = vpop.f32.mrf.mxu0
        %v1011 = vadd.f32 0.0, %v1010
        %1012 = vmatprep.mubr.f32.mxu0 0.0
        %1013 = vmatmul.mubr.f32.gmra.mxu0 %v931
        %v1014 = vpop.f32.mrf.mxu0
        %v1015 = vadd.f32 0.0, %v1014
        %v1016 = vpop.f32.mrf.mxu0
        %v1017 = vadd.f32 0.0, %v1016
        %1018 = vmatprep.mubr.f32.mxu0 0.0
        %1019 = vmatmul.mubr.f32.gmra.mxu0 %v934
        %v1020 = vpop.f32.mrf.mxu0
        %v1021 = vadd.f32 0.0, %v1020
        %v1022 = vpop.f32.mrf.mxu0
        %v1023 = vadd.f32 0.0, %v1022
        %1024 = vdwg.mxu0
        %v1025 = vadd.f32 %v887, %v1003
        %v1026 = vadd.f32 %v888, %v1005
        %v1027 = vadd.f32 %v889, %v1009
        %v1028 = vadd.f32 %v890, %v1011
        %v1029 = vadd.f32 %v891, %v1015
        %v1030 = vadd.f32 %v892, %v1017
        %v1031 = vadd.f32 %v893, %v1021
        %v1032 = vadd.f32 %v894, %v1023
        %v1033 = vld [vmem:[%s496 + $0x4] sm:$0xff]
        %v1034 = vld [vmem:[%s496 + $0xc] sm:$0xff]
        %v1035 = vld [vmem:[%s496 + $0x14] sm:$0xff]
        %v1036 = vld [vmem:[%s496 + $0x1c] sm:$0xf]
        %s1037 = scalar_lea.vmem [#allocation2], 768
        %v1038 = vld [vmem:[%s1037] sm:$0xff]
        %v1039 = vld [vmem:[%s1037 + $0x8] sm:$0xff]
        %v1040 = vld [vmem:[%s1037 + $0x10] sm:$0xff]
        %v1041 = vld [vmem:[%s1037 + $0x18] sm:$0xff]
        %v1042 = vld [vmem:[%s1037 + $0x20] sm:$0xff]
        %v1043 = vld [vmem:[%s1037 + $0x28] sm:$0xff]
        %v1044 = vld [vmem:[%s1037 + $0x30] sm:$0xff]
        %v1045 = vld [vmem:[%s1037 + $0x38] sm:$0xff]
        %v1046 = vld [vmem:[%s1037 + $0x40] sm:$0xff]
        %v1047 = vld [vmem:[%s1037 + $0x48] sm:$0xff]
        %v1048 = vld [vmem:[%s1037 + $0x50] sm:$0xff]
        %v1049 = vld [vmem:[%s1037 + $0x58] sm:$0xff]
        %v1050 = vld [vmem:[%s1037 + $0x60] sm:$0xff]
        %v1051 = vld [vmem:[%s1037 + $0x68] sm:$0xff]
        %v1052 = vld [vmem:[%s1037 + $0x70] sm:$0xff]
        %v1053 = vld [vmem:[%s1037 + $0x78] sm:$0xff]
        %v1054 = vld [vmem:[%s1037 + $0x80] sm:$0xff]
        %v1055 = vld [vmem:[%s1037 + $0x88] sm:$0xff]
        %v1056 = vld [vmem:[%s1037 + $0x90] sm:$0xff]
        %v1057 = vld [vmem:[%s1037 + $0x98] sm:$0xff]
        %v1058 = vld [vmem:[%s1037 + $0xa0] sm:$0xff]
        %v1059 = vld [vmem:[%s1037 + $0xa8] sm:$0xff]
        %v1060 = vld [vmem:[%s1037 + $0xb0] sm:$0xff]
        %v1061 = vld [vmem:[%s1037 + $0xb8] sm:$0xff]
        %v1063 = vsel %vm554, %v1033, 0
        %v1066 = vsel %vm554, %v1034, 0
        %v1069 = vsel %vm554, %v1035, 0
        %v1072 = vsel %vm554, %v1036, 0
        %1074 = vmatprep.subr.mxu0 0.0
        %1075 = vmatpush1.msra.mxu0 0.0
        %1076 = vmatprep.subr.mxu0 0.0
        %1077 = vmatpush1.msra.mxu0 0.0
        %1078 = vmatprep.subr.mxu0 0.0
        %1079 = vmatpush1.msra.mxu0 0.0
        %1080 = vmatprep.subr.mxu0 0.0
        %1081 = vmatpush1.msra.mxu0 0.0
        %1082 = vmatprep.subr.mxu0 %v1061
        %1083 = vmatpush1.msra.mxu0 %v1060
        %1084 = vmatprep.subr.mxu0 %v1059
        %1085 = vmatpush1.msra.mxu0 %v1058
        %1086 = vmatprep.subr.mxu0 %v1057
        %1087 = vmatpush1.msra.mxu0 %v1056
        %1088 = vmatprep.subr.mxu0 %v1055
        %1089 = vmatpush1.msra.mxu0 %v1054
        %1090 = vmatprep.subr.mxu0 %v1053
        %1091 = vmatpush1.msra.mxu0 %v1052
        %1092 = vmatprep.subr.mxu0 %v1051
        %1093 = vmatpush1.msra.mxu0 %v1050
        %1094 = vmatprep.subr.mxu0 %v1049
        %1095 = vmatpush1.msra.mxu0 %v1048
        %1096 = vmatprep.subr.mxu0 %v1047
        %1097 = vmatpush1.msra.mxu0 %v1046
        %1098 = vmatprep.subr.mxu0 %v1045
        %1099 = vmatpush1.msra.mxu0 %v1044
        %1100 = vmatprep.subr.mxu0 %v1043
        %1101 = vmatpush1.msra.mxu0 %v1042
        %1102 = vmatprep.subr.mxu0 %v1041
        %1103 = vmatpush1.msra.mxu0 %v1040
        %1104 = vmatprep.subr.mxu0 %v1039
        %1105 = vmatpush1.msra.mxu0 %v1038
        %1106 = vmatprep.subr.mxu0 0.0
        %1107 = vmatpush2.msra.mxu0 0.0
        %1108 = vmatprep.subr.mxu0 0.0
        %1109 = vmatpush2.msra.mxu0 0.0
        %1110 = vmatprep.subr.mxu0 0.0
        %1111 = vmatpush2.msra.mxu0 0.0
        %1112 = vmatprep.subr.mxu0 0.0
        %1113 = vmatpush2.msra.mxu0 0.0
        %1114 = vmatprep.subr.mxu0 0.0
        %1115 = vmatpush2.msra.mxu0 0.0
        %1116 = vmatprep.subr.mxu0 0.0
        %1117 = vmatpush2.msra.mxu0 0.0
        %1118 = vmatprep.subr.mxu0 0.0
        %1119 = vmatpush2.msra.mxu0 0.0
        %1120 = vmatprep.subr.mxu0 0.0
        %1121 = vmatpush2.msra.mxu0 0.0
        %1122 = vmatprep.subr.mxu0 0.0
        %1123 = vmatpush2.msra.mxu0 0.0
        %1124 = vmatprep.subr.mxu0 0.0
        %1125 = vmatpush2.msra.mxu0 0.0
        %1126 = vmatprep.subr.mxu0 0.0
        %1127 = vmatpush2.msra.mxu0 0.0
        %1128 = vmatprep.subr.mxu0 0.0
        %1129 = vmatpush2.msra.mxu0 0.0
        %1130 = vmatprep.subr.mxu0 0.0
        %1131 = vmatpush2.msra.mxu0 0.0
        %1132 = vmatprep.subr.mxu0 0.0
        %1133 = vmatpush2.msra.mxu0 0.0
        %1134 = vmatprep.subr.mxu0 0.0
        %1135 = vmatpush2.msra.mxu0 0.0
        %1136 = vmatprep.subr.mxu0 0.0
        %1137 = vmatpush2.msra.mxu0 0.0
        %1138 = vmatprep.mubr.f32.mxu0 0.0
        %1139 = vmatmul.mubr.f32.gmra.mxu0 %v1063
        %v1140 = vpop.f32.mrf.mxu0
        %v1141 = vadd.f32 0.0, %v1140
        %v1142 = vpop.f32.mrf.mxu0
        %v1143 = vadd.f32 0.0, %v1142
        %1144 = vmatprep.mubr.f32.mxu0 0.0
        %1145 = vmatmul.mubr.f32.gmra.mxu0 %v1066
        %v1146 = vpop.f32.mrf.mxu0
        %v1147 = vadd.f32 0.0, %v1146
        %v1148 = vpop.f32.mrf.mxu0
        %v1149 = vadd.f32 0.0, %v1148
        %1150 = vmatprep.mubr.f32.mxu0 0.0
        %1151 = vmatmul.mubr.f32.gmra.mxu0 %v1069
        %v1152 = vpop.f32.mrf.mxu0
        %v1153 = vadd.f32 0.0, %v1152
        %v1154 = vpop.f32.mrf.mxu0
        %v1155 = vadd.f32 0.0, %v1154
        %1156 = vmatprep.mubr.f32.mxu0 0.0
        %1157 = vmatmul.mubr.f32.gmra.mxu0 %v1072
        %v1158 = vpop.f32.mrf.mxu0
        %v1159 = vadd.f32 0.0, %v1158
        %v1160 = vpop.f32.mrf.mxu0
        %v1161 = vadd.f32 0.0, %v1160
        %1162 = vdwg.mxu0
        %v1163 = vadd.f32 %v1025, %v1141
        %v1164 = vadd.f32 %v1026, %v1143
        %v1165 = vadd.f32 %v1027, %v1147
        %v1166 = vadd.f32 %v1028, %v1149
        %v1167 = vadd.f32 %v1029, %v1153
        %v1168 = vadd.f32 %v1030, %v1155
        %v1169 = vadd.f32 %v1031, %v1159
        %v1170 = vadd.f32 %v1032, %v1161
        %v1171 = vld [vmem:[%s2] sm:$0x1]
        %v1173 = vlaneseq
        %v1174 = vshrl.u32 %v1173, 7
        %v1175 = vsub.s32 0, %v1174
        %v1176 = vrot.slane %v1171, %v1175
        %v1178 = vadd.f32 %v1163, %v1176
        %v1179 = vadd.f32 %v1165, %v1176
        %v1180 = vadd.f32 %v1167, %v1176
        %v1181 = vadd.f32 %v1169, %v1176
        %v1182 = vmax.f32 %v1178, 0.0
        %v1183 = vmax.f32 %v1179, 0.0
        %v1184 = vmax.f32 %v1180, 0.0
        %v1185 = vmax.f32 %v1181, 0.0
        %v1186 = vadd.f32 %v1164, %v1176
        %v1187 = vadd.f32 %v1166, %v1176
        %v1188 = vadd.f32 %v1168, %v1176
        %v1189 = vadd.f32 %v1170, %v1176
        %v1190 = vmax.f32 %v1186, 0.0
        %v1191 = vmax.f32 %v1187, 0.0
        %v1192 = vmax.f32 %v1188, 0.0
        %v1193 = vmax.f32 %v1189, 0.0
        %v1194 = vmax.f32 %v1182, %v1190
        %v1195 = vmax.f32 %v1183, %v1191
        %v1196 = vmax.f32 %v1184, %v1192
        %v1197 = vmax.f32 %v1185, %v1193
        %v1198 = vld [vmem:[%s3] sm:$0xff]
        %v1199 = vld [vmem:[%s3 + $0x8] sm:$0x3f]
        %vm1200 = vcmask 228352
        %v1202 = vsel %vm1200, %v1198, 0
        %v1205 = vsel %vm1200, %v1199, 0
        %vm1207 = vcmask 1043456
        %v1209 = vsel %vm1207, %v1197, 0
        %1211 = vmatprep.subr.mxu0 0.0
        %1212 = vmatpush1.msra.mxu0 0.0
        %1213 = vmatprep.subr.mxu0 0.0
        %1214 = vmatpush1.msra.mxu0 0.0
        %1215 = vmatprep.subr.mxu0 0.0
        %1216 = vmatpush1.msra.mxu0 0.0
        %1217 = vmatprep.subr.mxu0 0.0
        %1218 = vmatpush1.msra.mxu0 0.0
        %1219 = vmatprep.subr.mxu0 0.0
        %1220 = vmatpush1.msra.mxu0 0.0
        %1221 = vmatprep.subr.mxu0 0.0
        %1222 = vmatpush1.msra.mxu0 0.0
        %1223 = vmatprep.subr.mxu0 0.0
        %1224 = vmatpush1.msra.mxu0 0.0
        %1225 = vmatprep.subr.mxu0 0.0
        %1226 = vmatpush1.msra.mxu0 0.0
        %1227 = vmatprep.subr.mxu0 0.0
        %1228 = vmatpush1.msra.mxu0 0.0
        %1229 = vmatprep.subr.mxu0 0.0
        %1230 = vmatpush1.msra.mxu0 0.0
        %1231 = vmatprep.subr.mxu0 0.0
        %1232 = vmatpush1.msra.mxu0 0.0
        %1233 = vmatprep.subr.mxu0 0.0
        %1234 = vmatpush1.msra.mxu0 0.0
        %1235 = vmatprep.subr.mxu0 0.0
        %1236 = vmatpush1.msra.mxu0 %v1209
        %1237 = vmatprep.subr.mxu0 0.0
        %1238 = vmatpush1.msra.mxu0 %v1196
        %1239 = vmatprep.subr.mxu0 0.0
        %1240 = vmatpush1.msra.mxu0 %v1195
        %1241 = vmatprep.subr.mxu0 0.0
        %1242 = vmatpush1.msra.mxu0 %v1194
        %1243 = vmatprep.subr.mxu0 0.0
        %1244 = vmatpush2.msra.mxu0 0.0
        %1245 = vmatprep.subr.mxu0 0.0
        %1246 = vmatpush2.msra.mxu0 0.0
        %1247 = vmatprep.subr.mxu0 0.0
        %1248 = vmatpush2.msra.mxu0 0.0
        %1249 = vmatprep.subr.mxu0 0.0
        %1250 = vmatpush2.msra.mxu0 0.0
        %1251 = vmatprep.subr.mxu0 0.0
        %1252 = vmatpush2.msra.mxu0 0.0
        %1253 = vmatprep.subr.mxu0 0.0
        %1254 = vmatpush2.msra.mxu0 0.0
        %1255 = vmatprep.subr.mxu0 0.0
        %1256 = vmatpush2.msra.mxu0 0.0
        %1257 = vmatprep.subr.mxu0 0.0
        %1258 = vmatpush2.msra.mxu0 0.0
        %1259 = vmatprep.subr.mxu0 0.0
        %1260 = vmatpush2.msra.mxu0 0.0
        %1261 = vmatprep.subr.mxu0 0.0
        %1262 = vmatpush2.msra.mxu0 0.0
        %1263 = vmatprep.subr.mxu0 0.0
        %1264 = vmatpush2.msra.mxu0 0.0
        %1265 = vmatprep.subr.mxu0 0.0
        %1266 = vmatpush2.msra.mxu0 0.0
        %1267 = vmatprep.subr.mxu0 0.0
        %1268 = vmatpush2.msra.mxu0 0.0
        %1269 = vmatprep.subr.mxu0 0.0
        %1270 = vmatpush2.msra.mxu0 0.0
        %1271 = vmatprep.subr.mxu0 0.0
        %1272 = vmatpush2.msra.mxu0 0.0
        %1273 = vmatprep.subr.mxu0 0.0
        %1274 = vmatpush2.msra.mxu0 0.0
        %1275 = vmatprep.mubr.f32.mxu0 0.0
        %1276 = vmatmul.mubr.f32.gmra.mxu0 %v1202
        %v1277 = vpop.f32.mrf.mxu0
        %v1278 = vadd.f32 0.0, %v1277
        %v1279 = vpop.f32.mrf.mxu0
        %1280 = vmatprep.mubr.f32.mxu0 0.0
        %1281 = vmatmul.mubr.f32.gmra.mxu0 %v1205
        %v1282 = vpop.f32.mrf.mxu0
        %v1283 = vadd.f32 0.0, %v1282
        %v1284 = vpop.f32.mrf.mxu0
        %1285 = vdwg.mxu0
        %s1286 = scalar_lea.vmem %s3, 16
        %v1287 = vld [vmem:[%s1286] sm:$0xff]
        %v1288 = vld [vmem:[%s1286 + $0x8] sm:$0x3f]
        %v1290 = vsel %vm1200, %v1287, 0
        %v1293 = vsel %vm1200, %v1288, 0
        %1295 = vmatprep.subr.mxu0 0.0
        %1296 = vmatpush1.msra.mxu0 0.0
        %1297 = vmatprep.subr.mxu0 0.0
        %1298 = vmatpush1.msra.mxu0 0.0
        %1299 = vmatprep.subr.mxu0 0.0
        %1300 = vmatpush1.msra.mxu0 0.0
        %1301 = vmatprep.subr.mxu0 0.0
        %1302 = vmatpush1.msra.mxu0 0.0
        %1303 = vmatprep.subr.mxu0 0.0
        %1304 = vmatpush1.msra.mxu0 0.0
        %1305 = vmatprep.subr.mxu0 0.0
        %1306 = vmatpush1.msra.mxu0 0.0
        %1307 = vmatprep.subr.mxu0 0.0
        %1308 = vmatpush1.msra.mxu0 0.0
        %1309 = vmatprep.subr.mxu0 0.0
        %1310 = vmatpush1.msra.mxu0 0.0
        %1311 = vmatprep.subr.mxu0 0.0
        %1312 = vmatpush1.msra.mxu0 0.0
        %1313 = vmatprep.subr.mxu0 0.0
        %1314 = vmatpush1.msra.mxu0 0.0
        %1315 = vmatprep.subr.mxu0 0.0
        %1316 = vmatpush1.msra.mxu0 0.0
        %1317 = vmatprep.subr.mxu0 0.0
        %1318 = vmatpush1.msra.mxu0 0.0
        %1319 = vmatprep.subr.mxu0 0.0
        %1320 = vmatpush1.msra.mxu0 %v1209
        %1321 = vmatprep.subr.mxu0 0.0
        %1322 = vmatpush1.msra.mxu0 %v1196
        %1323 = vmatprep.subr.mxu0 0.0
        %1324 = vmatpush1.msra.mxu0 %v1195
        %1325 = vmatprep.subr.mxu0 0.0
        %1326 = vmatpush1.msra.mxu0 %v1194
        %1327 = vmatprep.subr.mxu0 0.0
        %1328 = vmatpush2.msra.mxu0 0.0
        %1329 = vmatprep.subr.mxu0 0.0
        %1330 = vmatpush2.msra.mxu0 0.0
        %1331 = vmatprep.subr.mxu0 0.0
        %1332 = vmatpush2.msra.mxu0 0.0
        %1333 = vmatprep.subr.mxu0 0.0
        %1334 = vmatpush2.msra.mxu0 0.0
        %1335 = vmatprep.subr.mxu0 0.0
        %1336 = vmatpush2.msra.mxu0 0.0
        %1337 = vmatprep.subr.mxu0 0.0
        %1338 = vmatpush2.msra.mxu0 0.0
        %1339 = vmatprep.subr.mxu0 0.0
        %1340 = vmatpush2.msra.mxu0 0.0
        %1341 = vmatprep.subr.mxu0 0.0
        %1342 = vmatpush2.msra.mxu0 0.0
        %1343 = vmatprep.subr.mxu0 0.0
        %1344 = vmatpush2.msra.mxu0 0.0
        %1345 = vmatprep.subr.mxu0 0.0
        %1346 = vmatpush2.msra.mxu0 0.0
        %1347 = vmatprep.subr.mxu0 0.0
        %1348 = vmatpush2.msra.mxu0 0.0
        %1349 = vmatprep.subr.mxu0 0.0
        %1350 = vmatpush2.msra.mxu0 0.0
        %1351 = vmatprep.subr.mxu0 0.0
        %1352 = vmatpush2.msra.mxu0 0.0
        %1353 = vmatprep.subr.mxu0 0.0
        %1354 = vmatpush2.msra.mxu0 0.0
        %1355 = vmatprep.subr.mxu0 0.0
        %1356 = vmatpush2.msra.mxu0 0.0
        %1357 = vmatprep.subr.mxu0 0.0
        %1358 = vmatpush2.msra.mxu0 0.0
        %1359 = vmatprep.mubr.f32.mxu0 0.0
        %1360 = vmatmul.mubr.f32.gmra.mxu0 %v1290
        %v1361 = vpop.f32.mrf.mxu0
        %v1362 = vadd.f32 0.0, %v1361
        %v1363 = vpop.f32.mrf.mxu0
        %1364 = vmatprep.mubr.f32.mxu0 0.0
        %1365 = vmatmul.mubr.f32.gmra.mxu0 %v1293
        %v1366 = vpop.f32.mrf.mxu0
        %v1367 = vadd.f32 0.0, %v1366
        %v1368 = vpop.f32.mrf.mxu0
        %1369 = vdwg.mxu0
        %v1370 = vmax.f32 %v1278, %v1362
        %v1371 = vmax.f32 %v1283, %v1367
        %v1372 = vld [vmem:[#allocation5] sm:$0xff]
        %v1373 = vld [vmem:[#allocation5 + $0x8] sm:$0xff]
        %v1374 = vld [vmem:[#allocation5 + $0x10] sm:$0xff]
        %v1375 = vld [vmem:[#allocation5 + $0x18] sm:$0xff]
        %v1376 = vld [vmem:[#allocation5 + $0x20] sm:$0xff]
        %v1377 = vld [vmem:[#allocation5 + $0x28] sm:$0xff]
        %v1378 = vld [vmem:[#allocation5 + $0x30] sm:$0xff]
        %v1379 = vld [vmem:[#allocation5 + $0x38] sm:$0xff]
        %v1380 = vld [vmem:[#allocation5 + $0x40] sm:$0xff]
        %v1381 = vld [vmem:[#allocation5 + $0x48] sm:$0xff]
        %v1382 = vld [vmem:[#allocation5 + $0x50] sm:$0xff]
        %v1383 = vld [vmem:[#allocation5 + $0x58] sm:$0xff]
        %v1384 = vld [vmem:[#allocation5 + $0x60] sm:$0xff]
        %v1385 = vld [vmem:[#allocation5 + $0x68] sm:$0xff]
        %v1386 = vld [vmem:[#allocation5 + $0x70] sm:$0xff]
        %v1387 = vld [vmem:[#allocation5 + $0x78] sm:$0xff]
        %v1388 = vld [vmem:[#allocation5 + $0x80] sm:$0xff]
        %v1389 = vld [vmem:[#allocation5 + $0x88] sm:$0xff]
        %v1390 = vld [vmem:[#allocation5 + $0x90] sm:$0xff]
        %v1391 = vld [vmem:[#allocation5 + $0x98] sm:$0xff]
        %v1392 = vld [vmem:[#allocation5 + $0xa0] sm:$0xff]
        %v1393 = vld [vmem:[#allocation5 + $0xa8] sm:$0xff]
        %v1394 = vld [vmem:[#allocation5 + $0xb0] sm:$0xff]
        %v1395 = vld [vmem:[#allocation5 + $0xb8] sm:$0xff]
        %v1396 = vld [vmem:[#allocation5 + $0xc0] sm:$0xff]
        %v1397 = vld [vmem:[#allocation5 + $0xc8] sm:$0xff]
        %v1398 = vld [vmem:[#allocation5 + $0xd0] sm:$0xff]
        %v1399 = vld [vmem:[#allocation5 + $0xd8] sm:$0xff]
        %v1400 = vld [vmem:[#allocation5 + $0xe0] sm:$0xff]
        %v1401 = vld [vmem:[#allocation5 + $0xe8] sm:$0xff]
        %v1402 = vld [vmem:[#allocation5 + $0xf0] sm:$0xff]
        %v1403 = vld [vmem:[#allocation5 + $0xf8] sm:$0xff]
        %s1404 = scalar_lea.vmem [#allocation5], 256
        %v1405 = vld [vmem:[%s1404] sm:$0xff]
        %v1406 = vld [vmem:[%s1404 + $0x8] sm:$0xff]
        %v1407 = vld [vmem:[%s1404 + $0x10] sm:$0xff]
        %v1408 = vld [vmem:[%s1404 + $0x18] sm:$0xff]
        %v1409 = vld [vmem:[%s1404 + $0x20] sm:$0xff]
        %v1410 = vld [vmem:[%s1404 + $0x28] sm:$0xff]
        %v1411 = vld [vmem:[%s1404 + $0x30] sm:$0xff]
        %v1412 = vld [vmem:[%s1404 + $0x38] sm:$0xff]
        %v1413 = vld [vmem:[%s1404 + $0x40] sm:$0xff]
        %v1414 = vld [vmem:[%s1404 + $0x48] sm:$0xff]
        %v1415 = vld [vmem:[%s1404 + $0x50] sm:$0xff]
        %v1416 = vld [vmem:[%s1404 + $0x58] sm:$0xff]
        %v1417 = vld [vmem:[%s1404 + $0x60] sm:$0xff]
        %v1418 = vld [vmem:[%s1404 + $0x68] sm:$0xff]
        %v1419 = vld [vmem:[%s1404 + $0x70] sm:$0xff]
        %v1420 = vld [vmem:[%s1404 + $0x78] sm:$0xff]
        %v1421 = vld [vmem:[%s1404 + $0x80] sm:$0xff]
        %v1422 = vld [vmem:[%s1404 + $0x88] sm:$0xff]
        %v1423 = vld [vmem:[%s1404 + $0x90] sm:$0xff]
        %v1424 = vld [vmem:[%s1404 + $0x98] sm:$0xff]
        %v1425 = vld [vmem:[%s1404 + $0xa0] sm:$0xff]
        %v1426 = vld [vmem:[%s1404 + $0xa8] sm:$0xff]
        %v1427 = vld [vmem:[%s1404 + $0xb0] sm:$0xff]
        %v1428 = vld [vmem:[%s1404 + $0xb8] sm:$0xff]
        %v1429 = vld [vmem:[%s1404 + $0xc0] sm:$0xff]
        %v1430 = vld [vmem:[%s1404 + $0xc8] sm:$0xff]
        %v1431 = vld [vmem:[%s1404 + $0xd0] sm:$0xff]
        %v1432 = vld [vmem:[%s1404 + $0xd8] sm:$0xff]
        %v1433 = vld [vmem:[%s1404 + $0xe0] sm:$0xff]
        %v1434 = vld [vmem:[%s1404 + $0xe8] sm:$0xff]
        %v1435 = vld [vmem:[%s1404 + $0xf0] sm:$0xff]
        %v1436 = vld [vmem:[%s1404 + $0xf8] sm:$0xff]
        %vm1439 = vcmask 1046528
        %v1440 = vrot.slane %v1370, 1
        %v1441 = vrot.slane %v1371, 1
        %v1442 = vsel %vm1439, %v1440, %v1441
        %1445 = vmatprep.subr.mxu0 %v1436
        %1446 = vmatpush1.msra.mxu0 %v1435
        %1447 = vmatprep.subr.mxu0 %v1434
        %1448 = vmatpush1.msra.mxu0 %v1433
        %1449 = vmatprep.subr.mxu0 %v1432
        %1450 = vmatpush1.msra.mxu0 %v1431
        %1451 = vmatprep.subr.mxu0 %v1430
        %1452 = vmatpush1.msra.mxu0 %v1429
        %1453 = vmatprep.subr.mxu0 %v1428
        %1454 = vmatpush1.msra.mxu0 %v1427
        %1455 = vmatprep.subr.mxu0 %v1426
        %1456 = vmatpush1.msra.mxu0 %v1425
        %1457 = vmatprep.subr.mxu0 %v1424
        %1458 = vmatpush1.msra.mxu0 %v1423
        %1459 = vmatprep.subr.mxu0 %v1422
        %1460 = vmatpush1.msra.mxu0 %v1421
        %1461 = vmatprep.subr.mxu0 %v1420
        %1462 = vmatpush1.msra.mxu0 %v1419
        %1463 = vmatprep.subr.mxu0 %v1418
        %1464 = vmatpush1.msra.mxu0 %v1417
        %1465 = vmatprep.subr.mxu0 %v1416
        %1466 = vmatpush1.msra.mxu0 %v1415
        %1467 = vmatprep.subr.mxu0 %v1414
        %1468 = vmatpush1.msra.mxu0 %v1413
        %1469 = vmatprep.subr.mxu0 %v1412
        %1470 = vmatpush1.msra.mxu0 %v1411
        %1471 = vmatprep.subr.mxu0 %v1410
        %1472 = vmatpush1.msra.mxu0 %v1409
        %1473 = vmatprep.subr.mxu0 %v1408
        %1474 = vmatpush1.msra.mxu0 %v1407
        %1475 = vmatprep.subr.mxu0 %v1406
        %1476 = vmatpush1.msra.mxu0 %v1405
        %1477 = vmatprep.subr.mxu0 0.0
        %1478 = vmatpush2.msra.mxu0 0.0
        %1479 = vmatprep.subr.mxu0 0.0
        %1480 = vmatpush2.msra.mxu0 0.0
        %1481 = vmatprep.subr.mxu0 0.0
        %1482 = vmatpush2.msra.mxu0 0.0
        %1483 = vmatprep.subr.mxu0 0.0
        %1484 = vmatpush2.msra.mxu0 0.0
        %1485 = vmatprep.subr.mxu0 0.0
        %1486 = vmatpush2.msra.mxu0 0.0
        %1487 = vmatprep.subr.mxu0 0.0
        %1488 = vmatpush2.msra.mxu0 0.0
        %1489 = vmatprep.subr.mxu0 0.0
        %1490 = vmatpush2.msra.mxu0 0.0
        %1491 = vmatprep.subr.mxu0 0.0
        %1492 = vmatpush2.msra.mxu0 0.0
        %1493 = vmatprep.subr.mxu0 0.0
        %1494 = vmatpush2.msra.mxu0 0.0
        %1495 = vmatprep.subr.mxu0 0.0
        %1496 = vmatpush2.msra.mxu0 0.0
        %1497 = vmatprep.subr.mxu0 0.0
        %1498 = vmatpush2.msra.mxu0 0.0
        %1499 = vmatprep.subr.mxu0 0.0
        %1500 = vmatpush2.msra.mxu0 0.0
        %1501 = vmatprep.subr.mxu0 0.0
        %1502 = vmatpush2.msra.mxu0 0.0
        %1503 = vmatprep.subr.mxu0 0.0
        %1504 = vmatpush2.msra.mxu0 0.0
        %1505 = vmatprep.subr.mxu0 0.0
        %1506 = vmatpush2.msra.mxu0 0.0
        %1507 = vmatprep.subr.mxu0 0.0
        %1508 = vmatpush2.msra.mxu0 0.0
        %1509 = vmatprep.mubr.f32.mxu0 0.0
        %1510 = vmatmul.mubr.f32.gmra.mxu0 %v1442
        %v1511 = vpop.f32.mrf.mxu0
        %v1512 = vadd.f32 0.0, %v1511
        %v1513 = vpop.f32.mrf.mxu0
        %v1514 = vadd.f32 0.0, %v1513
        %1515 = vmatprep.mubr.f32.mxu0 0.0
        %1516 = vmatmul.mubr.f32.gmra.mxu0 %v1441
        %v1517 = vpop.f32.mrf.mxu0
        %v1518 = vadd.f32 0.0, %v1517
        %v1519 = vpop.f32.mrf.mxu0
        %v1520 = vadd.f32 0.0, %v1519
        %1521 = vdwg.mxu0
        %1522 = vmatprep.subr.mxu0 %v1403
        %1523 = vmatpush1.msra.mxu0 %v1402
        %1524 = vmatprep.subr.mxu0 %v1401
        %1525 = vmatpush1.msra.mxu0 %v1400
        %1526 = vmatprep.subr.mxu0 %v1399
        %1527 = vmatpush1.msra.mxu0 %v1398
        %1528 = vmatprep.subr.mxu0 %v1397
        %1529 = vmatpush1.msra.mxu0 %v1396
        %1530 = vmatprep.subr.mxu0 %v1395
        %1531 = vmatpush1.msra.mxu0 %v1394
        %1532 = vmatprep.subr.mxu0 %v1393
        %1533 = vmatpush1.msra.mxu0 %v1392
        %1534 = vmatprep.subr.mxu0 %v1391
        %1535 = vmatpush1.msra.mxu0 %v1390
        %1536 = vmatprep.subr.mxu0 %v1389
        %1537 = vmatpush1.msra.mxu0 %v1388
        %1538 = vmatprep.subr.mxu0 %v1387
        %1539 = vmatpush1.msra.mxu0 %v1386
        %1540 = vmatprep.subr.mxu0 %v1385
        %1541 = vmatpush1.msra.mxu0 %v1384
        %1542 = vmatprep.subr.mxu0 %v1383
        %1543 = vmatpush1.msra.mxu0 %v1382
        %1544 = vmatprep.subr.mxu0 %v1381
        %1545 = vmatpush1.msra.mxu0 %v1380
        %1546 = vmatprep.subr.mxu0 %v1379
        %1547 = vmatpush1.msra.mxu0 %v1378
        %1548 = vmatprep.subr.mxu0 %v1377
        %1549 = vmatpush1.msra.mxu0 %v1376
        %1550 = vmatprep.subr.mxu0 %v1375
        %1551 = vmatpush1.msra.mxu0 %v1374
        %1552 = vmatprep.subr.mxu0 %v1373
        %1553 = vmatpush1.msra.mxu0 %v1372
        %1554 = vmatprep.subr.mxu0 0.0
        %1555 = vmatpush2.msra.mxu0 0.0
        %1556 = vmatprep.subr.mxu0 0.0
        %1557 = vmatpush2.msra.mxu0 0.0
        %1558 = vmatprep.subr.mxu0 0.0
        %1559 = vmatpush2.msra.mxu0 0.0
        %1560 = vmatprep.subr.mxu0 0.0
        %1561 = vmatpush2.msra.mxu0 0.0
        %1562 = vmatprep.subr.mxu0 0.0
        %1563 = vmatpush2.msra.mxu0 0.0
        %1564 = vmatprep.subr.mxu0 0.0
        %1565 = vmatpush2.msra.mxu0 0.0
        %1566 = vmatprep.subr.mxu0 0.0
        %1567 = vmatpush2.msra.mxu0 0.0
        %1568 = vmatprep.subr.mxu0 0.0
        %1569 = vmatpush2.msra.mxu0 0.0
        %1570 = vmatprep.subr.mxu0 0.0
        %1571 = vmatpush2.msra.mxu0 0.0
        %1572 = vmatprep.subr.mxu0 0.0
        %1573 = vmatpush2.msra.mxu0 0.0
        %1574 = vmatprep.subr.mxu0 0.0
        %1575 = vmatpush2.msra.mxu0 0.0
        %1576 = vmatprep.subr.mxu0 0.0
        %1577 = vmatpush2.msra.mxu0 0.0
        %1578 = vmatprep.subr.mxu0 0.0
        %1579 = vmatpush2.msra.mxu0 0.0
        %1580 = vmatprep.subr.mxu0 0.0
        %1581 = vmatpush2.msra.mxu0 0.0
        %1582 = vmatprep.subr.mxu0 0.0
        %1583 = vmatpush2.msra.mxu0 0.0
        %1584 = vmatprep.subr.mxu0 0.0
        %1585 = vmatpush2.msra.mxu0 0.0
        %1586 = vmatprep.mubr.f32.mxu0 0.0
        %1587 = vmatmul.mubr.f32.gmra.mxu0 %v1370
        %v1588 = vpop.f32.mrf.mxu0
        %v1589 = vadd.f32 %v1512, %v1588
        %v1590 = vpop.f32.mrf.mxu0
        %v1591 = vadd.f32 %v1514, %v1590
        %1592 = vmatprep.mubr.f32.mxu0 0.0
        %1593 = vmatmul.mubr.f32.gmra.mxu0 %v1371
        %v1594 = vpop.f32.mrf.mxu0
        %v1595 = vadd.f32 %v1518, %v1594
        %v1596 = vpop.f32.mrf.mxu0
        %v1597 = vadd.f32 %v1520, %v1596
        %1598 = vdwg.mxu0
        %s1599 = scalar_lea.vmem [#allocation5], 512
        %v1600 = vld [vmem:[%s1599] sm:$0xff]
        %v1601 = vld [vmem:[%s1599 + $0x8] sm:$0xff]
        %v1602 = vld [vmem:[%s1599 + $0x10] sm:$0xff]
        %v1603 = vld [vmem:[%s1599 + $0x18] sm:$0xff]
        %v1604 = vld [vmem:[%s1599 + $0x20] sm:$0xff]
        %v1605 = vld [vmem:[%s1599 + $0x28] sm:$0xff]
        %v1606 = vld [vmem:[%s1599 + $0x30] sm:$0xff]
        %v1607 = vld [vmem:[%s1599 + $0x38] sm:$0xff]
        %v1608 = vld [vmem:[%s1599 + $0x40] sm:$0xff]
        %v1609 = vld [vmem:[%s1599 + $0x48] sm:$0xff]
        %v1610 = vld [vmem:[%s1599 + $0x50] sm:$0xff]
        %v1611 = vld [vmem:[%s1599 + $0x58] sm:$0xff]
        %v1612 = vld [vmem:[%s1599 + $0x60] sm:$0xff]
        %v1613 = vld [vmem:[%s1599 + $0x68] sm:$0xff]
        %v1614 = vld [vmem:[%s1599 + $0x70] sm:$0xff]
        %v1615 = vld [vmem:[%s1599 + $0x78] sm:$0xff]
        %v1616 = vld [vmem:[%s1599 + $0x80] sm:$0xff]
        %v1617 = vld [vmem:[%s1599 + $0x88] sm:$0xff]
        %v1618 = vld [vmem:[%s1599 + $0x90] sm:$0xff]
        %v1619 = vld [vmem:[%s1599 + $0x98] sm:$0xff]
        %v1620 = vld [vmem:[%s1599 + $0xa0] sm:$0xff]
        %v1621 = vld [vmem:[%s1599 + $0xa8] sm:$0xff]
        %v1622 = vld [vmem:[%s1599 + $0xb0] sm:$0xff]
        %v1623 = vld [vmem:[%s1599 + $0xb8] sm:$0xff]
        %v1624 = vld [vmem:[%s1599 + $0xc0] sm:$0xff]
        %v1625 = vld [vmem:[%s1599 + $0xc8] sm:$0xff]
        %v1626 = vld [vmem:[%s1599 + $0xd0] sm:$0xff]
        %v1627 = vld [vmem:[%s1599 + $0xd8] sm:$0xff]
        %v1628 = vld [vmem:[%s1599 + $0xe0] sm:$0xff]
        %v1629 = vld [vmem:[%s1599 + $0xe8] sm:$0xff]
        %v1630 = vld [vmem:[%s1599 + $0xf0] sm:$0xff]
        %v1631 = vld [vmem:[%s1599 + $0xf8] sm:$0xff]
        %vm1632 = vcmask 1045504
        %v1633 = vrot.slane %v1370, 2
        %v1634 = vrot.slane %v1371, 2
        %v1635 = vsel %vm1632, %v1633, %v1634
        %1638 = vmatprep.subr.mxu0 %v1631
        %1639 = vmatpush1.msra.mxu0 %v1630
        %1640 = vmatprep.subr.mxu0 %v1629
        %1641 = vmatpush1.msra.mxu0 %v1628
        %1642 = vmatprep.subr.mxu0 %v1627
        %1643 = vmatpush1.msra.mxu0 %v1626
        %1644 = vmatprep.subr.mxu0 %v1625
        %1645 = vmatpush1.msra.mxu0 %v1624
        %1646 = vmatprep.subr.mxu0 %v1623
        %1647 = vmatpush1.msra.mxu0 %v1622
        %1648 = vmatprep.subr.mxu0 %v1621
        %1649 = vmatpush1.msra.mxu0 %v1620
        %1650 = vmatprep.subr.mxu0 %v1619
        %1651 = vmatpush1.msra.mxu0 %v1618
        %1652 = vmatprep.subr.mxu0 %v1617
        %1653 = vmatpush1.msra.mxu0 %v1616
        %1654 = vmatprep.subr.mxu0 %v1615
        %1655 = vmatpush1.msra.mxu0 %v1614
        %1656 = vmatprep.subr.mxu0 %v1613
        %1657 = vmatpush1.msra.mxu0 %v1612
        %1658 = vmatprep.subr.mxu0 %v1611
        %1659 = vmatpush1.msra.mxu0 %v1610
        %1660 = vmatprep.subr.mxu0 %v1609
        %1661 = vmatpush1.msra.mxu0 %v1608
        %1662 = vmatprep.subr.mxu0 %v1607
        %1663 = vmatpush1.msra.mxu0 %v1606
        %1664 = vmatprep.subr.mxu0 %v1605
        %1665 = vmatpush1.msra.mxu0 %v1604
        %1666 = vmatprep.subr.mxu0 %v1603
        %1667 = vmatpush1.msra.mxu0 %v1602
        %1668 = vmatprep.subr.mxu0 %v1601
        %1669 = vmatpush1.msra.mxu0 %v1600
        %1670 = vmatprep.subr.mxu0 0.0
        %1671 = vmatpush2.msra.mxu0 0.0
        %1672 = vmatprep.subr.mxu0 0.0
        %1673 = vmatpush2.msra.mxu0 0.0
        %1674 = vmatprep.subr.mxu0 0.0
        %1675 = vmatpush2.msra.mxu0 0.0
        %1676 = vmatprep.subr.mxu0 0.0
        %1677 = vmatpush2.msra.mxu0 0.0
        %1678 = vmatprep.subr.mxu0 0.0
        %1679 = vmatpush2.msra.mxu0 0.0
        %1680 = vmatprep.subr.mxu0 0.0
        %1681 = vmatpush2.msra.mxu0 0.0
        %1682 = vmatprep.subr.mxu0 0.0
        %1683 = vmatpush2.msra.mxu0 0.0
        %1684 = vmatprep.subr.mxu0 0.0
        %1685 = vmatpush2.msra.mxu0 0.0
        %1686 = vmatprep.subr.mxu0 0.0
        %1687 = vmatpush2.msra.mxu0 0.0
        %1688 = vmatprep.subr.mxu0 0.0
        %1689 = vmatpush2.msra.mxu0 0.0
        %1690 = vmatprep.subr.mxu0 0.0
        %1691 = vmatpush2.msra.mxu0 0.0
        %1692 = vmatprep.subr.mxu0 0.0
        %1693 = vmatpush2.msra.mxu0 0.0
        %1694 = vmatprep.subr.mxu0 0.0
        %1695 = vmatpush2.msra.mxu0 0.0
        %1696 = vmatprep.subr.mxu0 0.0
        %1697 = vmatpush2.msra.mxu0 0.0
        %1698 = vmatprep.subr.mxu0 0.0
        %1699 = vmatpush2.msra.mxu0 0.0
        %1700 = vmatprep.subr.mxu0 0.0
        %1701 = vmatpush2.msra.mxu0 0.0
        %1702 = vmatprep.mubr.f32.mxu0 0.0
        %1703 = vmatmul.mubr.f32.gmra.mxu0 %v1635
        %v1704 = vpop.f32.mrf.mxu0
        %v1705 = vadd.f32 0.0, %v1704
        %v1706 = vpop.f32.mrf.mxu0
        %v1707 = vadd.f32 0.0, %v1706
        %1708 = vmatprep.mubr.f32.mxu0 0.0
        %1709 = vmatmul.mubr.f32.gmra.mxu0 %v1634
        %v1710 = vpop.f32.mrf.mxu0
        %v1711 = vadd.f32 0.0, %v1710
        %v1712 = vpop.f32.mrf.mxu0
        %v1713 = vadd.f32 0.0, %v1712
        %1714 = vdwg.mxu0
        %v1715 = vadd.f32 %v1589, %v1705
        %v1716 = vadd.f32 %v1591, %v1707
        %v1717 = vadd.f32 %v1595, %v1711
        %v1718 = vadd.f32 %v1597, %v1713
        %s1719 = scalar_lea.vmem [#allocation5], 768
        %v1720 = vld [vmem:[%s1719] sm:$0xff]
        %v1721 = vld [vmem:[%s1719 + $0x8] sm:$0xff]
        %v1722 = vld [vmem:[%s1719 + $0x10] sm:$0xff]
        %v1723 = vld [vmem:[%s1719 + $0x18] sm:$0xff]
        %v1724 = vld [vmem:[%s1719 + $0x20] sm:$0xff]
        %v1725 = vld [vmem:[%s1719 + $0x28] sm:$0xff]
        %v1726 = vld [vmem:[%s1719 + $0x30] sm:$0xff]
        %v1727 = vld [vmem:[%s1719 + $0x38] sm:$0xff]
        %v1728 = vld [vmem:[%s1719 + $0x40] sm:$0xff]
        %v1729 = vld [vmem:[%s1719 + $0x48] sm:$0xff]
        %v1730 = vld [vmem:[%s1719 + $0x50] sm:$0xff]
        %v1731 = vld [vmem:[%s1719 + $0x58] sm:$0xff]
        %v1732 = vld [vmem:[%s1719 + $0x60] sm:$0xff]
        %v1733 = vld [vmem:[%s1719 + $0x68] sm:$0xff]
        %v1734 = vld [vmem:[%s1719 + $0x70] sm:$0xff]
        %v1735 = vld [vmem:[%s1719 + $0x78] sm:$0xff]
        %v1736 = vld [vmem:[%s1719 + $0x80] sm:$0xff]
        %v1737 = vld [vmem:[%s1719 + $0x88] sm:$0xff]
        %v1738 = vld [vmem:[%s1719 + $0x90] sm:$0xff]
        %v1739 = vld [vmem:[%s1719 + $0x98] sm:$0xff]
        %v1740 = vld [vmem:[%s1719 + $0xa0] sm:$0xff]
        %v1741 = vld [vmem:[%s1719 + $0xa8] sm:$0xff]
        %v1742 = vld [vmem:[%s1719 + $0xb0] sm:$0xff]
        %v1743 = vld [vmem:[%s1719 + $0xb8] sm:$0xff]
        %v1744 = vld [vmem:[%s1719 + $0xc0] sm:$0xff]
        %v1745 = vld [vmem:[%s1719 + $0xc8] sm:$0xff]
        %v1746 = vld [vmem:[%s1719 + $0xd0] sm:$0xff]
        %v1747 = vld [vmem:[%s1719 + $0xd8] sm:$0xff]
        %v1748 = vld [vmem:[%s1719 + $0xe0] sm:$0xff]
        %v1749 = vld [vmem:[%s1719 + $0xe8] sm:$0xff]
        %v1750 = vld [vmem:[%s1719 + $0xf0] sm:$0xff]
        %v1751 = vld [vmem:[%s1719 + $0xf8] sm:$0xff]
        %vm1752 = vcmask 1044480
        %v1753 = vrot.slane %v1370, 3
        %v1754 = vrot.slane %v1371, 3
        %v1755 = vsel %vm1752, %v1753, %v1754
        %1758 = vmatprep.subr.mxu0 %v1751
        %1759 = vmatpush1.msra.mxu0 %v1750
        %1760 = vmatprep.subr.mxu0 %v1749
        %1761 = vmatpush1.msra.mxu0 %v1748
        %1762 = vmatprep.subr.mxu0 %v1747
        %1763 = vmatpush1.msra.mxu0 %v1746
        %1764 = vmatprep.subr.mxu0 %v1745
        %1765 = vmatpush1.msra.mxu0 %v1744
        %1766 = vmatprep.subr.mxu0 %v1743
        %1767 = vmatpush1.msra.mxu0 %v1742
        %1768 = vmatprep.subr.mxu0 %v1741
        %1769 = vmatpush1.msra.mxu0 %v1740
        %1770 = vmatprep.subr.mxu0 %v1739
        %1771 = vmatpush1.msra.mxu0 %v1738
        %1772 = vmatprep.subr.mxu0 %v1737
        %1773 = vmatpush1.msra.mxu0 %v1736
        %1774 = vmatprep.subr.mxu0 %v1735
        %1775 = vmatpush1.msra.mxu0 %v1734
        %1776 = vmatprep.subr.mxu0 %v1733
        %1777 = vmatpush1.msra.mxu0 %v1732
        %1778 = vmatprep.subr.mxu0 %v1731
        %1779 = vmatpush1.msra.mxu0 %v1730
        %1780 = vmatprep.subr.mxu0 %v1729
        %1781 = vmatpush1.msra.mxu0 %v1728
        %1782 = vmatprep.subr.mxu0 %v1727
        %1783 = vmatpush1.msra.mxu0 %v1726
        %1784 = vmatprep.subr.mxu0 %v1725
        %1785 = vmatpush1.msra.mxu0 %v1724
        %1786 = vmatprep.subr.mxu0 %v1723
        %1787 = vmatpush1.msra.mxu0 %v1722
        %1788 = vmatprep.subr.mxu0 %v1721
        %1789 = vmatpush1.msra.mxu0 %v1720
        %1790 = vmatprep.subr.mxu0 0.0
        %1791 = vmatpush2.msra.mxu0 0.0
        %1792 = vmatprep.subr.mxu0 0.0
        %1793 = vmatpush2.msra.mxu0 0.0
        %1794 = vmatprep.subr.mxu0 0.0
        %1795 = vmatpush2.msra.mxu0 0.0
        %1796 = vmatprep.subr.mxu0 0.0
        %1797 = vmatpush2.msra.mxu0 0.0
        %1798 = vmatprep.subr.mxu0 0.0
        %1799 = vmatpush2.msra.mxu0 0.0
        %1800 = vmatprep.subr.mxu0 0.0
        %1801 = vmatpush2.msra.mxu0 0.0
        %1802 = vmatprep.subr.mxu0 0.0
        %1803 = vmatpush2.msra.mxu0 0.0
        %1804 = vmatprep.subr.mxu0 0.0
        %1805 = vmatpush2.msra.mxu0 0.0
        %1806 = vmatprep.subr.mxu0 0.0
        %1807 = vmatpush2.msra.mxu0 0.0
        %1808 = vmatprep.subr.mxu0 0.0
        %1809 = vmatpush2.msra.mxu0 0.0
        %1810 = vmatprep.subr.mxu0 0.0
        %1811 = vmatpush2.msra.mxu0 0.0
        %1812 = vmatprep.subr.mxu0 0.0
        %1813 = vmatpush2.msra.mxu0 0.0
        %1814 = vmatprep.subr.mxu0 0.0
        %1815 = vmatpush2.msra.mxu0 0.0
        %1816 = vmatprep.subr.mxu0 0.0
        %1817 = vmatpush2.msra.mxu0 0.0
        %1818 = vmatprep.subr.mxu0 0.0
        %1819 = vmatpush2.msra.mxu0 0.0
        %1820 = vmatprep.subr.mxu0 0.0
        %1821 = vmatpush2.msra.mxu0 0.0
        %1822 = vmatprep.mubr.f32.mxu0 0.0
        %1823 = vmatmul.mubr.f32.gmra.mxu0 %v1755
        %v1824 = vpop.f32.mrf.mxu0
        %v1825 = vadd.f32 0.0, %v1824
        %v1826 = vpop.f32.mrf.mxu0
        %v1827 = vadd.f32 0.0, %v1826
        %1828 = vmatprep.mubr.f32.mxu0 0.0
        %1829 = vmatmul.mubr.f32.gmra.mxu0 %v1754
        %v1830 = vpop.f32.mrf.mxu0
        %v1831 = vadd.f32 0.0, %v1830
        %v1832 = vpop.f32.mrf.mxu0
        %v1833 = vadd.f32 0.0, %v1832
        %1834 = vdwg.mxu0
        %v1835 = vadd.f32 %v1715, %v1825
        %v1836 = vadd.f32 %v1716, %v1827
        %v1837 = vadd.f32 %v1717, %v1831
        %v1838 = vadd.f32 %v1718, %v1833
        %s1839 = scalar_lea.vmem [#allocation5], 1024
        %v1840 = vld [vmem:[%s1839] sm:$0xff]
        %v1841 = vld [vmem:[%s1839 + $0x8] sm:$0xff]
        %v1842 = vld [vmem:[%s1839 + $0x10] sm:$0xff]
        %v1843 = vld [vmem:[%s1839 + $0x18] sm:$0xff]
        %v1844 = vld [vmem:[%s1839 + $0x20] sm:$0xff]
        %v1845 = vld [vmem:[%s1839 + $0x28] sm:$0xff]
        %v1846 = vld [vmem:[%s1839 + $0x30] sm:$0xff]
        %v1847 = vld [vmem:[%s1839 + $0x38] sm:$0xff]
        %v1848 = vld [vmem:[%s1839 + $0x40] sm:$0xff]
        %v1849 = vld [vmem:[%s1839 + $0x48] sm:$0xff]
        %v1850 = vld [vmem:[%s1839 + $0x50] sm:$0xff]
        %v1851 = vld [vmem:[%s1839 + $0x58] sm:$0xff]
        %v1852 = vld [vmem:[%s1839 + $0x60] sm:$0xff]
        %v1853 = vld [vmem:[%s1839 + $0x68] sm:$0xff]
        %v1854 = vld [vmem:[%s1839 + $0x70] sm:$0xff]
        %v1855 = vld [vmem:[%s1839 + $0x78] sm:$0xff]
        %v1856 = vld [vmem:[%s1839 + $0x80] sm:$0xff]
        %v1857 = vld [vmem:[%s1839 + $0x88] sm:$0xff]
        %v1858 = vld [vmem:[%s1839 + $0x90] sm:$0xff]
        %v1859 = vld [vmem:[%s1839 + $0x98] sm:$0xff]
        %v1860 = vld [vmem:[%s1839 + $0xa0] sm:$0xff]
        %v1861 = vld [vmem:[%s1839 + $0xa8] sm:$0xff]
        %v1862 = vld [vmem:[%s1839 + $0xb0] sm:$0xff]
        %v1863 = vld [vmem:[%s1839 + $0xb8] sm:$0xff]
        %v1864 = vld [vmem:[%s1839 + $0xc0] sm:$0xff]
        %v1865 = vld [vmem:[%s1839 + $0xc8] sm:$0xff]
        %v1866 = vld [vmem:[%s1839 + $0xd0] sm:$0xff]
        %v1867 = vld [vmem:[%s1839 + $0xd8] sm:$0xff]
        %v1868 = vld [vmem:[%s1839 + $0xe0] sm:$0xff]
        %v1869 = vld [vmem:[%s1839 + $0xe8] sm:$0xff]
        %v1870 = vld [vmem:[%s1839 + $0xf0] sm:$0xff]
        %v1871 = vld [vmem:[%s1839 + $0xf8] sm:$0xff]
        %v1872 = vrot.slane %v1370, 4
        %v1873 = vrot.slane %v1371, 4
        %v1874 = vsel %vm1207, %v1872, %v1873
        %1877 = vmatprep.subr.mxu0 %v1871
        %1878 = vmatpush1.msra.mxu0 %v1870
        %1879 = vmatprep.subr.mxu0 %v1869
        %1880 = vmatpush1.msra.mxu0 %v1868
        %1881 = vmatprep.subr.mxu0 %v1867
        %1882 = vmatpush1.msra.mxu0 %v1866
        %1883 = vmatprep.subr.mxu0 %v1865
        %1884 = vmatpush1.msra.mxu0 %v1864
        %1885 = vmatprep.subr.mxu0 %v1863
        %1886 = vmatpush1.msra.mxu0 %v1862
        %1887 = vmatprep.subr.mxu0 %v1861
        %1888 = vmatpush1.msra.mxu0 %v1860
        %1889 = vmatprep.subr.mxu0 %v1859
        %1890 = vmatpush1.msra.mxu0 %v1858
        %1891 = vmatprep.subr.mxu0 %v1857
        %1892 = vmatpush1.msra.mxu0 %v1856
        %1893 = vmatprep.subr.mxu0 %v1855
        %1894 = vmatpush1.msra.mxu0 %v1854
        %1895 = vmatprep.subr.mxu0 %v1853
        %1896 = vmatpush1.msra.mxu0 %v1852
        %1897 = vmatprep.subr.mxu0 %v1851
        %1898 = vmatpush1.msra.mxu0 %v1850
        %1899 = vmatprep.subr.mxu0 %v1849
        %1900 = vmatpush1.msra.mxu0 %v1848
        %1901 = vmatprep.subr.mxu0 %v1847
        %1902 = vmatpush1.msra.mxu0 %v1846
        %1903 = vmatprep.subr.mxu0 %v1845
        %1904 = vmatpush1.msra.mxu0 %v1844
        %1905 = vmatprep.subr.mxu0 %v1843
        %1906 = vmatpush1.msra.mxu0 %v1842
        %1907 = vmatprep.subr.mxu0 %v1841
        %1908 = vmatpush1.msra.mxu0 %v1840
        %1909 = vmatprep.subr.mxu0 0.0
        %1910 = vmatpush2.msra.mxu0 0.0
        %1911 = vmatprep.subr.mxu0 0.0
        %1912 = vmatpush2.msra.mxu0 0.0
        %1913 = vmatprep.subr.mxu0 0.0
        %1914 = vmatpush2.msra.mxu0 0.0
        %1915 = vmatprep.subr.mxu0 0.0
        %1916 = vmatpush2.msra.mxu0 0.0
        %1917 = vmatprep.subr.mxu0 0.0
        %1918 = vmatpush2.msra.mxu0 0.0
        %1919 = vmatprep.subr.mxu0 0.0
        %1920 = vmatpush2.msra.mxu0 0.0
        %1921 = vmatprep.subr.mxu0 0.0
        %1922 = vmatpush2.msra.mxu0 0.0
        %1923 = vmatprep.subr.mxu0 0.0
        %1924 = vmatpush2.msra.mxu0 0.0
        %1925 = vmatprep.subr.mxu0 0.0
        %1926 = vmatpush2.msra.mxu0 0.0
        %1927 = vmatprep.subr.mxu0 0.0
        %1928 = vmatpush2.msra.mxu0 0.0
        %1929 = vmatprep.subr.mxu0 0.0
        %1930 = vmatpush2.msra.mxu0 0.0
        %1931 = vmatprep.subr.mxu0 0.0
        %1932 = vmatpush2.msra.mxu0 0.0
        %1933 = vmatprep.subr.mxu0 0.0
        %1934 = vmatpush2.msra.mxu0 0.0
        %1935 = vmatprep.subr.mxu0 0.0
        %1936 = vmatpush2.msra.mxu0 0.0
        %1937 = vmatprep.subr.mxu0 0.0
        %1938 = vmatpush2.msra.mxu0 0.0
        %1939 = vmatprep.subr.mxu0 0.0
        %1940 = vmatpush2.msra.mxu0 0.0
        %1941 = vmatprep.mubr.f32.mxu0 0.0
        %1942 = vmatmul.mubr.f32.gmra.mxu0 %v1874
        %v1943 = vpop.f32.mrf.mxu0
        %v1944 = vadd.f32 0.0, %v1943
        %v1945 = vpop.f32.mrf.mxu0
        %v1946 = vadd.f32 0.0, %v1945
        %1947 = vmatprep.mubr.f32.mxu0 0.0
        %1948 = vmatmul.mubr.f32.gmra.mxu0 %v1873
        %v1949 = vpop.f32.mrf.mxu0
        %v1950 = vadd.f32 0.0, %v1949
        %v1951 = vpop.f32.mrf.mxu0
        %v1952 = vadd.f32 0.0, %v1951
        %1953 = vdwg.mxu0
        %v1954 = vadd.f32 %v1835, %v1944
        %v1955 = vadd.f32 %v1836, %v1946
        %v1956 = vadd.f32 %v1837, %v1950
        %v1957 = vadd.f32 %v1838, %v1952
        %v1958 = vld [vmem:[%s5] sm:$0x1]
        %v1960 = vlaneseq
        %v1961 = vshrl.u32 %v1960, 7
        %v1962 = vsub.s32 0, %v1961
        %v1963 = vrot.slane %v1958, %v1962
        %v1965 = vadd.f32 %v1954, %v1963
        %v1966 = vadd.f32 %v1956, %v1963
        %v1967 = vmax.f32 %v1965, 0.0
        %v1968 = vmax.f32 %v1966, 0.0
        %v1969 = vadd.f32 %v1955, %v1963
        %v1970 = vadd.f32 %v1957, %v1963
        %v1971 = vmax.f32 %v1969, 0.0
        %v1972 = vmax.f32 %v1970, 0.0
        %v1973 = vmax.f32 %v1967, %v1971
        %v1974 = vmax.f32 %v1968, %v1972
        %v1975 = vld [vmem:[%s6] sm:$0x1f]
        %vm1976 = vcmask 80896
        %v1978 = vsel %vm1976, %v1975, 0
        %vm1980 = vcmask 1041408
        %v1982 = vsel %vm1980, %v1974, 0
        %1984 = vmatprep.subr.mxu0 0.0
        %1985 = vmatpush1.msra.mxu0 0.0
        %1986 = vmatprep.subr.mxu0 0.0
        %1987 = vmatpush1.msra.mxu0 0.0
        %1988 = vmatprep.subr.mxu0 0.0
        %1989 = vmatpush1.msra.mxu0 0.0
        %1990 = vmatprep.subr.mxu0 0.0
        %1991 = vmatpush1.msra.mxu0 0.0
        %1992 = vmatprep.subr.mxu0 0.0
        %1993 = vmatpush1.msra.mxu0 0.0
        %1994 = vmatprep.subr.mxu0 0.0
        %1995 = vmatpush1.msra.mxu0 0.0
        %1996 = vmatprep.subr.mxu0 0.0
        %1997 = vmatpush1.msra.mxu0 0.0
        %1998 = vmatprep.subr.mxu0 0.0
        %1999 = vmatpush1.msra.mxu0 0.0
        %2000 = vmatprep.subr.mxu0 0.0
        %2001 = vmatpush1.msra.mxu0 0.0
        %2002 = vmatprep.subr.mxu0 0.0
        %2003 = vmatpush1.msra.mxu0 0.0
        %2004 = vmatprep.subr.mxu0 0.0
        %2005 = vmatpush1.msra.mxu0 0.0
        %2006 = vmatprep.subr.mxu0 0.0
        %2007 = vmatpush1.msra.mxu0 0.0
        %2008 = vmatprep.subr.mxu0 0.0
        %2009 = vmatpush1.msra.mxu0 0.0
        %2010 = vmatprep.subr.mxu0 0.0
        %2011 = vmatpush1.msra.mxu0 0.0
        %2012 = vmatprep.subr.mxu0 0.0
        %2013 = vmatpush1.msra.mxu0 %v1982
        %2014 = vmatprep.subr.mxu0 0.0
        %2015 = vmatpush1.msra.mxu0 %v1973
        %2016 = vmatprep.subr.mxu0 0.0
        %2017 = vmatpush2.msra.mxu0 0.0
        %2018 = vmatprep.subr.mxu0 0.0
        %2019 = vmatpush2.msra.mxu0 0.0
        %2020 = vmatprep.subr.mxu0 0.0
        %2021 = vmatpush2.msra.mxu0 0.0
        %2022 = vmatprep.subr.mxu0 0.0
        %2023 = vmatpush2.msra.mxu0 0.0
        %2024 = vmatprep.subr.mxu0 0.0
        %2025 = vmatpush2.msra.mxu0 0.0
        %2026 = vmatprep.subr.mxu0 0.0
        %2027 = vmatpush2.msra.mxu0 0.0
        %2028 = vmatprep.subr.mxu0 0.0
        %2029 = vmatpush2.msra.mxu0 0.0
        %2030 = vmatprep.subr.mxu0 0.0
        %2031 = vmatpush2.msra.mxu0 0.0
        %2032 = vmatprep.subr.mxu0 0.0
        %2033 = vmatpush2.msra.mxu0 0.0
        %2034 = vmatprep.subr.mxu0 0.0
        %2035 = vmatpush2.msra.mxu0 0.0
        %2036 = vmatprep.subr.mxu0 0.0
        %2037 = vmatpush2.msra.mxu0 0.0
        %2038 = vmatprep.subr.mxu0 0.0
        %2039 = vmatpush2.msra.mxu0 0.0
        %2040 = vmatprep.subr.mxu0 0.0
        %2041 = vmatpush2.msra.mxu0 0.0
        %2042 = vmatprep.subr.mxu0 0.0
        %2043 = vmatpush2.msra.mxu0 0.0
        %2044 = vmatprep.subr.mxu0 0.0
        %2045 = vmatpush2.msra.mxu0 0.0
        %2046 = vmatprep.subr.mxu0 0.0
        %2047 = vmatpush2.msra.mxu0 0.0
        %2048 = vmatprep.mubr.f32.mxu0 0.0
        %2049 = vmatmul.mubr.f32.gmra.mxu0 %v1978
        %v2050 = vpop.f32.mrf.mxu0
        %v2051 = vadd.f32 0.0, %v2050
        %v2052 = vpop.f32.mrf.mxu0
        %2053 = vdwg.mxu0
        %s2054 = scalar_lea.vmem %s6, 8
        %v2055 = vld [vmem:[%s2054] sm:$0x1f]
        %v2057 = vsel %vm1976, %v2055, 0
        %2059 = vmatprep.subr.mxu0 0.0
        %2060 = vmatpush1.msra.mxu0 0.0
        %2061 = vmatprep.subr.mxu0 0.0
        %2062 = vmatpush1.msra.mxu0 0.0
        %2063 = vmatprep.subr.mxu0 0.0
        %2064 = vmatpush1.msra.mxu0 0.0
        %2065 = vmatprep.subr.mxu0 0.0
        %2066 = vmatpush1.msra.mxu0 0.0
        %2067 = vmatprep.subr.mxu0 0.0
        %2068 = vmatpush1.msra.mxu0 0.0
        %2069 = vmatprep.subr.mxu0 0.0
        %2070 = vmatpush1.msra.mxu0 0.0
        %2071 = vmatprep.subr.mxu0 0.0
        %2072 = vmatpush1.msra.mxu0 0.0
        %2073 = vmatprep.subr.mxu0 0.0
        %2074 = vmatpush1.msra.mxu0 0.0
        %2075 = vmatprep.subr.mxu0 0.0
        %2076 = vmatpush1.msra.mxu0 0.0
        %2077 = vmatprep.subr.mxu0 0.0
        %2078 = vmatpush1.msra.mxu0 0.0
        %2079 = vmatprep.subr.mxu0 0.0
        %2080 = vmatpush1.msra.mxu0 0.0
        %2081 = vmatprep.subr.mxu0 0.0
        %2082 = vmatpush1.msra.mxu0 0.0
        %2083 = vmatprep.subr.mxu0 0.0
        %2084 = vmatpush1.msra.mxu0 0.0
        %2085 = vmatprep.subr.mxu0 0.0
        %2086 = vmatpush1.msra.mxu0 0.0
        %2087 = vmatprep.subr.mxu0 0.0
        %2088 = vmatpush1.msra.mxu0 %v1982
        %2089 = vmatprep.subr.mxu0 0.0
        %2090 = vmatpush1.msra.mxu0 %v1973
        %2091 = vmatprep.subr.mxu0 0.0
        %2092 = vmatpush2.msra.mxu0 0.0
        %2093 = vmatprep.subr.mxu0 0.0
        %2094 = vmatpush2.msra.mxu0 0.0
        %2095 = vmatprep.subr.mxu0 0.0
        %2096 = vmatpush2.msra.mxu0 0.0
        %2097 = vmatprep.subr.mxu0 0.0
        %2098 = vmatpush2.msra.mxu0 0.0
        %2099 = vmatprep.subr.mxu0 0.0
        %2100 = vmatpush2.msra.mxu0 0.0
        %2101 = vmatprep.subr.mxu0 0.0
        %2102 = vmatpush2.msra.mxu0 0.0
        %2103 = vmatprep.subr.mxu0 0.0
        %2104 = vmatpush2.msra.mxu0 0.0
        %2105 = vmatprep.subr.mxu0 0.0
        %2106 = vmatpush2.msra.mxu0 0.0
        %2107 = vmatprep.subr.mxu0 0.0
        %2108 = vmatpush2.msra.mxu0 0.0
        %2109 = vmatprep.subr.mxu0 0.0
        %2110 = vmatpush2.msra.mxu0 0.0
        %2111 = vmatprep.subr.mxu0 0.0
        %2112 = vmatpush2.msra.mxu0 0.0
        %2113 = vmatprep.subr.mxu0 0.0
        %2114 = vmatpush2.msra.mxu0 0.0
        %2115 = vmatprep.subr.mxu0 0.0
        %2116 = vmatpush2.msra.mxu0 0.0
        %2117 = vmatprep.subr.mxu0 0.0
        %2118 = vmatpush2.msra.mxu0 0.0
        %2119 = vmatprep.subr.mxu0 0.0
        %2120 = vmatpush2.msra.mxu0 0.0
        %2121 = vmatprep.subr.mxu0 0.0
        %2122 = vmatpush2.msra.mxu0 0.0
        %2123 = vmatprep.mubr.f32.mxu0 0.0
        %2124 = vmatmul.mubr.f32.gmra.mxu0 %v2057
        %v2125 = vpop.f32.mrf.mxu0
        %v2126 = vadd.f32 0.0, %v2125
        %v2127 = vpop.f32.mrf.mxu0
        %2128 = vdwg.mxu0
        %v2129 = vmax.f32 %v2051, %v2126
        %v2130 = vld [vmem:[%s8] sm:$0x1]
        %v2131 = vld [vmem:[%s7] sm:$0xff]
        %v2132 = vld [vmem:[%s7 + $0x8] sm:$0xff]
        %v2133 = vld [vmem:[%s7 + $0x10] sm:$0xff]
        %v2134 = vld [vmem:[%s7 + $0x18] sm:$0xff]
        %v2135 = vld [vmem:[%s7 + $0x20] sm:$0xff]
        %v2136 = vld [vmem:[%s7 + $0x28] sm:$0xff]
        %v2137 = vld [vmem:[%s7 + $0x30] sm:$0xff]
        %v2138 = vld [vmem:[%s7 + $0x38] sm:$0xff]
        %v2139 = vld [vmem:[%s7 + $0x40] sm:$0xff]
        %v2140 = vld [vmem:[%s7 + $0x48] sm:$0xff]
        %v2141 = vld [vmem:[%s7 + $0x50] sm:$0xff]
        %v2142 = vld [vmem:[%s7 + $0x58] sm:$0xff]
        %v2143 = vld [vmem:[%s7 + $0x60] sm:$0xff]
        %v2144 = vld [vmem:[%s7 + $0x68] sm:$0xff]
        %v2145 = vld [vmem:[%s7 + $0x70] sm:$0xff]
        %v2146 = vld [vmem:[%s7 + $0x78] sm:$0xff]
        %2147 = vmatprep.subr.mxu0 0.0
        %2148 = vmatpush1.msra.mxu0 %v2146
        %2149 = vmatprep.subr.mxu0 0.0
        %2150 = vmatpush1.msra.mxu0 %v2145
        %2151 = vmatprep.subr.mxu0 0.0
        %2152 = vmatpush1.msra.mxu0 %v2144
        %2153 = vmatprep.subr.mxu0 0.0
        %2154 = vmatpush1.msra.mxu0 %v2143
        %2155 = vmatprep.subr.mxu0 0.0
        %2156 = vmatpush1.msra.mxu0 %v2142
        %2157 = vmatprep.subr.mxu0 0.0
        %2158 = vmatpush1.msra.mxu0 %v2141
        %2159 = vmatprep.subr.mxu0 0.0
        %2160 = vmatpush1.msra.mxu0 %v2140
        %2161 = vmatprep.subr.mxu0 0.0
        %2162 = vmatpush1.msra.mxu0 %v2139
        %2163 = vmatprep.subr.mxu0 0.0
        %2164 = vmatpush1.msra.mxu0 %v2138
        %2165 = vmatprep.subr.mxu0 0.0
        %2166 = vmatpush1.msra.mxu0 %v2137
        %2167 = vmatprep.subr.mxu0 0.0
        %2168 = vmatpush1.msra.mxu0 %v2136
        %2169 = vmatprep.subr.mxu0 0.0
        %2170 = vmatpush1.msra.mxu0 %v2135
        %2171 = vmatprep.subr.mxu0 0.0
        %2172 = vmatpush1.msra.mxu0 %v2134
        %2173 = vmatprep.subr.mxu0 0.0
        %2174 = vmatpush1.msra.mxu0 %v2133
        %2175 = vmatprep.subr.mxu0 0.0
        %2176 = vmatpush1.msra.mxu0 %v2132
        %2177 = vmatprep.subr.mxu0 0.0
        %2178 = vmatpush1.msra.mxu0 %v2131
        %2179 = vmatprep.subr.mxu0 0.0
        %2180 = vmatpush2.msra.mxu0 0.0
        %2181 = vmatprep.subr.mxu0 0.0
        %2182 = vmatpush2.msra.mxu0 0.0
        %2183 = vmatprep.subr.mxu0 0.0
        %2184 = vmatpush2.msra.mxu0 0.0
        %2185 = vmatprep.subr.mxu0 0.0
        %2186 = vmatpush2.msra.mxu0 0.0
        %2187 = vmatprep.subr.mxu0 0.0
        %2188 = vmatpush2.msra.mxu0 0.0
        %2189 = vmatprep.subr.mxu0 0.0
        %2190 = vmatpush2.msra.mxu0 0.0
        %2191 = vmatprep.subr.mxu0 0.0
        %2192 = vmatpush2.msra.mxu0 0.0
        %2193 = vmatprep.subr.mxu0 0.0
        %2194 = vmatpush2.msra.mxu0 0.0
        %2195 = vmatprep.subr.mxu0 0.0
        %2196 = vmatpush2.msra.mxu0 0.0
        %2197 = vmatprep.subr.mxu0 0.0
        %2198 = vmatpush2.msra.mxu0 0.0
        %2199 = vmatprep.subr.mxu0 0.0
        %2200 = vmatpush2.msra.mxu0 0.0
        %2201 = vmatprep.subr.mxu0 0.0
        %2202 = vmatpush2.msra.mxu0 0.0
        %2203 = vmatprep.subr.mxu0 0.0
        %2204 = vmatpush2.msra.mxu0 0.0
        %2205 = vmatprep.subr.mxu0 0.0
        %2206 = vmatpush2.msra.mxu0 0.0
        %2207 = vmatprep.subr.mxu0 0.0
        %2208 = vmatpush2.msra.mxu0 0.0
        %2209 = vmatprep.subr.mxu0 0.0
        %2210 = vmatpush2.msra.mxu0 0.0
        %2211 = vmatprep.mubr.f32.mxu0 0.0
        %2212 = vmatmul.mubr.f32.gmra.mxu0 %v2129
        %v2213 = vpop.f32.mrf.mxu0
        %v2214 = vadd.f32 0.0, %v2213
        %v2215 = vpop.f32.mrf.mxu0
        %2216 = vdwg.mxu0
        %v2217 = vadd.f32 %v2130, %v2214
        %s2218 = scalar_lea.vmem %s7, 128
        %v2219 = vld [vmem:[%s2218] sm:$0xff]
        %v2220 = vld [vmem:[%s2218 + $0x8] sm:$0xff]
        %v2221 = vld [vmem:[%s2218 + $0x10] sm:$0xff]
        %v2222 = vld [vmem:[%s2218 + $0x18] sm:$0xff]
        %v2223 = vld [vmem:[%s2218 + $0x20] sm:$0xff]
        %v2224 = vld [vmem:[%s2218 + $0x28] sm:$0xff]
        %v2225 = vld [vmem:[%s2218 + $0x30] sm:$0xff]
        %v2226 = vld [vmem:[%s2218 + $0x38] sm:$0xff]
        %v2227 = vld [vmem:[%s2218 + $0x40] sm:$0xff]
        %v2228 = vld [vmem:[%s2218 + $0x48] sm:$0xff]
        %v2229 = vld [vmem:[%s2218 + $0x50] sm:$0xff]
        %v2230 = vld [vmem:[%s2218 + $0x58] sm:$0xff]
        %v2231 = vld [vmem:[%s2218 + $0x60] sm:$0xff]
        %v2232 = vld [vmem:[%s2218 + $0x68] sm:$0xff]
        %v2233 = vld [vmem:[%s2218 + $0x70] sm:$0xff]
        %v2234 = vld [vmem:[%s2218 + $0x78] sm:$0xff]
        %v2236 = vrot.slane %v2129, 1
        %2238 = vmatprep.subr.mxu0 0.0
        %2239 = vmatpush1.msra.mxu0 %v2234
        %2240 = vmatprep.subr.mxu0 0.0
        %2241 = vmatpush1.msra.mxu0 %v2233
        %2242 = vmatprep.subr.mxu0 0.0
        %2243 = vmatpush1.msra.mxu0 %v2232
        %2244 = vmatprep.subr.mxu0 0.0
        %2245 = vmatpush1.msra.mxu0 %v2231
        %2246 = vmatprep.subr.mxu0 0.0
        %2247 = vmatpush1.msra.mxu0 %v2230
        %2248 = vmatprep.subr.mxu0 0.0
        %2249 = vmatpush1.msra.mxu0 %v2229
        %2250 = vmatprep.subr.mxu0 0.0
        %2251 = vmatpush1.msra.mxu0 %v2228
        %2252 = vmatprep.subr.mxu0 0.0
        %2253 = vmatpush1.msra.mxu0 %v2227
        %2254 = vmatprep.subr.mxu0 0.0
        %2255 = vmatpush1.msra.mxu0 %v2226
        %2256 = vmatprep.subr.mxu0 0.0
        %2257 = vmatpush1.msra.mxu0 %v2225
        %2258 = vmatprep.subr.mxu0 0.0
        %2259 = vmatpush1.msra.mxu0 %v2224
        %2260 = vmatprep.subr.mxu0 0.0
        %2261 = vmatpush1.msra.mxu0 %v2223
        %2262 = vmatprep.subr.mxu0 0.0
        %2263 = vmatpush1.msra.mxu0 %v2222
        %2264 = vmatprep.subr.mxu0 0.0
        %2265 = vmatpush1.msra.mxu0 %v2221
        %2266 = vmatprep.subr.mxu0 0.0
        %2267 = vmatpush1.msra.mxu0 %v2220
        %2268 = vmatprep.subr.mxu0 0.0
        %2269 = vmatpush1.msra.mxu0 %v2219
        %2270 = vmatprep.subr.mxu0 0.0
        %2271 = vmatpush2.msra.mxu0 0.0
        %2272 = vmatprep.subr.mxu0 0.0
        %2273 = vmatpush2.msra.mxu0 0.0
        %2274 = vmatprep.subr.mxu0 0.0
        %2275 = vmatpush2.msra.mxu0 0.0
        %2276 = vmatprep.subr.mxu0 0.0
        %2277 = vmatpush2.msra.mxu0 0.0
        %2278 = vmatprep.subr.mxu0 0.0
        %2279 = vmatpush2.msra.mxu0 0.0
        %2280 = vmatprep.subr.mxu0 0.0
        %2281 = vmatpush2.msra.mxu0 0.0
        %2282 = vmatprep.subr.mxu0 0.0
        %2283 = vmatpush2.msra.mxu0 0.0
        %2284 = vmatprep.subr.mxu0 0.0
        %2285 = vmatpush2.msra.mxu0 0.0
        %2286 = vmatprep.subr.mxu0 0.0
        %2287 = vmatpush2.msra.mxu0 0.0
        %2288 = vmatprep.subr.mxu0 0.0
        %2289 = vmatpush2.msra.mxu0 0.0
        %2290 = vmatprep.subr.mxu0 0.0
        %2291 = vmatpush2.msra.mxu0 0.0
        %2292 = vmatprep.subr.mxu0 0.0
        %2293 = vmatpush2.msra.mxu0 0.0
        %2294 = vmatprep.subr.mxu0 0.0
        %2295 = vmatpush2.msra.mxu0 0.0
        %2296 = vmatprep.subr.mxu0 0.0
        %2297 = vmatpush2.msra.mxu0 0.0
        %2298 = vmatprep.subr.mxu0 0.0
        %2299 = vmatpush2.msra.mxu0 0.0
        %2300 = vmatprep.subr.mxu0 0.0
        %2301 = vmatpush2.msra.mxu0 0.0
        %2302 = vmatprep.mubr.f32.mxu0 0.0
        %2303 = vmatmul.mubr.f32.gmra.mxu0 %v2236
        %v2304 = vpop.f32.mrf.mxu0
        %v2305 = vadd.f32 0.0, %v2304
        %v2306 = vpop.f32.mrf.mxu0
        %2307 = vdwg.mxu0
        %v2308 = vadd.f32 %v2217, %v2305
        %s2309 = scalar_lea.vmem %s7, 256
        %v2310 = vld [vmem:[%s2309] sm:$0xff]
        %v2311 = vld [vmem:[%s2309 + $0x8] sm:$0xff]
        %v2312 = vld [vmem:[%s2309 + $0x10] sm:$0xff]
        %v2313 = vld [vmem:[%s2309 + $0x18] sm:$0xff]
        %v2314 = vld [vmem:[%s2309 + $0x20] sm:$0xff]
        %v2315 = vld [vmem:[%s2309 + $0x28] sm:$0xff]
        %v2316 = vld [vmem:[%s2309 + $0x30] sm:$0xff]
        %v2317 = vld [vmem:[%s2309 + $0x38] sm:$0xff]
        %v2318 = vld [vmem:[%s2309 + $0x40] sm:$0xff]
        %v2319 = vld [vmem:[%s2309 + $0x48] sm:$0xff]
        %v2320 = vld [vmem:[%s2309 + $0x50] sm:$0xff]
        %v2321 = vld [vmem:[%s2309 + $0x58] sm:$0xff]
        %v2322 = vld [vmem:[%s2309 + $0x60] sm:$0xff]
        %v2323 = vld [vmem:[%s2309 + $0x68] sm:$0xff]
        %v2324 = vld [vmem:[%s2309 + $0x70] sm:$0xff]
        %v2325 = vld [vmem:[%s2309 + $0x78] sm:$0xff]
        %v2326 = vrot.slane %v2129, 2
        %2328 = vmatprep.subr.mxu0 0.0
        %2329 = vmatpush1.msra.mxu0 %v2325
        %2330 = vmatprep.subr.mxu0 0.0
        %2331 = vmatpush1.msra.mxu0 %v2324
        %2332 = vmatprep.subr.mxu0 0.0
        %2333 = vmatpush1.msra.mxu0 %v2323
        %2334 = vmatprep.subr.mxu0 0.0
        %2335 = vmatpush1.msra.mxu0 %v2322
        %2336 = vmatprep.subr.mxu0 0.0
        %2337 = vmatpush1.msra.mxu0 %v2321
        %2338 = vmatprep.subr.mxu0 0.0
        %2339 = vmatpush1.msra.mxu0 %v2320
        %2340 = vmatprep.subr.mxu0 0.0
        %2341 = vmatpush1.msra.mxu0 %v2319
        %2342 = vmatprep.subr.mxu0 0.0
        %2343 = vmatpush1.msra.mxu0 %v2318
        %2344 = vmatprep.subr.mxu0 0.0
        %2345 = vmatpush1.msra.mxu0 %v2317
        %2346 = vmatprep.subr.mxu0 0.0
        %2347 = vmatpush1.msra.mxu0 %v2316
        %2348 = vmatprep.subr.mxu0 0.0
        %2349 = vmatpush1.msra.mxu0 %v2315
        %2350 = vmatprep.subr.mxu0 0.0
        %2351 = vmatpush1.msra.mxu0 %v2314
        %2352 = vmatprep.subr.mxu0 0.0
        %2353 = vmatpush1.msra.mxu0 %v2313
        %2354 = vmatprep.subr.mxu0 0.0
        %2355 = vmatpush1.msra.mxu0 %v2312
        %2356 = vmatprep.subr.mxu0 0.0
        %2357 = vmatpush1.msra.mxu0 %v2311
        %2358 = vmatprep.subr.mxu0 0.0
        %2359 = vmatpush1.msra.mxu0 %v2310
        %2360 = vmatprep.subr.mxu0 0.0
        %2361 = vmatpush2.msra.mxu0 0.0
        %2362 = vmatprep.subr.mxu0 0.0
        %2363 = vmatpush2.msra.mxu0 0.0
        %2364 = vmatprep.subr.mxu0 0.0
        %2365 = vmatpush2.msra.mxu0 0.0
        %2366 = vmatprep.subr.mxu0 0.0
        %2367 = vmatpush2.msra.mxu0 0.0
        %2368 = vmatprep.subr.mxu0 0.0
        %2369 = vmatpush2.msra.mxu0 0.0
        %2370 = vmatprep.subr.mxu0 0.0
        %2371 = vmatpush2.msra.mxu0 0.0
        %2372 = vmatprep.subr.mxu0 0.0
        %2373 = vmatpush2.msra.mxu0 0.0
        %2374 = vmatprep.subr.mxu0 0.0
        %2375 = vmatpush2.msra.mxu0 0.0
        %2376 = vmatprep.subr.mxu0 0.0
        %2377 = vmatpush2.msra.mxu0 0.0
        %2378 = vmatprep.subr.mxu0 0.0
        %2379 = vmatpush2.msra.mxu0 0.0
        %2380 = vmatprep.subr.mxu0 0.0
        %2381 = vmatpush2.msra.mxu0 0.0
        %2382 = vmatprep.subr.mxu0 0.0
        %2383 = vmatpush2.msra.mxu0 0.0
        %2384 = vmatprep.subr.mxu0 0.0
        %2385 = vmatpush2.msra.mxu0 0.0
        %2386 = vmatprep.subr.mxu0 0.0
        %2387 = vmatpush2.msra.mxu0 0.0
        %2388 = vmatprep.subr.mxu0 0.0
        %2389 = vmatpush2.msra.mxu0 0.0
        %2390 = vmatprep.subr.mxu0 0.0
        %2391 = vmatpush2.msra.mxu0 0.0
        %2392 = vmatprep.mubr.f32.mxu0 0.0
        %2393 = vmatmul.mubr.f32.gmra.mxu0 %v2326
        %v2394 = vpop.f32.mrf.mxu0
        %v2395 = vadd.f32 0.0, %v2394
        %v2396 = vpop.f32.mrf.mxu0
        %2397 = vdwg.mxu0
        %v2398 = vadd.f32 %v2308, %v2395
        %s2399 = scalar_lea.vmem %s7, 384
        %v2400 = vld [vmem:[%s2399] sm:$0xff]
        %v2401 = vld [vmem:[%s2399 + $0x8] sm:$0xff]
        %v2402 = vld [vmem:[%s2399 + $0x10] sm:$0xff]
        %v2403 = vld [vmem:[%s2399 + $0x18] sm:$0xff]
        %v2404 = vld [vmem:[%s2399 + $0x20] sm:$0xff]
        %v2405 = vld [vmem:[%s2399 + $0x28] sm:$0xff]
        %v2406 = vld [vmem:[%s2399 + $0x30] sm:$0xff]
        %v2407 = vld [vmem:[%s2399 + $0x38] sm:$0xff]
        %v2408 = vld [vmem:[%s2399 + $0x40] sm:$0xff]
        %v2409 = vld [vmem:[%s2399 + $0x48] sm:$0xff]
        %v2410 = vld [vmem:[%s2399 + $0x50] sm:$0xff]
        %v2411 = vld [vmem:[%s2399 + $0x58] sm:$0xff]
        %v2412 = vld [vmem:[%s2399 + $0x60] sm:$0xff]
        %v2413 = vld [vmem:[%s2399 + $0x68] sm:$0xff]
        %v2414 = vld [vmem:[%s2399 + $0x70] sm:$0xff]
        %v2415 = vld [vmem:[%s2399 + $0x78] sm:$0xff]
        %v2416 = vrot.slane %v2129, 3
        %2418 = vmatprep.subr.mxu0 0.0
        %2419 = vmatpush1.msra.mxu0 %v2415
        %2420 = vmatprep.subr.mxu0 0.0
        %2421 = vmatpush1.msra.mxu0 %v2414
        %2422 = vmatprep.subr.mxu0 0.0
        %2423 = vmatpush1.msra.mxu0 %v2413
        %2424 = vmatprep.subr.mxu0 0.0
        %2425 = vmatpush1.msra.mxu0 %v2412
        %2426 = vmatprep.subr.mxu0 0.0
        %2427 = vmatpush1.msra.mxu0 %v2411
        %2428 = vmatprep.subr.mxu0 0.0
        %2429 = vmatpush1.msra.mxu0 %v2410
        %2430 = vmatprep.subr.mxu0 0.0
        %2431 = vmatpush1.msra.mxu0 %v2409
        %2432 = vmatprep.subr.mxu0 0.0
        %2433 = vmatpush1.msra.mxu0 %v2408
        %2434 = vmatprep.subr.mxu0 0.0
        %2435 = vmatpush1.msra.mxu0 %v2407
        %2436 = vmatprep.subr.mxu0 0.0
        %2437 = vmatpush1.msra.mxu0 %v2406
        %2438 = vmatprep.subr.mxu0 0.0
        %2439 = vmatpush1.msra.mxu0 %v2405
        %2440 = vmatprep.subr.mxu0 0.0
        %2441 = vmatpush1.msra.mxu0 %v2404
        %2442 = vmatprep.subr.mxu0 0.0
        %2443 = vmatpush1.msra.mxu0 %v2403
        %2444 = vmatprep.subr.mxu0 0.0
        %2445 = vmatpush1.msra.mxu0 %v2402
        %2446 = vmatprep.subr.mxu0 0.0
        %2447 = vmatpush1.msra.mxu0 %v2401
        %2448 = vmatprep.subr.mxu0 0.0
        %2449 = vmatpush1.msra.mxu0 %v2400
        %2450 = vmatprep.subr.mxu0 0.0
        %2451 = vmatpush2.msra.mxu0 0.0
        %2452 = vmatprep.subr.mxu0 0.0
        %2453 = vmatpush2.msra.mxu0 0.0
        %2454 = vmatprep.subr.mxu0 0.0
        %2455 = vmatpush2.msra.mxu0 0.0
        %2456 = vmatprep.subr.mxu0 0.0
        %2457 = vmatpush2.msra.mxu0 0.0
        %2458 = vmatprep.subr.mxu0 0.0
        %2459 = vmatpush2.msra.mxu0 0.0
        %2460 = vmatprep.subr.mxu0 0.0
        %2461 = vmatpush2.msra.mxu0 0.0
        %2462 = vmatprep.subr.mxu0 0.0
        %2463 = vmatpush2.msra.mxu0 0.0
        %2464 = vmatprep.subr.mxu0 0.0
        %2465 = vmatpush2.msra.mxu0 0.0
        %2466 = vmatprep.subr.mxu0 0.0
        %2467 = vmatpush2.msra.mxu0 0.0
        %2468 = vmatprep.subr.mxu0 0.0
        %2469 = vmatpush2.msra.mxu0 0.0
        %2470 = vmatprep.subr.mxu0 0.0
        %2471 = vmatpush2.msra.mxu0 0.0
        %2472 = vmatprep.subr.mxu0 0.0
        %2473 = vmatpush2.msra.mxu0 0.0
        %2474 = vmatprep.subr.mxu0 0.0
        %2475 = vmatpush2.msra.mxu0 0.0
        %2476 = vmatprep.subr.mxu0 0.0
        %2477 = vmatpush2.msra.mxu0 0.0
        %2478 = vmatprep.subr.mxu0 0.0
        %2479 = vmatpush2.msra.mxu0 0.0
        %2480 = vmatprep.subr.mxu0 0.0
        %2481 = vmatpush2.msra.mxu0 0.0
        %2482 = vmatprep.mubr.f32.mxu0 0.0
        %2483 = vmatmul.mubr.f32.gmra.mxu0 %v2416
        %v2484 = vpop.f32.mrf.mxu0
        %v2485 = vadd.f32 0.0, %v2484
        %v2486 = vpop.f32.mrf.mxu0
        %2487 = vdwg.mxu0
        %v2488 = vadd.f32 %v2398, %v2485
        %s2489 = scalar_lea.vmem %s7, 512
        %v2490 = vld [vmem:[%s2489] sm:$0xff]
        %v2491 = vld [vmem:[%s2489 + $0x8] sm:$0xff]
        %v2492 = vld [vmem:[%s2489 + $0x10] sm:$0xff]
        %v2493 = vld [vmem:[%s2489 + $0x18] sm:$0xff]
        %v2494 = vld [vmem:[%s2489 + $0x20] sm:$0xff]
        %v2495 = vld [vmem:[%s2489 + $0x28] sm:$0xff]
        %v2496 = vld [vmem:[%s2489 + $0x30] sm:$0xff]
        %v2497 = vld [vmem:[%s2489 + $0x38] sm:$0xff]
        %v2498 = vld [vmem:[%s2489 + $0x40] sm:$0xff]
        %v2499 = vld [vmem:[%s2489 + $0x48] sm:$0xff]
        %v2500 = vld [vmem:[%s2489 + $0x50] sm:$0xff]
        %v2501 = vld [vmem:[%s2489 + $0x58] sm:$0xff]
        %v2502 = vld [vmem:[%s2489 + $0x60] sm:$0xff]
        %v2503 = vld [vmem:[%s2489 + $0x68] sm:$0xff]
        %v2504 = vld [vmem:[%s2489 + $0x70] sm:$0xff]
        %v2505 = vld [vmem:[%s2489 + $0x78] sm:$0xff]
        %v2506 = vrot.slane %v2129, 4
        %2508 = vmatprep.subr.mxu0 0.0
        %2509 = vmatpush1.msra.mxu0 %v2505
        %2510 = vmatprep.subr.mxu0 0.0
        %2511 = vmatpush1.msra.mxu0 %v2504
        %2512 = vmatprep.subr.mxu0 0.0
        %2513 = vmatpush1.msra.mxu0 %v2503
        %2514 = vmatprep.subr.mxu0 0.0
        %2515 = vmatpush1.msra.mxu0 %v2502
        %2516 = vmatprep.subr.mxu0 0.0
        %2517 = vmatpush1.msra.mxu0 %v2501
        %2518 = vmatprep.subr.mxu0 0.0
        %2519 = vmatpush1.msra.mxu0 %v2500
        %2520 = vmatprep.subr.mxu0 0.0
        %2521 = vmatpush1.msra.mxu0 %v2499
        %2522 = vmatprep.subr.mxu0 0.0
        %2523 = vmatpush1.msra.mxu0 %v2498
        %2524 = vmatprep.subr.mxu0 0.0
        %2525 = vmatpush1.msra.mxu0 %v2497
        %2526 = vmatprep.subr.mxu0 0.0
        %2527 = vmatpush1.msra.mxu0 %v2496
        %2528 = vmatprep.subr.mxu0 0.0
        %2529 = vmatpush1.msra.mxu0 %v2495
        %2530 = vmatprep.subr.mxu0 0.0
        %2531 = vmatpush1.msra.mxu0 %v2494
        %2532 = vmatprep.subr.mxu0 0.0
        %2533 = vmatpush1.msra.mxu0 %v2493
        %2534 = vmatprep.subr.mxu0 0.0
        %2535 = vmatpush1.msra.mxu0 %v2492
        %2536 = vmatprep.subr.mxu0 0.0
        %2537 = vmatpush1.msra.mxu0 %v2491
        %2538 = vmatprep.subr.mxu0 0.0
        %2539 = vmatpush1.msra.mxu0 %v2490
        %2540 = vmatprep.subr.mxu0 0.0
        %2541 = vmatpush2.msra.mxu0 0.0
        %2542 = vmatprep.subr.mxu0 0.0
        %2543 = vmatpush2.msra.mxu0 0.0
        %2544 = vmatprep.subr.mxu0 0.0
        %2545 = vmatpush2.msra.mxu0 0.0
        %2546 = vmatprep.subr.mxu0 0.0
        %2547 = vmatpush2.msra.mxu0 0.0
        %2548 = vmatprep.subr.mxu0 0.0
        %2549 = vmatpush2.msra.mxu0 0.0
        %2550 = vmatprep.subr.mxu0 0.0
        %2551 = vmatpush2.msra.mxu0 0.0
        %2552 = vmatprep.subr.mxu0 0.0
        %2553 = vmatpush2.msra.mxu0 0.0
        %2554 = vmatprep.subr.mxu0 0.0
        %2555 = vmatpush2.msra.mxu0 0.0
        %2556 = vmatprep.subr.mxu0 0.0
        %2557 = vmatpush2.msra.mxu0 0.0
        %2558 = vmatprep.subr.mxu0 0.0
        %2559 = vmatpush2.msra.mxu0 0.0
        %2560 = vmatprep.subr.mxu0 0.0
        %2561 = vmatpush2.msra.mxu0 0.0
        %2562 = vmatprep.subr.mxu0 0.0
        %2563 = vmatpush2.msra.mxu0 0.0
        %2564 = vmatprep.subr.mxu0 0.0
        %2565 = vmatpush2.msra.mxu0 0.0
        %2566 = vmatprep.subr.mxu0 0.0
        %2567 = vmatpush2.msra.mxu0 0.0
        %2568 = vmatprep.subr.mxu0 0.0
        %2569 = vmatpush2.msra.mxu0 0.0
        %2570 = vmatprep.subr.mxu0 0.0
        %2571 = vmatpush2.msra.mxu0 0.0
        %2572 = vmatprep.mubr.f32.mxu0 0.0
        %2573 = vmatmul.mubr.f32.gmra.mxu0 %v2506
        %v2574 = vpop.f32.mrf.mxu0
        %v2575 = vadd.f32 0.0, %v2574
        %v2576 = vpop.f32.mrf.mxu0
        %2577 = vdwg.mxu0
        %v2578 = vadd.f32 %v2488, %v2575
        %v2579 = vmax.f32 %v2578, 0.0
        %v2580 = vld [vmem:[#allocation7] sm:$0xff]
        %v2581 = vld [vmem:[#allocation7 + $0x8] sm:$0xff]
        %v2582 = vld [vmem:[#allocation7 + $0x10] sm:$0xff]
        %v2583 = vld [vmem:[#allocation7 + $0x18] sm:$0xff]
        %v2584 = vld [vmem:[#allocation7 + $0x20] sm:$0xff]
        %v2585 = vld [vmem:[#allocation7 + $0x28] sm:$0xff]
        %v2586 = vld [vmem:[#allocation7 + $0x30] sm:$0xff]
        %v2587 = vld [vmem:[#allocation7 + $0x38] sm:$0xff]
        %v2588 = vld [vmem:[#allocation7 + $0x40] sm:$0xff]
        %v2589 = vld [vmem:[#allocation7 + $0x48] sm:$0xff]
        %v2590 = vld [vmem:[#allocation7 + $0x50] sm:$0xff]
        %v2591 = vld [vmem:[#allocation7 + $0x58] sm:$0xff]
        %v2592 = vld [vmem:[#allocation7 + $0x60] sm:$0xff]
        %v2593 = vld [vmem:[#allocation7 + $0x68] sm:$0xff]
        %v2594 = vld [vmem:[#allocation7 + $0x70] sm:$0xff]
        %v2595 = vld [vmem:[#allocation7 + $0x78] sm:$0xff]
        %v2596 = vld [vmem:[%s10] sm:$0x1]
        %2597 = vmatprep.subr.mxu0 0.0
        %2598 = vmatpush1.msra.mxu0 %v2595
        %2599 = vmatprep.subr.mxu0 0.0
        %2600 = vmatpush1.msra.mxu0 %v2594
        %2601 = vmatprep.subr.mxu0 0.0
        %2602 = vmatpush1.msra.mxu0 %v2593
        %2603 = vmatprep.subr.mxu0 0.0
        %2604 = vmatpush1.msra.mxu0 %v2592
        %2605 = vmatprep.subr.mxu0 0.0
        %2606 = vmatpush1.msra.mxu0 %v2591
        %2607 = vmatprep.subr.mxu0 0.0
        %2608 = vmatpush1.msra.mxu0 %v2590
        %2609 = vmatprep.subr.mxu0 0.0
        %2610 = vmatpush1.msra.mxu0 %v2589
        %2611 = vmatprep.subr.mxu0 0.0
        %2612 = vmatpush1.msra.mxu0 %v2588
        %2613 = vmatprep.subr.mxu0 0.0
        %2614 = vmatpush1.msra.mxu0 %v2587
        %2615 = vmatprep.subr.mxu0 0.0
        %2616 = vmatpush1.msra.mxu0 %v2586
        %2617 = vmatprep.subr.mxu0 0.0
        %2618 = vmatpush1.msra.mxu0 %v2585
        %2619 = vmatprep.subr.mxu0 0.0
        %2620 = vmatpush1.msra.mxu0 %v2584
        %2621 = vmatprep.subr.mxu0 0.0
        %2622 = vmatpush1.msra.mxu0 %v2583
        %2623 = vmatprep.subr.mxu0 0.0
        %2624 = vmatpush1.msra.mxu0 %v2582
        %2625 = vmatprep.subr.mxu0 0.0
        %2626 = vmatpush1.msra.mxu0 %v2581
        %2627 = vmatprep.subr.mxu0 0.0
        %2628 = vmatpush1.msra.mxu0 %v2580
        %2629 = vmatprep.subr.mxu0 0.0
        %2630 = vmatpush2.msra.mxu0 0.0
        %2631 = vmatprep.subr.mxu0 0.0
        %2632 = vmatpush2.msra.mxu0 0.0
        %2633 = vmatprep.subr.mxu0 0.0
        %2634 = vmatpush2.msra.mxu0 0.0
        %2635 = vmatprep.subr.mxu0 0.0
        %2636 = vmatpush2.msra.mxu0 0.0
        %2637 = vmatprep.subr.mxu0 0.0
        %2638 = vmatpush2.msra.mxu0 0.0
        %2639 = vmatprep.subr.mxu0 0.0
        %2640 = vmatpush2.msra.mxu0 0.0
        %2641 = vmatprep.subr.mxu0 0.0
        %2642 = vmatpush2.msra.mxu0 0.0
        %2643 = vmatprep.subr.mxu0 0.0
        %2644 = vmatpush2.msra.mxu0 0.0
        %2645 = vmatprep.subr.mxu0 0.0
        %2646 = vmatpush2.msra.mxu0 0.0
        %2647 = vmatprep.subr.mxu0 0.0
        %2648 = vmatpush2.msra.mxu0 0.0
        %2649 = vmatprep.subr.mxu0 0.0
        %2650 = vmatpush2.msra.mxu0 0.0
        %2651 = vmatprep.subr.mxu0 0.0
        %2652 = vmatpush2.msra.mxu0 0.0
        %2653 = vmatprep.subr.mxu0 0.0
        %2654 = vmatpush2.msra.mxu0 0.0
        %2655 = vmatprep.subr.mxu0 0.0
        %2656 = vmatpush2.msra.mxu0 0.0
        %2657 = vmatprep.subr.mxu0 0.0
        %2658 = vmatpush2.msra.mxu0 0.0
        %2659 = vmatprep.subr.mxu0 0.0
        %2660 = vmatpush2.msra.mxu0 0.0
        %2661 = vmatprep.mubr.f32.mxu0 0.0
        %2662 = vmatmul.mubr.f32.gmra.mxu0 %v2579
        %v2663 = vpop.f32.mrf.mxu0
        %v2664 = vadd.f32 %v2596, %v2663
        %v2665 = vpop.f32.mrf.mxu0
        %2666 = vdwg.mxu0
        %v2667 = vmax.f32 %v2664, 0.0
        %v2668 = vld [vmem:[#allocation8] sm:$0xff]
        %v2669 = vld [vmem:[#allocation8 + $0x8] sm:$0xff]
        %v2670 = vld [vmem:[#allocation8 + $0x10] sm:$0xff]
        %v2671 = vld [vmem:[#allocation8 + $0x18] sm:$0xff]
        %v2672 = vld [vmem:[#allocation8 + $0x20] sm:$0xff]
        %v2673 = vld [vmem:[#allocation8 + $0x28] sm:$0xff]
        %v2674 = vld [vmem:[#allocation8 + $0x30] sm:$0xff]
        %v2675 = vld [vmem:[#allocation8 + $0x38] sm:$0xff]
        %v2676 = vld [vmem:[#allocation8 + $0x40] sm:$0xff]
        %v2677 = vld [vmem:[#allocation8 + $0x48] sm:$0xff]
        %v2678 = vld [vmem:[#allocation8 + $0x50] sm:$0xff]
        %v2679 = vld [vmem:[#allocation8 + $0x58] sm:$0xff]
        %v2680 = vld [vmem:[#allocation8 + $0x60] sm:$0xff]
        %v2681 = vld [vmem:[#allocation8 + $0x68] sm:$0xff]
        %v2682 = vld [vmem:[#allocation8 + $0x70] sm:$0xff]
        %v2683 = vld [vmem:[#allocation8 + $0x78] sm:$0xff]
        %v2684 = vld [vmem:[%s12] sm:$0x1]
        %2685 = vmatprep.subr.mxu0 0.0
        %2686 = vmatpush1.msra.mxu0 %v2683
        %2687 = vmatprep.subr.mxu0 0.0
        %2688 = vmatpush1.msra.mxu0 %v2682
        %2689 = vmatprep.subr.mxu0 0.0
        %2690 = vmatpush1.msra.mxu0 %v2681
        %2691 = vmatprep.subr.mxu0 0.0
        %2692 = vmatpush1.msra.mxu0 %v2680
        %2693 = vmatprep.subr.mxu0 0.0
        %2694 = vmatpush1.msra.mxu0 %v2679
        %2695 = vmatprep.subr.mxu0 0.0
        %2696 = vmatpush1.msra.mxu0 %v2678
        %2697 = vmatprep.subr.mxu0 0.0
        %2698 = vmatpush1.msra.mxu0 %v2677
        %2699 = vmatprep.subr.mxu0 0.0
        %2700 = vmatpush1.msra.mxu0 %v2676
        %2701 = vmatprep.subr.mxu0 0.0
        %2702 = vmatpush1.msra.mxu0 %v2675
        %2703 = vmatprep.subr.mxu0 0.0
        %2704 = vmatpush1.msra.mxu0 %v2674
        %2705 = vmatprep.subr.mxu0 0.0
        %2706 = vmatpush1.msra.mxu0 %v2673
        %2707 = vmatprep.subr.mxu0 0.0
        %2708 = vmatpush1.msra.mxu0 %v2672
        %2709 = vmatprep.subr.mxu0 0.0
        %2710 = vmatpush1.msra.mxu0 %v2671
        %2711 = vmatprep.subr.mxu0 0.0
        %2712 = vmatpush1.msra.mxu0 %v2670
        %2713 = vmatprep.subr.mxu0 0.0
        %2714 = vmatpush1.msra.mxu0 %v2669
        %2715 = vmatprep.subr.mxu0 0.0
        %2716 = vmatpush1.msra.mxu0 %v2668
        %2717 = vmatprep.subr.mxu0 0.0
        %2718 = vmatpush2.msra.mxu0 0.0
        %2719 = vmatprep.subr.mxu0 0.0
        %2720 = vmatpush2.msra.mxu0 0.0
        %2721 = vmatprep.subr.mxu0 0.0
        %2722 = vmatpush2.msra.mxu0 0.0
        %2723 = vmatprep.subr.mxu0 0.0
        %2724 = vmatpush2.msra.mxu0 0.0
        %2725 = vmatprep.subr.mxu0 0.0
        %2726 = vmatpush2.msra.mxu0 0.0
        %2727 = vmatprep.subr.mxu0 0.0
        %2728 = vmatpush2.msra.mxu0 0.0
        %2729 = vmatprep.subr.mxu0 0.0
        %2730 = vmatpush2.msra.mxu0 0.0
        %2731 = vmatprep.subr.mxu0 0.0
        %2732 = vmatpush2.msra.mxu0 0.0
        %2733 = vmatprep.subr.mxu0 0.0
        %2734 = vmatpush2.msra.mxu0 0.0
        %2735 = vmatprep.subr.mxu0 0.0
        %2736 = vmatpush2.msra.mxu0 0.0
        %2737 = vmatprep.subr.mxu0 0.0
        %2738 = vmatpush2.msra.mxu0 0.0
        %2739 = vmatprep.subr.mxu0 0.0
        %2740 = vmatpush2.msra.mxu0 0.0
        %2741 = vmatprep.subr.mxu0 0.0
        %2742 = vmatpush2.msra.mxu0 0.0
        %2743 = vmatprep.subr.mxu0 0.0
        %2744 = vmatpush2.msra.mxu0 0.0
        %2745 = vmatprep.subr.mxu0 0.0
        %2746 = vmatpush2.msra.mxu0 0.0
        %2747 = vmatprep.subr.mxu0 0.0
        %2748 = vmatpush2.msra.mxu0 0.0
        %2749 = vmatprep.mubr.f32.mxu0 0.0
        %2750 = vmatmul.mubr.f32.gmra.mxu0 %v2667
        %v2751 = vpop.f32.mrf.mxu0
        %v2752 = vadd.f32 %v2684, %v2751
        %v2753 = vpop.f32.mrf.mxu0
        %2754 = vdwg.mxu0
        %v2755 = vlaneseq
        %v2756 = vand.u32 %v2755, 127
        %vm2757 = vcmp.lt.s32.totalorder %v2756, 10
        %v2758 = vsel %vm2757, %v2752, -1e+30
        %vm2759 = vcmask 1040384
        %v2760 = vsel %vm2759, %v2758, -inf
        %2761 = vmax.xlane.f32.xlu0 %v2760
        %v2762 = vpop.xlane.xlu0 %2761
        %v2763 = vsub.f32 %v2758, %v2762
        %v2764 = vmul.f32 %v2763, 1.442695
        %v2765 = vpow.pop %v2764
        %v2766 = vsel %vm2757, %v2765, 0.0
        %v2767 = vsel %vm2759, %v2766, 0.0
        %2768 = vadd.xlane.f32.xlu0 %v2767
        %v2769 = vpop.xlane.xlu0 %2768
        %v2770 = vlog2.pop %v2769
        %v2771 = vmul.f32 %v2770, 0.6931472
        %v2772 = vsub.f32 %v2763, %v2771
        %2773 = vst [vmem:[%s491] sm:$0x1] %v2772
        %s2774 = sand.u32 %s316, 1
        %s2775 = scalar_lea.sflag [#allocation4], %s2774
        %s2776 = sand.u32 %s316, 1
        %s2777 = scalar_lea.vmem [#allocation10], %s2776
        // Predicated region
        $region89: #{cifar_cnn_forward.1} parent=71 // pred_check
          %p2778 = pneg %p326
        $region90: #{cifar_cnn_forward.1} parent=71 // pred_check_branch
          %2780 = sbr.rel (%p2778) target = $region92
        $region91: #{cifar_cnn_forward.1} parent=71 // pred_region
          %s2782 = ssub.s32 16, 16
          %2783 = vsyncadd %s2775, %s2782
          %s2784 = smul.addr %s30, 16
          %s2785 = scalar_lea.hbm %s13, %s2784
          %s2787 = sshll.u32 %s2777, 4
          %s2788 = int_to_ptr.vmem [resolvable:$true] %s2787
          %2790 = dma.vmem_to_hbm [thread:$0]  %s2788, 16, %s2785, %s2775
        $region92: #{cifar_cnn_forward.1} parent=71 // pred_fallthru
          _
      $region72: #{cifar_cnn_forward.1} parent=5 // pred_fallthru
        _
      %p2791 = scmp.le.s32.totalorder 2, %s25
      // Predicated region
      $region93: #{cifar_cnn_forward.1} parent=5 // pred_check
        %p2792 = pneg %p2791
      $region94: #{cifar_cnn_forward.1} parent=5 // pred_check_branch
        %2794 = sbr.rel (%p2792) target = $region96
      $region95: #{cifar_cnn_forward.1} parent=5 // pred_region
        %s2795 = ssub.s32 %s25, 2
        // Predicated region
        $region97: #{cifar_cnn_forward.1} parent=95 // pred_check
          %p2796 = pneg %p332
        $region98: #{cifar_cnn_forward.1} parent=95 // pred_check_branch
          %2798 = sbr.rel (%p2796) target = $region100
        $region99: #{cifar_cnn_forward.1} parent=95 // pred_region
          %s2799 = sand.u32 %s317, 1
          %s2800 = scalar_lea.sflag [#allocation4], %s2799
          %s2801 = sand.u32 %s317, 1
          %s2802 = scalar_lea.vmem [#allocation10], %s2801
          %2803 = dma.done %s2800, 16
        $region100: #{cifar_cnn_forward.1} parent=95 // pred_fallthru
          _
      $region96: #{cifar_cnn_forward.1} parent=5 // pred_fallthru
        _
    $region6: #{cifar_cnn_forward.1} parent=1 // loop_footer
      %s29 = sadd.s32 1, %s25
    $region7: #{cifar_cnn_forward.1} parent=1 // loop_footer_branch
      %24 = sbr.rel target = $region3
    $region8: #{cifar_cnn_forward.1} parent=1 // loop_exit
      _
    %2804 = vsyncpa [#allocation3], 1
    %s2805 = scalar_lea.sflag [#allocation3], 1
    %2806 = vsyncpa %s2805, 1
    %2807 = vsyncpa [#allocation6], 1
    %2808 = vsyncpa [#allocation9], 1
    %2809 = vsyncpa [#allocation4], 1
    %s2810 = scalar_lea.sflag [#allocation4], 1
    %2811 = vsyncpa %s2810, 1

</llo_original>
